<compile_context>
chip_gen: v6e
topology: v6e:2x2x1
jax: 0.10.0
libtpu: 0.0.40
codegen_flags: <defaults>
</compile_context>

<pallas_src>
import functools

import jax
import jax.numpy as jnp
from jax.experimental import pallas as pl
from jax.experimental.pallas import tpu as pltpu


def _unet_down_kernel(x_ref, w1_ref, w2_ref, o_ref, *, eps, neg_slope):
    """One batch-tile per grid step.

    x_ref  : (B, Cin, H, W)        bf16 input tile (NCHW)
    w1_ref : (Cout, 9*Cin)         conv1 weights, (o, (kh*3+kw)*Cin + c), bf16
    w2_ref : (Cout, 9*Cout)        conv2 weights, bf16
    o_ref  : (B, Cout, H/2, W/2)   f32 output tile (NCHW)
    """
    B, Cin, H, W = x_ref.shape
    Cout = w1_ref.shape[0]
    H2, W2 = H // 2, W // 2
    R = H2 * W2
    inv_R = 1.0 / R

    x = x_ref[...].astype(jnp.float32)          # (B, Cin, H, W)
    w1 = w1_ref[...]                            # bf16
    w2 = w2_ref[...]                            # bf16

    # ---- 2x2 average pool, stride 2 (reshape-sum; no strided ref loads) ----
    def pool_one(xb):                           # (Cin, H, W) -> (Cin, H2, W2)
        xr = xb.reshape(Cin, H2, 2, W2, 2)
        return 0.25 * jnp.sum(xr, axis=(2, 4))

    # channel-first layout (C, B, H2, W2): keeps spatial on lanes and lets both
    # convs run as a single MXU matmul with batch folded into the lane dim.
    pooled = jnp.stack([pool_one(x[b]) for b in range(B)], axis=1)   # (Cin, B, H2, W2)

    def im2col(z):                              # (C, B, H2, W2) bf16 -> (9C, B*R) bf16
        C = z.shape[0]
        zrow = jnp.zeros((C, B, 1, W2), z.dtype)
        zp = jnp.concatenate([zrow, z, zrow], axis=2)                # pad H
        zcol = jnp.zeros((C, B, H2 + 2, 1), z.dtype)
        zp = jnp.concatenate([zcol, zp, zcol], axis=3)               # pad W
        taps = [zp[:, :, kh:kh + H2, kw:kw + W2]
                for kh in range(3) for kw in range(3)]               # 9 x (C,B,H2,W2)
        return jnp.concatenate(taps, axis=0).reshape(9 * C, B * R)

    def conv_in_lrelu(z, wmat):
        # z: (C, B, H2, W2) f32;  wmat: (Cout, 9*C) bf16
        patches = im2col(z.astype(jnp.bfloat16))                     # (9C, B*R)
        y = jnp.dot(wmat, patches, preferred_element_type=jnp.float32)  # (Cout, B*R)
        y = y.reshape(Cout, B, H2, W2)
        # InstanceNorm2d (no affine, biased variance), single-pass stats in f32
        s1 = jnp.sum(y, axis=(2, 3), keepdims=True)
        s2 = jnp.sum(y * y, axis=(2, 3), keepdims=True)
        mu = s1 * inv_R
        var = jnp.maximum(s2 * inv_R - mu * mu, 0.0)
        y = (y - mu) * jax.lax.rsqrt(var + eps)
        # LeakyReLU(0.2) without a compare+select
        return jnp.maximum(y, neg_slope * y)

    y1 = conv_in_lrelu(pooled, w1)              # (Cout, B, H2, W2)
    # TODO(synk): nn.Dropout2d is identity at inference time; drop_prob is not applied.
    y2 = conv_in_lrelu(y1, w2)                  # (Cout, B, H2, W2)

    # back to NCHW tile (B, Cout, H2, W2) and a single full-block store
    o_ref[...] = jnp.stack([y2[:, b] for b in range(B)], axis=0).astype(o_ref.dtype)


def unet_down(x_nchw, w1_oihw, w2_oihw, *, eps=1e-5, neg_slope=0.2, batch_tile=None):
    """x_nchw: (N, Cin, H, W) -> (N, Cout, H/2, W/2), all NCHW (no wrapper transposes)."""
    N, Cin, H, W = x_nchw.shape
    Cout = w1_oihw.shape[0]
    assert H % 2 == 0 and W % 2 == 0
    H2, W2 = H // 2, W // 2

    if batch_tile is None:
        # amortize per-grid-step overhead for larger N while keeping >=2 grid steps
        # (both v7x TensorCores busy) for small N.
        batch_tile = 2 if (N % 2 == 0 and N > 2) else 1
    assert N % batch_tile == 0

    # bf16 operands for the MXU (halves input DMA bytes); accumulation stays f32.
    x_b16 = x_nchw.astype(jnp.bfloat16)
    w1mat = jnp.transpose(w1_oihw, (0, 2, 3, 1)).reshape(Cout, 9 * Cin).astype(jnp.bfloat16)
    w2mat = jnp.transpose(w2_oihw, (0, 2, 3, 1)).reshape(Cout, 9 * Cout).astype(jnp.bfloat16)

    kernel = functools.partial(_unet_down_kernel, eps=eps, neg_slope=neg_slope)

    out = pl.pallas_call(
        kernel,
        out_shape=jax.ShapeDtypeStruct((N, Cout, H2, W2), jnp.float32),
        grid_spec=pltpu.PrefetchScalarGridSpec(
            num_scalar_prefetch=0,
            grid=(N // batch_tile,),
            in_specs=[
                pl.BlockSpec((batch_tile, Cin, H, W), lambda b: (b, 0, 0, 0)),
                pl.BlockSpec((Cout, 9 * Cin), lambda b: (0, 0)),
                pl.BlockSpec((Cout, 9 * Cout), lambda b: (0, 0)),
            ],
            out_specs=pl.BlockSpec((batch_tile, Cout, H2, W2), lambda b: (b, 0, 0, 0)),
        ),
        compiler_params=pltpu.CompilerParams(dimension_semantics=("parallel",)),
    )(x_b16, w1mat, w2mat)
    return out


def _reference(x_nchw, w1, w2, eps=1e-5, neg_slope=0.2):
    """Pure-JAX f32 reference of Unet_down forward (matches PyTorch semantics)."""
    N, C, H, W = x_nchw.shape

    # AvgPool2d(2)
    xp = x_nchw.reshape(N, C, H // 2, 2, W // 2, 2).mean(axis=(3, 5))

    def conv3(x, w):  # x: (N,Ci,h,w), w: (Co,Ci,3,3), padding=1, bias=False
        n, ci, h, wd = x.shape
        co = w.shape[0]
        xpad = jnp.pad(x, ((0, 0), (0, 0), (1, 1), (1, 1)))
        out = jnp.zeros((n, co, h, wd), jnp.float32)
        for kh in range(3):
            for kw in range(3):
                win = xpad[:, :, kh:kh + h, kw:kw + wd]
                out = out + jnp.einsum('nchw,oc->nohw', win, w[:, :, kh, kw],
                                       precision='highest')
        return out

    def inorm_lrelu(x):
        mu = x.mean(axis=(2, 3), keepdims=True)
        var = ((x - mu) ** 2).mean(axis=(2, 3), keepdims=True)
        x = (x - mu) * jax.lax.rsqrt(var + eps)
        return jnp.where(x >= 0, x, neg_slope * x)

    y = inorm_lrelu(conv3(xp, w1))
    y = inorm_lrelu(conv3(y, w2))
    return y


if __name__ == "__main__":
    # Shapes implied by the module: in_channel=4, out_channel=8, drop_prob unused (eval).
    N, Cin, H, W = 2, 4, 16, 16
    Cout = 8

    key = jax.random.PRNGKey(0)
    kx, k1, k2 = jax.random.split(key, 3)
    x = jax.random.normal(kx, (N, Cin, H, W), jnp.float32)
    w1 = jax.random.normal(k1, (Cout, Cin, 3, 3), jnp.float32) * (1.0 / (Cin * 9) ** 0.5)
    w2 = jax.random.normal(k2, (Cout, Cout, 3, 3), jnp.float32) * (1.0 / (Cout * 9) ** 0.5)

    out = jax.block_until_ready(unet_down(x, w1, w2))
    ref = _reference(x, w1, w2)

    assert out.shape == (N, Cout, H // 2, W // 2), out.shape
    max_err = float(jnp.max(jnp.abs(out - ref)))
    # bf16 matmul operands vs f32 reference -> ~1e-3..1e-2 relative error budget
    assert jnp.allclose(out, ref, atol=2e-2, rtol=2e-2), max_err

    print("KERNEL_OK")
</pallas_src>

<mosaic_0001>
module attributes {stable_mosaic.version = 11 : i64} {
  func.func @_unet_down_kernel(%arg0: i32, %arg1: memref<1x4x16x16xbf16, #tpu.memory_space<vmem>>, %arg2: memref<8x36xbf16, #tpu.memory_space<vmem>>, %arg3: memref<8x72xbf16, #tpu.memory_space<vmem>>, %arg4: memref<1x8x8x8xf32, #tpu.memory_space<vmem>>) attributes {dimension_semantics = [#tpu.dimension_semantics<parallel>], iteration_bounds = array<i64: 2>, scalar_prefetch = 0 : i64, scratch_operands = 0 : i64, tpu.core_type = #tpu.core_type<tc>, window_params = [{transform_indices = @transform_0, window_bounds = array<i64: 1, 4, 16, 16>}, {pipeline_mode = #tpu.pipeline_mode<synchronous>, transform_indices = @transform_1, window_bounds = array<i64: 8, 36>}, {pipeline_mode = #tpu.pipeline_mode<synchronous>, transform_indices = @transform_2, window_bounds = array<i64: 8, 72>}, {transform_indices = @transform_3, window_bounds = array<i64: 1, 8, 8, 8>}]} {
    %c0 = arith.constant 0 : index
    %c0_0 = arith.constant 0 : index
    %c0_1 = arith.constant 0 : index
    %c0_2 = arith.constant 0 : index
    %0 = vector.load %arg1[%c0, %c0_0, %c0_1, %c0_2] : memref<1x4x16x16xbf16, #tpu.memory_space<vmem>>, vector<1x4x16x16xbf16>
    %1 = arith.extf %0 : vector<1x4x16x16xbf16> to vector<1x4x16x16xf32>
    %c0_3 = arith.constant 0 : index
    %c0_4 = arith.constant 0 : index
    %2 = vector.load %arg2[%c0_3, %c0_4] : memref<8x36xbf16, #tpu.memory_space<vmem>>, vector<8x36xbf16>
    %c0_5 = arith.constant 0 : index
    %c0_6 = arith.constant 0 : index
    %3 = vector.load %arg3[%c0_5, %c0_6] : memref<8x72xbf16, #tpu.memory_space<vmem>>, vector<8x72xbf16>
    %4 = vector.shape_cast %1 : vector<1x4x16x16xf32> to vector<4x16x16xf32>
    %5 = vector.shape_cast %4 : vector<4x16x16xf32> to vector<4x8x2x8x2xf32>
    %cst = arith.constant dense<0.000000e+00> : vector<4x8x8xf32>
    %6 = vector.multi_reduction <add>, %5, %cst [2, 4] : vector<4x8x2x8x2xf32> to vector<4x8x8xf32>
    %cst_7 = arith.constant 2.500000e-01 : f32
    %7 = vector.broadcast %cst_7 : f32 to vector<4x8x8xf32>
    %8 = arith.mulf %7, %6 : vector<4x8x8xf32>
    %9 = vector.shape_cast %8 : vector<4x8x8xf32> to vector<4x1x8x8xf32>
    %10 = arith.truncf %9 : vector<4x1x8x8xf32> to vector<4x1x8x8xbf16>
    %cst_8 = arith.constant 0.000000e+00 : bf16
    %11 = vector.broadcast %cst_8 : bf16 to vector<4x1x1x8xbf16>
    %12 = tpu.concatenate %11, %10, %11 in 2 : vector<4x1x1x8xbf16>, vector<4x1x8x8xbf16>, vector<4x1x1x8xbf16> -> vector<4x1x10x8xbf16>
    %cst_9 = arith.constant 0.000000e+00 : bf16
    %13 = vector.broadcast %cst_9 : bf16 to vector<4x1x10x1xbf16>
    %14 = tpu.concatenate %13, %12, %13 in 3 : vector<4x1x10x1xbf16>, vector<4x1x10x8xbf16>, vector<4x1x10x1xbf16> -> vector<4x1x10x10xbf16>
    %15 = vector.extract_strided_slice %14 {offsets = [0, 0, 0, 0], sizes = [4, 1, 8, 8], strides = [1, 1, 1, 1]} : vector<4x1x10x10xbf16> to vector<4x1x8x8xbf16>
    %16 = vector.extract_strided_slice %14 {offsets = [0, 0, 0, 1], sizes = [4, 1, 8, 8], strides = [1, 1, 1, 1]} : vector<4x1x10x10xbf16> to vector<4x1x8x8xbf16>
    %17 = vector.extract_strided_slice %14 {offsets = [0, 0, 0, 2], sizes = [4, 1, 8, 8], strides = [1, 1, 1, 1]} : vector<4x1x10x10xbf16> to vector<4x1x8x8xbf16>
    %18 = vector.extract_strided_slice %14 {offsets = [0, 0, 1, 0], sizes = [4, 1, 8, 8], strides = [1, 1, 1, 1]} : vector<4x1x10x10xbf16> to vector<4x1x8x8xbf16>
    %19 = vector.extract_strided_slice %14 {offsets = [0, 0, 1, 1], sizes = [4, 1, 8, 8], strides = [1, 1, 1, 1]} : vector<4x1x10x10xbf16> to vector<4x1x8x8xbf16>
    %20 = vector.extract_strided_slice %14 {offsets = [0, 0, 1, 2], sizes = [4, 1, 8, 8], strides = [1, 1, 1, 1]} : vector<4x1x10x10xbf16> to vector<4x1x8x8xbf16>
    %21 = vector.extract_strided_slice %14 {offsets = [0, 0, 2, 0], sizes = [4, 1, 8, 8], strides = [1, 1, 1, 1]} : vector<4x1x10x10xbf16> to vector<4x1x8x8xbf16>
    %22 = vector.extract_strided_slice %14 {offsets = [0, 0, 2, 1], sizes = [4, 1, 8, 8], strides = [1, 1, 1, 1]} : vector<4x1x10x10xbf16> to vector<4x1x8x8xbf16>
    %23 = vector.extract_strided_slice %14 {offsets = [0, 0, 2, 2], sizes = [4, 1, 8, 8], strides = [1, 1, 1, 1]} : vector<4x1x10x10xbf16> to vector<4x1x8x8xbf16>
    %24 = tpu.concatenate %15, %16, %17, %18, %19, %20, %21, %22, %23 in 0 : vector<4x1x8x8xbf16>, vector<4x1x8x8xbf16>, vector<4x1x8x8xbf16>, vector<4x1x8x8xbf16>, vector<4x1x8x8xbf16>, vector<4x1x8x8xbf16>, vector<4x1x8x8xbf16>, vector<4x1x8x8xbf16>, vector<4x1x8x8xbf16> -> vector<36x1x8x8xbf16>
    %25 = vector.shape_cast %24 : vector<36x1x8x8xbf16> to vector<36x64xbf16>
    %cst_10 = arith.constant dense<0.000000e+00> : vector<8x64xf32>
    %26 = tpu.matmul %2, %25, %cst_10 {dimension_numbers = #tpu.dot_dimension_numbers<[1], [0], [0], [1], [0, 0, 1, 1], [], []>} : vector<8x36xbf16>, vector<36x64xbf16>, vector<8x64xf32> -> vector<8x64xf32>
    %27 = vector.shape_cast %26 : vector<8x64xf32> to vector<8x1x8x8xf32>
    %cst_11 = arith.constant dense<0.000000e+00> : vector<8x1xf32>
    %28 = vector.multi_reduction <add>, %27, %cst_11 [2, 3] : vector<8x1x8x8xf32> to vector<8x1xf32>
    %29 = vector.shape_cast %28 : vector<8x1xf32> to vector<8x1x1x1xf32>
    %30 = arith.mulf %27, %27 : vector<8x1x8x8xf32>
    %cst_12 = arith.constant dense<0.000000e+00> : vector<8x1xf32>
    %31 = vector.multi_reduction <add>, %30, %cst_12 [2, 3] : vector<8x1x8x8xf32> to vector<8x1xf32>
    %32 = vector.shape_cast %31 : vector<8x1xf32> to vector<8x1x1x1xf32>
    %cst_13 = arith.constant 1.562500e-02 : f32
    %33 = vector.broadcast %cst_13 : f32 to vector<8x1x1x1xf32>
    %34 = arith.mulf %29, %33 : vector<8x1x1x1xf32>
    %cst_14 = arith.constant 1.562500e-02 : f32
    %35 = vector.broadcast %cst_14 : f32 to vector<8x1x1x1xf32>
    %36 = arith.mulf %32, %35 : vector<8x1x1x1xf32>
    %37 = arith.mulf %34, %34 : vector<8x1x1x1xf32>
    %38 = arith.subf %36, %37 : vector<8x1x1x1xf32>
    %cst_15 = arith.constant 0.000000e+00 : f32
    %39 = vector.broadcast %cst_15 : f32 to vector<8x1x1x1xf32>
    %40 = arith.maximumf %38, %39 : vector<8x1x1x1xf32>
    %41 = vector.broadcast %34 : vector<8x1x1x1xf32> to vector<8x1x8x8xf32>
    %42 = arith.subf %27, %41 : vector<8x1x8x8xf32>
    %cst_16 = arith.constant 9.99999974E-6 : f32
    %43 = vector.broadcast %cst_16 : f32 to vector<8x1x1x1xf32>
    %44 = arith.addf %40, %43 : vector<8x1x1x1xf32>
    %45 = math.rsqrt %44 : vector<8x1x1x1xf32>
    %46 = vector.broadcast %45 : vector<8x1x1x1xf32> to vector<8x1x8x8xf32>
    %47 = arith.mulf %42, %46 : vector<8x1x8x8xf32>
    %cst_17 = arith.constant 2.000000e-01 : f32
    %48 = vector.broadcast %cst_17 : f32 to vector<8x1x8x8xf32>
    %49 = arith.mulf %48, %47 : vector<8x1x8x8xf32>
    %50 = arith.maximumf %47, %49 : vector<8x1x8x8xf32>
    %51 = arith.truncf %50 : vector<8x1x8x8xf32> to vector<8x1x8x8xbf16>
    %cst_18 = arith.constant 0.000000e+00 : bf16
    %52 = vector.broadcast %cst_18 : bf16 to vector<8x1x1x8xbf16>
    %53 = tpu.concatenate %52, %51, %52 in 2 : vector<8x1x1x8xbf16>, vector<8x1x8x8xbf16>, vector<8x1x1x8xbf16> -> vector<8x1x10x8xbf16>
    %cst_19 = arith.constant 0.000000e+00 : bf16
    %54 = vector.broadcast %cst_19 : bf16 to vector<8x1x10x1xbf16>
    %55 = tpu.concatenate %54, %53, %54 in 3 : vector<8x1x10x1xbf16>, vector<8x1x10x8xbf16>, vector<8x1x10x1xbf16> -> vector<8x1x10x10xbf16>
    %56 = vector.extract_strided_slice %55 {offsets = [0, 0, 0, 0], sizes = [8, 1, 8, 8], strides = [1, 1, 1, 1]} : vector<8x1x10x10xbf16> to vector<8x1x8x8xbf16>
    %57 = vector.extract_strided_slice %55 {offsets = [0, 0, 0, 1], sizes = [8, 1, 8, 8], strides = [1, 1, 1, 1]} : vector<8x1x10x10xbf16> to vector<8x1x8x8xbf16>
    %58 = vector.extract_strided_slice %55 {offsets = [0, 0, 0, 2], sizes = [8, 1, 8, 8], strides = [1, 1, 1, 1]} : vector<8x1x10x10xbf16> to vector<8x1x8x8xbf16>
    %59 = vector.extract_strided_slice %55 {offsets = [0, 0, 1, 0], sizes = [8, 1, 8, 8], strides = [1, 1, 1, 1]} : vector<8x1x10x10xbf16> to vector<8x1x8x8xbf16>
    %60 = vector.extract_strided_slice %55 {offsets = [0, 0, 1, 1], sizes = [8, 1, 8, 8], strides = [1, 1, 1, 1]} : vector<8x1x10x10xbf16> to vector<8x1x8x8xbf16>
    %61 = vector.extract_strided_slice %55 {offsets = [0, 0, 1, 2], sizes = [8, 1, 8, 8], strides = [1, 1, 1, 1]} : vector<8x1x10x10xbf16> to vector<8x1x8x8xbf16>
    %62 = vector.extract_strided_slice %55 {offsets = [0, 0, 2, 0], sizes = [8, 1, 8, 8], strides = [1, 1, 1, 1]} : vector<8x1x10x10xbf16> to vector<8x1x8x8xbf16>
    %63 = vector.extract_strided_slice %55 {offsets = [0, 0, 2, 1], sizes = [8, 1, 8, 8], strides = [1, 1, 1, 1]} : vector<8x1x10x10xbf16> to vector<8x1x8x8xbf16>
    %64 = vector.extract_strided_slice %55 {offsets = [0, 0, 2, 2], sizes = [8, 1, 8, 8], strides = [1, 1, 1, 1]} : vector<8x1x10x10xbf16> to vector<8x1x8x8xbf16>
    %65 = tpu.concatenate %56, %57, %58, %59, %60, %61, %62, %63, %64 in 0 : vector<8x1x8x8xbf16>, vector<8x1x8x8xbf16>, vector<8x1x8x8xbf16>, vector<8x1x8x8xbf16>, vector<8x1x8x8xbf16>, vector<8x1x8x8xbf16>, vector<8x1x8x8xbf16>, vector<8x1x8x8xbf16>, vector<8x1x8x8xbf16> -> vector<72x1x8x8xbf16>
    %66 = vector.shape_cast %65 : vector<72x1x8x8xbf16> to vector<72x64xbf16>
    %cst_20 = arith.constant dense<0.000000e+00> : vector<8x64xf32>
    %67 = tpu.matmul %3, %66, %cst_20 {dimension_numbers = #tpu.dot_dimension_numbers<[1], [0], [0], [1], [0, 0, 1, 1], [], []>} : vector<8x72xbf16>, vector<72x64xbf16>, vector<8x64xf32> -> vector<8x64xf32>
    %68 = vector.shape_cast %67 : vector<8x64xf32> to vector<8x1x8x8xf32>
    %cst_21 = arith.constant dense<0.000000e+00> : vector<8x1xf32>
    %69 = vector.multi_reduction <add>, %68, %cst_21 [2, 3] : vector<8x1x8x8xf32> to vector<8x1xf32>
    %70 = vector.shape_cast %69 : vector<8x1xf32> to vector<8x1x1x1xf32>
    %71 = arith.mulf %68, %68 : vector<8x1x8x8xf32>
    %cst_22 = arith.constant dense<0.000000e+00> : vector<8x1xf32>
    %72 = vector.multi_reduction <add>, %71, %cst_22 [2, 3] : vector<8x1x8x8xf32> to vector<8x1xf32>
    %73 = vector.shape_cast %72 : vector<8x1xf32> to vector<8x1x1x1xf32>
    %cst_23 = arith.constant 1.562500e-02 : f32
    %74 = vector.broadcast %cst_23 : f32 to vector<8x1x1x1xf32>
    %75 = arith.mulf %70, %74 : vector<8x1x1x1xf32>
    %cst_24 = arith.constant 1.562500e-02 : f32
    %76 = vector.broadcast %cst_24 : f32 to vector<8x1x1x1xf32>
    %77 = arith.mulf %73, %76 : vector<8x1x1x1xf32>
    %78 = arith.mulf %75, %75 : vector<8x1x1x1xf32>
    %79 = arith.subf %77, %78 : vector<8x1x1x1xf32>
    %cst_25 = arith.constant 0.000000e+00 : f32
    %80 = vector.broadcast %cst_25 : f32 to vector<8x1x1x1xf32>
    %81 = arith.maximumf %79, %80 : vector<8x1x1x1xf32>
    %82 = vector.broadcast %75 : vector<8x1x1x1xf32> to vector<8x1x8x8xf32>
    %83 = arith.subf %68, %82 : vector<8x1x8x8xf32>
    %cst_26 = arith.constant 9.99999974E-6 : f32
    %84 = vector.broadcast %cst_26 : f32 to vector<8x1x1x1xf32>
    %85 = arith.addf %81, %84 : vector<8x1x1x1xf32>
    %86 = math.rsqrt %85 : vector<8x1x1x1xf32>
    %87 = vector.broadcast %86 : vector<8x1x1x1xf32> to vector<8x1x8x8xf32>
    %88 = arith.mulf %83, %87 : vector<8x1x8x8xf32>
    %cst_27 = arith.constant 2.000000e-01 : f32
    %89 = vector.broadcast %cst_27 : f32 to vector<8x1x8x8xf32>
    %90 = arith.mulf %89, %88 : vector<8x1x8x8xf32>
    %91 = arith.maximumf %88, %90 : vector<8x1x8x8xf32>
    %92 = vector.shape_cast %91 : vector<8x1x8x8xf32> to vector<8x8x8xf32>
    %93 = vector.shape_cast %92 : vector<8x8x8xf32> to vector<1x8x8x8xf32>
    %c0_28 = arith.constant 0 : index
    %c0_29 = arith.constant 0 : index
    %c0_30 = arith.constant 0 : index
    %c0_31 = arith.constant 0 : index
    %94 = vector.load %arg4[%c0_28, %c0_29, %c0_30, %c0_31] : memref<1x8x8x8xf32, #tpu.memory_space<vmem>>, vector<1x8x8x8xf32>
    tpu.vector_store %arg4[%c0_28, %c0_29, %c0_30, %c0_31], %93 {strides = array<i32>} : memref<1x8x8x8xf32, #tpu.memory_space<vmem>>, vector<1x8x8x8xf32>,
    return
  }
  func.func @transform_0(%arg0: i32) -> (i32, i32, i32, i32) {
    %c0_i32 = arith.constant 0 : i32
    %c0_i32_0 = arith.constant 0 : i32
    %c0_i32_1 = arith.constant 0 : i32
    %c0_i32_2 = arith.constant 0 : i32
    return %arg0, %c0_i32, %c0_i32_0, %c0_i32_1 : i32, i32, i32, i32
  }
  func.func @transform_1(%arg0: i32) -> (i32, i32) {
    %c0_i32 = arith.constant 0 : i32
    %c0_i32_0 = arith.constant 0 : i32
    %c0_i32_1 = arith.constant 0 : i32
    return %c0_i32, %c0_i32_0 : i32, i32
  }
  func.func @transform_2(%arg0: i32) -> (i32, i32) {
    %c0_i32 = arith.constant 0 : i32
    %c0_i32_0 = arith.constant 0 : i32
    %c0_i32_1 = arith.constant 0 : i32
    return %c0_i32, %c0_i32_0 : i32, i32
  }
  func.func @transform_3(%arg0: i32) -> (i32, i32, i32, i32) {
    %c0_i32 = arith.constant 0 : i32
    %c0_i32_0 = arith.constant 0 : i32
    %c0_i32_1 = arith.constant 0 : i32
    %c0_i32_2 = arith.constant 0 : i32
    return %arg0, %c0_i32, %c0_i32_0, %c0_i32_1 : i32, i32, i32, i32
  }
}

</mosaic_0001>

<llo_original>
// kernel: tpu_custom_call.1
$region0: #{tpu_custom_call.1}
  #allocation0 [shape = 'u32[]', space=smem, size = 0x4, offset = 0x4, fixed_abs, tag = 'smem constant byte address 0x4 - core index']
  #allocation1 [shape = 'u32[144,128]{1,0:T(1,128)}', space=vmem, size = 0x12000, scoped, tag = 'internal scratch']
  %s0 = inlined_call_operand.hbm [shape: bf16[2,4,16,16], index: 0, kind: input, shape index: {}]
  %s1 = inlined_call_operand.hbm [shape: bf16[8,36], index: 1, kind: input, shape index: {}]
  %s2 = inlined_call_operand.hbm [shape: bf16[8,72], index: 2, kind: input, shape index: {}]
  %s3 = inlined_call_operand.hbm [shape: f32[2,8,8,8], index: 3, kind: output, shape index: {}]
  %s4 = sld [smem:[#allocation0]]
  $region57: #{tpu_custom_call.1} parent=0
    _
  %s6 = ssub.s32 1, %s4
  %s7 = scalar_select 0, %s6, %s4
  $region1: #{tpu_custom_call.1} parent=0
    #allocation2 [shape = 'u8[32768]{0}', space=vmem, size = 0x8000, scoped, tag = 'input window, operand 0']
    #allocation3 [shape = 's32[2]{0}', space=sflag, size = 0x8, scoped, tag = 'scoped memory for tpu_custom_call.1']
    #allocation4 [shape = 's32[2]{0}', space=sflag, size = 0x8, scoped, tag = 'scoped memory for tpu_custom_call.1']
    #allocation5 [shape = 'u8[2048]{0}', space=vmem, size = 0x800, scoped, tag = 'input window, operand 1, single buffered']
    #allocation6 [shape = 's32[1]{0}', space=sflag, size = 0x4, scoped, tag = 'scoped memory for tpu_custom_call.1']
    #allocation7 [shape = 'u8[2048]{0}', space=vmem, size = 0x800, scoped, tag = 'input window, operand 2, single buffered']
    #allocation8 [shape = 'u8[65536]{0}', space=vmem, size = 0x10000, scoped, tag = 'output window, operand 0']
    %8 = vsyncpa [#allocation3], 0
    %s9 = scalar_lea.sflag [#allocation3], 1
    %10 = vsyncpa %s9, 0
    %11 = vsyncpa [#allocation6], 0
    %12 = vsyncpa [#allocation4], 0
    %s13 = scalar_lea.sflag [#allocation4], 1
    %14 = vsyncpa %s13, 0
    loop: start=0, step=1, limit=4
    $region2: #{tpu_custom_call.1} parent=1 // loop_pre_header
      _
    $region3: #{tpu_custom_call.1} parent=1 // loop_header
      %s16 = sphi 0, %s20
      %p17 = scmp.ge.s32.totalorder %s16, 4
      %s26 = sphi 0, %s28
      %s29 = sphi 0, %s26
      %s30 = sphi 0, %s29
      %s46 = sphi 0, %s30
      %s50 = sphi 0, %s50
      %s52 = sphi 0, %s50
      %s53 = sphi 0, %s52
      %s67 = sphi 0, %s53
      %s71 = sphi 0, %s71
      %s73 = sphi 0, %s71
      %s74 = sphi 0, %s73
      %s88 = sphi 0, %s74
      %s94 = sphi 0, %s96
      %s97 = sphi 0, %s94
      %s98 = sphi 0, %s97
      %s114 = sphi 0, %s98
    $region4: #{tpu_custom_call.1} parent=1 // loop_header_branch
      %19 = sbr.rel (%p17) target = $region8
    $region5: #{tpu_custom_call.1} parent=1 // loop_body
      %s21 = ssub.s32 %s16, 1
      %s22 = ssub.s32 %s16, 2
      %s23 = sadd.s32 %s16, 1
      %s24 = ssub.s32 %s16, %s23
      %p25 = scmp.eq.s32.totalorder %s24, 0
      %s27 = sadd.s32 %s26, 1
      %s28 = scalar_select %p25, %s26, %s27
      %p31 = pneg %p25
      %p32 = scmp.eq.s32.totalorder %s16, 1
      %p33 = por %p31, %p32
      %p34 = scmp.ne.s32.totalorder %s26, %s29
      %p35 = scmp.eq.s32.totalorder %s16, 0
      %p36 = por %p34, %p35
      %p37 = scmp.ne.s32.totalorder %s26, %s29
      %p38 = scmp.eq.s32.totalorder %s21, 1
      %p39 = por %p37, %p38
      %p40 = scmp.ne.s32.totalorder %s29, %s30
      %p41 = scmp.eq.s32.totalorder %s21, 0
      %p42 = por %p40, %p41
      %p43 = scmp.ne.s32.totalorder %s29, %s30
      %p44 = scmp.eq.s32.totalorder %s22, 1
      %p45 = por %p43, %p44
      %p47 = scmp.ne.s32.totalorder %s30, %s46
      %p48 = scmp.eq.s32.totalorder %s22, 0
      %p49 = por %p47, %p48
      %s51 = sadd.s32 %s50, 1
      %p54 = scmp.eq.s32.totalorder %s16, 1
      %p55 = scmp.ne.s32.totalorder %s50, %s52
      %p56 = scmp.eq.s32.totalorder %s16, 0
      %p57 = por %p55, %p56
      %p58 = scmp.ne.s32.totalorder %s50, %s52
      %p59 = scmp.eq.s32.totalorder %s21, 1
      %p60 = por %p58, %p59
      %p61 = scmp.ne.s32.totalorder %s52, %s53
      %p62 = scmp.eq.s32.totalorder %s21, 0
      %p63 = por %p61, %p62
      %p64 = scmp.ne.s32.totalorder %s52, %s53
      %p65 = scmp.eq.s32.totalorder %s22, 1
      %p66 = por %p64, %p65
      %p68 = scmp.ne.s32.totalorder %s53, %s67
      %p69 = scmp.eq.s32.totalorder %s22, 0
      %p70 = por %p68, %p69
      %s72 = sadd.s32 %s71, 1
      %p75 = scmp.eq.s32.totalorder %s16, 1
      %p76 = scmp.ne.s32.totalorder %s71, %s73
      %p77 = scmp.eq.s32.totalorder %s16, 0
      %p78 = por %p76, %p77
      %p79 = scmp.ne.s32.totalorder %s71, %s73
      %p80 = scmp.eq.s32.totalorder %s21, 1
      %p81 = por %p79, %p80
      %p82 = scmp.ne.s32.totalorder %s73, %s74
      %p83 = scmp.eq.s32.totalorder %s21, 0
      %p84 = por %p82, %p83
      %p85 = scmp.ne.s32.totalorder %s73, %s74
      %p86 = scmp.eq.s32.totalorder %s22, 1
      %p87 = por %p85, %p86
      %p89 = scmp.ne.s32.totalorder %s74, %s88
      %p90 = scmp.eq.s32.totalorder %s22, 0
      %p91 = por %p89, %p90
      %s92 = ssub.s32 %s16, %s23
      %p93 = scmp.eq.s32.totalorder %s92, 0
      %s95 = sadd.s32 %s94, 1
      %s96 = scalar_select %p93, %s94, %s95
      %p99 = pneg %p93
      %p100 = scmp.eq.s32.totalorder %s16, 1
      %p101 = por %p99, %p100
      %p102 = scmp.ne.s32.totalorder %s94, %s97
      %p103 = scmp.eq.s32.totalorder %s16, 0
      %p104 = por %p102, %p103
      %p105 = scmp.ne.s32.totalorder %s94, %s97
      %p106 = scmp.eq.s32.totalorder %s21, 1
      %p107 = por %p105, %p106
      %p108 = scmp.ne.s32.totalorder %s97, %s98
      %p109 = scmp.eq.s32.totalorder %s21, 0
      %p110 = por %p108, %p109
      %p111 = scmp.ne.s32.totalorder %s97, %s98
      %p112 = scmp.eq.s32.totalorder %s22, 1
      %p113 = por %p111, %p112
      %p115 = scmp.ne.s32.totalorder %s98, %s114
      %p116 = scmp.eq.s32.totalorder %s22, 0
      %p117 = por %p115, %p116
      %p118 = scmp.le.s32.totalorder 1, %s16
      %p119 = scmp.lt.s32.totalorder %s16, 3
      %p120 = pnand %p118, %p119
      %p121 = pneg %p120
      // Predicated region
      $region9: #{tpu_custom_call.1} parent=5 // pred_check
        _
      $region10: #{tpu_custom_call.1} parent=5 // pred_check_branch
        %123 = sbr.rel (%p120) target = $region12
      $region11: #{tpu_custom_call.1} parent=5 // pred_region
        %s124 = ssub.s32 %s16, 1
        // Predicated region
        $region13: #{tpu_custom_call.1} parent=11 // pred_check
          %p125 = pneg %p63
        $region14: #{tpu_custom_call.1} parent=11 // pred_check_branch
          %127 = sbr.rel (%p125) target = $region16
        $region15: #{tpu_custom_call.1} parent=11 // pred_region
          %s129 = ssub.s32 64, 64
          %130 = vsyncadd [#allocation6], %s129
          %s132 = sshll.u32 [#allocation5], 4
          %s133 = int_to_ptr.vmem [resolvable:$true] %s132
          %135 = dma.hbm_to_vmem [thread:$0]  %s1, 64, %s133, [#allocation6]
        $region16: #{tpu_custom_call.1} parent=11 // pred_fallthru
          _
        // Predicated region
        $region17: #{tpu_custom_call.1} parent=11 // pred_check
          %p136 = pneg %p84
        $region18: #{tpu_custom_call.1} parent=11 // pred_check_branch
          %138 = sbr.rel (%p136) target = $region20
        $region19: #{tpu_custom_call.1} parent=11 // pred_region
          %s140 = ssub.s32 64, 64
          %141 = vsyncadd [#allocation6], %s140
          %s143 = sshll.u32 [#allocation7], 4
          %s144 = int_to_ptr.vmem [resolvable:$true] %s143
          %146 = dma.hbm_to_vmem [thread:$0]  %s2, 64, %s144, [#allocation6]
        $region20: #{tpu_custom_call.1} parent=11 // pred_fallthru
          _
      $region12: #{tpu_custom_call.1} parent=5 // pred_fallthru
        _
      %p147 = scmp.lt.s32.totalorder %s16, 2
      // Predicated region
      $region21: #{tpu_custom_call.1} parent=5 // pred_check
        %p148 = pneg %p147
      $region22: #{tpu_custom_call.1} parent=5 // pred_check_branch
        %150 = sbr.rel (%p148) target = $region24
      $region23: #{tpu_custom_call.1} parent=5 // pred_region
        // Predicated region
        $region25: #{tpu_custom_call.1} parent=23 // pred_check
          %p151 = pneg %p36
        $region26: #{tpu_custom_call.1} parent=23 // pred_check_branch
          %153 = sbr.rel (%p151) target = $region28
        $region27: #{tpu_custom_call.1} parent=23 // pred_region
          %s154 = sand.u32 %s26, 1
          %s155 = scalar_lea.sflag [#allocation3], %s154
          %s156 = sand.u32 %s26, 1
          %s157 = smul.addr %s156, 32
          %s158 = scalar_lea.vmem [#allocation2], %s157
          %s160 = ssub.s32 512, 512
          %161 = vsyncadd %s155, %s160
          %s162 = smul.addr %s16, 8
          %s163 = smul.addr %s162, 64
          %s164 = scalar_lea.hbm %s0, %s163
          %s165 = sshll.u32 %s158, 4
          %s166 = int_to_ptr.vmem [resolvable:$true] %s165
          %171 = dma.hbm_to_vmem [thread:$0]  %s164, 512, %s166, %s155, 64, 64, 4
        $region28: #{tpu_custom_call.1} parent=23 // pred_fallthru
          _
      $region24: #{tpu_custom_call.1} parent=5 // pred_fallthru
        _
      %p172 = scmp.le.s32.totalorder 1, %s16
      %p173 = scmp.lt.s32.totalorder %s16, 3
      %p174 = pnand %p172, %p173
      %p175 = pneg %p174
      // Predicated region
      $region29: #{tpu_custom_call.1} parent=5 // pred_check
        _
      $region30: #{tpu_custom_call.1} parent=5 // pred_check_branch
        %177 = sbr.rel (%p174) target = $region32
      $region31: #{tpu_custom_call.1} parent=5 // pred_region
        %s178 = ssub.s32 %s16, 1
        %s179 = sand.u32 %s29, 1
        %s180 = scalar_lea.sflag [#allocation3], %s179
        %s181 = sand.u32 %s29, 1
        %s182 = smul.addr %s181, 32
        %s183 = scalar_lea.vmem [#allocation2], %s182
        // Predicated region
        $region33: #{tpu_custom_call.1} parent=31 // pred_check
          %p184 = pneg %p42
        $region34: #{tpu_custom_call.1} parent=31 // pred_check_branch
          %186 = sbr.rel (%p184) target = $region36
        $region35: #{tpu_custom_call.1} parent=31 // pred_region
          %187 = dma.done %s180, 512
        $region36: #{tpu_custom_call.1} parent=31 // pred_fallthru
          _
        // Predicated region
        $region37: #{tpu_custom_call.1} parent=31 // pred_check
          %p188 = pneg %p63
        $region38: #{tpu_custom_call.1} parent=31 // pred_check_branch
          %190 = sbr.rel (%p188) target = $region40
        $region39: #{tpu_custom_call.1} parent=31 // pred_region
          %191 = dma.done [#allocation6], 64
        $region40: #{tpu_custom_call.1} parent=31 // pred_fallthru
          _
        // Predicated region
        $region41: #{tpu_custom_call.1} parent=31 // pred_check
          %p192 = pneg %p84
        $region42: #{tpu_custom_call.1} parent=31 // pred_check_branch
          %194 = sbr.rel (%p192) target = $region44
        $region43: #{tpu_custom_call.1} parent=31 // pred_region
          %195 = dma.done [#allocation6], 64
        $region44: #{tpu_custom_call.1} parent=31 // pred_fallthru
          _
        %s196 = sand.u32 %s29, 1
        %s197 = scalar_lea.sflag [#allocation3], %s196
        %s198 = sand.u32 %s29, 1
        %s199 = smul.addr %s198, 32
        %s200 = scalar_lea.vmem [#allocation2], %s199
        %p201 = pneg %p42
        %p202 = pneg %p39
        %p203 = pneg %p63
        %p204 = pneg %p60
        %p205 = pneg %p84
        %p206 = pneg %p81
        %p207 = pneg %p110
        %p208 = pneg %p107
        %s209 = sand.u32 %s97, 1
        %s210 = scalar_lea.sflag [#allocation4], %s209
        %s211 = sand.u32 %s97, 1
        %s212 = smul.addr %s211, 64
        %s213 = scalar_lea.vmem [#allocation8], %s212
        %v215 = vld [vmem:[%s183] sm:$0xf]
        %v216 = vld [vmem:[%s183 + $0x4] sm:$0xf]
        %v217 = vld [vmem:[%s183 + $0x8] sm:$0xf]
        %v218 = vld [vmem:[%s183 + $0xc] sm:$0xf]
        %v219 = vld [vmem:[%s183 + $0x10] sm:$0xf]
        %v220 = vld [vmem:[%s183 + $0x14] sm:$0xf]
        %v221 = vld [vmem:[%s183 + $0x18] sm:$0xf]
        %v222 = vld [vmem:[%s183 + $0x1c] sm:$0xf]
        %v223 = vunpack.c.l.bf16 %v215
        %v224 = vunpack.c.l.bf16 %v216
        %v225 = vunpack.c.l.bf16 %v217
        %v226 = vunpack.c.l.bf16 %v218
        %v227 = vunpack.c.l.bf16 %v219
        %v228 = vunpack.c.l.bf16 %v220
        %v229 = vunpack.c.l.bf16 %v221
        %v230 = vunpack.c.l.bf16 %v222
        %v231 = vld [vmem:[#allocation5] sm:$0xf]
        %v232 = vld [vmem:[#allocation7] sm:$0xf]
        %241 = vrot.lane.b32.xlu0 %v223, 126
        %v242 = vpop.permute.xlu0 %241
        %243 = vrot.lane.b32.xlu0 %v224, 126
        %v244 = vpop.permute.xlu0 %243
        %245 = vrot.lane.b32.xlu0 %v225, 126
        %v246 = vpop.permute.xlu0 %245
        %247 = vrot.lane.b32.xlu0 %v226, 126
        %v248 = vpop.permute.xlu0 %247
        %249 = vrot.lane.b32.xlu0 %v227, 126
        %v250 = vpop.permute.xlu0 %249
        %251 = vrot.lane.b32.xlu0 %v228, 126
        %v252 = vpop.permute.xlu0 %251
        %253 = vrot.lane.b32.xlu0 %v229, 126
        %v254 = vpop.permute.xlu0 %253
        %255 = vrot.lane.b32.xlu0 %v230, 126
        %v256 = vpop.permute.xlu0 %255
        %265 = vrot.lane.b32.xlu0 %v223, 124
        %v266 = vpop.permute.xlu0 %265
        %267 = vrot.lane.b32.xlu0 %v224, 124
        %v268 = vpop.permute.xlu0 %267
        %269 = vrot.lane.b32.xlu0 %v225, 124
        %v270 = vpop.permute.xlu0 %269
        %271 = vrot.lane.b32.xlu0 %v226, 124
        %v272 = vpop.permute.xlu0 %271
        %273 = vrot.lane.b32.xlu0 %v227, 124
        %v274 = vpop.permute.xlu0 %273
        %275 = vrot.lane.b32.xlu0 %v228, 124
        %v276 = vpop.permute.xlu0 %275
        %277 = vrot.lane.b32.xlu0 %v229, 124
        %v278 = vpop.permute.xlu0 %277
        %279 = vrot.lane.b32.xlu0 %v230, 124
        %v280 = vpop.permute.xlu0 %279
        %289 = vrot.lane.b32.xlu0 %v223, 122
        %v290 = vpop.permute.xlu0 %289
        %291 = vrot.lane.b32.xlu0 %v224, 122
        %v292 = vpop.permute.xlu0 %291
        %293 = vrot.lane.b32.xlu0 %v225, 122
        %v294 = vpop.permute.xlu0 %293
        %295 = vrot.lane.b32.xlu0 %v226, 122
        %v296 = vpop.permute.xlu0 %295
        %297 = vrot.lane.b32.xlu0 %v227, 122
        %v298 = vpop.permute.xlu0 %297
        %299 = vrot.lane.b32.xlu0 %v228, 122
        %v300 = vpop.permute.xlu0 %299
        %301 = vrot.lane.b32.xlu0 %v229, 122
        %v302 = vpop.permute.xlu0 %301
        %303 = vrot.lane.b32.xlu0 %v230, 122
        %v304 = vpop.permute.xlu0 %303
        %313 = vrot.lane.b32.xlu0 %v223, 120
        %v314 = vpop.permute.xlu0 %313
        %315 = vrot.lane.b32.xlu0 %v224, 120
        %v316 = vpop.permute.xlu0 %315
        %317 = vrot.lane.b32.xlu0 %v225, 120
        %v318 = vpop.permute.xlu0 %317
        %319 = vrot.lane.b32.xlu0 %v226, 120
        %v320 = vpop.permute.xlu0 %319
        %321 = vrot.lane.b32.xlu0 %v227, 120
        %v322 = vpop.permute.xlu0 %321
        %323 = vrot.lane.b32.xlu0 %v228, 120
        %v324 = vpop.permute.xlu0 %323
        %325 = vrot.lane.b32.xlu0 %v229, 120
        %v326 = vpop.permute.xlu0 %325
        %327 = vrot.lane.b32.xlu0 %v230, 120
        %v328 = vpop.permute.xlu0 %327
        %337 = vrot.lane.b32.xlu0 %v223, 118
        %v338 = vpop.permute.xlu0 %337
        %339 = vrot.lane.b32.xlu0 %v224, 118
        %v340 = vpop.permute.xlu0 %339
        %341 = vrot.lane.b32.xlu0 %v225, 118
        %v342 = vpop.permute.xlu0 %341
        %343 = vrot.lane.b32.xlu0 %v226, 118
        %v344 = vpop.permute.xlu0 %343
        %345 = vrot.lane.b32.xlu0 %v227, 118
        %v346 = vpop.permute.xlu0 %345
        %347 = vrot.lane.b32.xlu0 %v228, 118
        %v348 = vpop.permute.xlu0 %347
        %349 = vrot.lane.b32.xlu0 %v229, 118
        %v350 = vpop.permute.xlu0 %349
        %351 = vrot.lane.b32.xlu0 %v230, 118
        %v352 = vpop.permute.xlu0 %351
        %361 = vrot.lane.b32.xlu0 %v223, 116
        %v362 = vpop.permute.xlu0 %361
        %363 = vrot.lane.b32.xlu0 %v224, 116
        %v364 = vpop.permute.xlu0 %363
        %365 = vrot.lane.b32.xlu0 %v225, 116
        %v366 = vpop.permute.xlu0 %365
        %367 = vrot.lane.b32.xlu0 %v226, 116
        %v368 = vpop.permute.xlu0 %367
        %369 = vrot.lane.b32.xlu0 %v227, 116
        %v370 = vpop.permute.xlu0 %369
        %371 = vrot.lane.b32.xlu0 %v228, 116
        %v372 = vpop.permute.xlu0 %371
        %373 = vrot.lane.b32.xlu0 %v229, 116
        %v374 = vpop.permute.xlu0 %373
        %375 = vrot.lane.b32.xlu0 %v230, 116
        %v376 = vpop.permute.xlu0 %375
        %385 = vrot.lane.b32.xlu0 %v223, 114
        %v386 = vpop.permute.xlu0 %385
        %387 = vrot.lane.b32.xlu0 %v224, 114
        %v388 = vpop.permute.xlu0 %387
        %389 = vrot.lane.b32.xlu0 %v225, 114
        %v390 = vpop.permute.xlu0 %389
        %391 = vrot.lane.b32.xlu0 %v226, 114
        %v392 = vpop.permute.xlu0 %391
        %393 = vrot.lane.b32.xlu0 %v227, 114
        %v394 = vpop.permute.xlu0 %393
        %395 = vrot.lane.b32.xlu0 %v228, 114
        %v396 = vpop.permute.xlu0 %395
        %397 = vrot.lane.b32.xlu0 %v229, 114
        %v398 = vpop.permute.xlu0 %397
        %399 = vrot.lane.b32.xlu0 %v230, 114
        %v400 = vpop.permute.xlu0 %399
        %v409 = vcombine.low %v223, %v266
        %v410 = vcombine.high %v223, %v266
        %v412 = vunpack.c.l.s4 1983009808
        %v413 = vunpack.c.0.s8 %v412
        %v414 = vlaneseq
        %v415 = vshrl.u32 %v414, 7
        %v416 = vsub.s32 %v413, %v415
        %v417 = vrot.slane %v409, %v416
        %v419 = vunpack.c.l.s4 1983009808
        %v420 = vunpack.c.0.s8 %v419
        %v421 = vlaneseq
        %v422 = vshrl.u32 %v421, 7
        %v423 = vsub.s32 %v420, %v422
        %v424 = vrot.slane %v410, %v423
        %v425 = vcombine.low %v242, %v290
        %v426 = vcombine.high %v242, %v290
        %v428 = vunpack.c.l.s4 1983009808
        %v429 = vunpack.c.0.s8 %v428
        %v430 = vlaneseq
        %v431 = vshrl.u32 %v430, 7
        %v432 = vsub.s32 %v429, %v431
        %v433 = vrot.slane %v425, %v432
        %v435 = vunpack.c.l.s4 1983009808
        %v436 = vunpack.c.0.s8 %v435
        %v437 = vlaneseq
        %v438 = vshrl.u32 %v437, 7
        %v439 = vsub.s32 %v436, %v438
        %v440 = vrot.slane %v426, %v439
        %v441 = vcombine.low %v314, %v362
        %v442 = vcombine.high %v314, %v362
        %v444 = vunpack.c.l.s4 1983009808
        %v445 = vunpack.c.0.s8 %v444
        %v446 = vlaneseq
        %v447 = vshrl.u32 %v446, 7
        %v448 = vsub.s32 %v445, %v447
        %v449 = vrot.slane %v441, %v448
        %v451 = vunpack.c.l.s4 1983009808
        %v452 = vunpack.c.0.s8 %v451
        %v453 = vlaneseq
        %v454 = vshrl.u32 %v453, 7
        %v455 = vsub.s32 %v452, %v454
        %v456 = vrot.slane %v442, %v455
        %v457 = vcombine.low %v338, %v386
        %v458 = vcombine.high %v338, %v386
        %v460 = vunpack.c.l.s4 1983009808
        %v461 = vunpack.c.0.s8 %v460
        %v462 = vlaneseq
        %v463 = vshrl.u32 %v462, 7
        %v464 = vsub.s32 %v461, %v463
        %v465 = vrot.slane %v457, %v464
        %v467 = vunpack.c.l.s4 1983009808
        %v468 = vunpack.c.0.s8 %v467
        %v469 = vlaneseq
        %v470 = vshrl.u32 %v469, 7
        %v471 = vsub.s32 %v468, %v470
        %v472 = vrot.slane %v458, %v471
        %v473 = vcombine.low %v417, %v433
        %v474 = vcombine.high %v417, %v433
        %v476 = vunpack.c.l.s4 1934713408
        %v477 = vunpack.c.0.s8 %v476
        %v478 = vlaneseq
        %v479 = vshrl.u32 %v478, 7
        %v480 = vsub.s32 %v477, %v479
        %v481 = vrot.slane %v473, %v480
        %v483 = vunpack.c.l.s4 1934713408
        %v484 = vunpack.c.0.s8 %v483
        %v485 = vlaneseq
        %v486 = vshrl.u32 %v485, 7
        %v487 = vsub.s32 %v484, %v486
        %v488 = vrot.slane %v474, %v487
        %v489 = vcombine.low %v424, %v440
        %v490 = vcombine.high %v424, %v440
        %v492 = vunpack.c.l.s4 1934713408
        %v493 = vunpack.c.0.s8 %v492
        %v494 = vlaneseq
        %v495 = vshrl.u32 %v494, 7
        %v496 = vsub.s32 %v493, %v495
        %v497 = vrot.slane %v489, %v496
        %v499 = vunpack.c.l.s4 1934713408
        %v500 = vunpack.c.0.s8 %v499
        %v501 = vlaneseq
        %v502 = vshrl.u32 %v501, 7
        %v503 = vsub.s32 %v500, %v502
        %v504 = vrot.slane %v490, %v503
        %v505 = vcombine.low %v449, %v465
        %v506 = vcombine.high %v449, %v465
        %v508 = vunpack.c.l.s4 1934713408
        %v509 = vunpack.c.0.s8 %v508
        %v510 = vlaneseq
        %v511 = vshrl.u32 %v510, 7
        %v512 = vsub.s32 %v509, %v511
        %v513 = vrot.slane %v505, %v512
        %v515 = vunpack.c.l.s4 1934713408
        %v516 = vunpack.c.0.s8 %v515
        %v517 = vlaneseq
        %v518 = vshrl.u32 %v517, 7
        %v519 = vsub.s32 %v516, %v518
        %v520 = vrot.slane %v506, %v519
        %v521 = vcombine.low %v456, %v472
        %v522 = vcombine.high %v456, %v472
        %v524 = vunpack.c.l.s4 1934713408
        %v525 = vunpack.c.0.s8 %v524
        %v526 = vlaneseq
        %v527 = vshrl.u32 %v526, 7
        %v528 = vsub.s32 %v525, %v527
        %v529 = vrot.slane %v521, %v528
        %v531 = vunpack.c.l.s4 1934713408
        %v532 = vunpack.c.0.s8 %v531
        %v533 = vlaneseq
        %v534 = vshrl.u32 %v533, 7
        %v535 = vsub.s32 %v532, %v534
        %v536 = vrot.slane %v522, %v535
        %v537 = vcombine.low %v481, %v513
        %v538 = vcombine.high %v481, %v513
        %v539 = vcombine.low %v488, %v520
        %v540 = vcombine.high %v488, %v520
        %v541 = vcombine.low %v497, %v529
        %v542 = vcombine.high %v497, %v529
        %v543 = vcombine.low %v504, %v536
        %v544 = vcombine.high %v504, %v536
        %v545 = vcombine.low %v224, %v268
        %v546 = vcombine.high %v224, %v268
        %v548 = vunpack.c.l.s4 1983009808
        %v549 = vunpack.c.0.s8 %v548
        %v550 = vlaneseq
        %v551 = vshrl.u32 %v550, 7
        %v552 = vsub.s32 %v549, %v551
        %v553 = vrot.slane %v545, %v552
        %v555 = vunpack.c.l.s4 1983009808
        %v556 = vunpack.c.0.s8 %v555
        %v557 = vlaneseq
        %v558 = vshrl.u32 %v557, 7
        %v559 = vsub.s32 %v556, %v558
        %v560 = vrot.slane %v546, %v559
        %v561 = vcombine.low %v244, %v292
        %v562 = vcombine.high %v244, %v292
        %v564 = vunpack.c.l.s4 1983009808
        %v565 = vunpack.c.0.s8 %v564
        %v566 = vlaneseq
        %v567 = vshrl.u32 %v566, 7
        %v568 = vsub.s32 %v565, %v567
        %v569 = vrot.slane %v561, %v568
        %v571 = vunpack.c.l.s4 1983009808
        %v572 = vunpack.c.0.s8 %v571
        %v573 = vlaneseq
        %v574 = vshrl.u32 %v573, 7
        %v575 = vsub.s32 %v572, %v574
        %v576 = vrot.slane %v562, %v575
        %v577 = vcombine.low %v316, %v364
        %v578 = vcombine.high %v316, %v364
        %v580 = vunpack.c.l.s4 1983009808
        %v581 = vunpack.c.0.s8 %v580
        %v582 = vlaneseq
        %v583 = vshrl.u32 %v582, 7
        %v584 = vsub.s32 %v581, %v583
        %v585 = vrot.slane %v577, %v584
        %v587 = vunpack.c.l.s4 1983009808
        %v588 = vunpack.c.0.s8 %v587
        %v589 = vlaneseq
        %v590 = vshrl.u32 %v589, 7
        %v591 = vsub.s32 %v588, %v590
        %v592 = vrot.slane %v578, %v591
        %v593 = vcombine.low %v340, %v388
        %v594 = vcombine.high %v340, %v388
        %v596 = vunpack.c.l.s4 1983009808
        %v597 = vunpack.c.0.s8 %v596
        %v598 = vlaneseq
        %v599 = vshrl.u32 %v598, 7
        %v600 = vsub.s32 %v597, %v599
        %v601 = vrot.slane %v593, %v600
        %v603 = vunpack.c.l.s4 1983009808
        %v604 = vunpack.c.0.s8 %v603
        %v605 = vlaneseq
        %v606 = vshrl.u32 %v605, 7
        %v607 = vsub.s32 %v604, %v606
        %v608 = vrot.slane %v594, %v607
        %v609 = vcombine.low %v553, %v569
        %v610 = vcombine.high %v553, %v569
        %v612 = vunpack.c.l.s4 1934713408
        %v613 = vunpack.c.0.s8 %v612
        %v614 = vlaneseq
        %v615 = vshrl.u32 %v614, 7
        %v616 = vsub.s32 %v613, %v615
        %v617 = vrot.slane %v609, %v616
        %v619 = vunpack.c.l.s4 1934713408
        %v620 = vunpack.c.0.s8 %v619
        %v621 = vlaneseq
        %v622 = vshrl.u32 %v621, 7
        %v623 = vsub.s32 %v620, %v622
        %v624 = vrot.slane %v610, %v623
        %v625 = vcombine.low %v560, %v576
        %v626 = vcombine.high %v560, %v576
        %v628 = vunpack.c.l.s4 1934713408
        %v629 = vunpack.c.0.s8 %v628
        %v630 = vlaneseq
        %v631 = vshrl.u32 %v630, 7
        %v632 = vsub.s32 %v629, %v631
        %v633 = vrot.slane %v625, %v632
        %v635 = vunpack.c.l.s4 1934713408
        %v636 = vunpack.c.0.s8 %v635
        %v637 = vlaneseq
        %v638 = vshrl.u32 %v637, 7
        %v639 = vsub.s32 %v636, %v638
        %v640 = vrot.slane %v626, %v639
        %v641 = vcombine.low %v585, %v601
        %v642 = vcombine.high %v585, %v601
        %v644 = vunpack.c.l.s4 1934713408
        %v645 = vunpack.c.0.s8 %v644
        %v646 = vlaneseq
        %v647 = vshrl.u32 %v646, 7
        %v648 = vsub.s32 %v645, %v647
        %v649 = vrot.slane %v641, %v648
        %v651 = vunpack.c.l.s4 1934713408
        %v652 = vunpack.c.0.s8 %v651
        %v653 = vlaneseq
        %v654 = vshrl.u32 %v653, 7
        %v655 = vsub.s32 %v652, %v654
        %v656 = vrot.slane %v642, %v655
        %v657 = vcombine.low %v592, %v608
        %v658 = vcombine.high %v592, %v608
        %v660 = vunpack.c.l.s4 1934713408
        %v661 = vunpack.c.0.s8 %v660
        %v662 = vlaneseq
        %v663 = vshrl.u32 %v662, 7
        %v664 = vsub.s32 %v661, %v663
        %v665 = vrot.slane %v657, %v664
        %v667 = vunpack.c.l.s4 1934713408
        %v668 = vunpack.c.0.s8 %v667
        %v669 = vlaneseq
        %v670 = vshrl.u32 %v669, 7
        %v671 = vsub.s32 %v668, %v670
        %v672 = vrot.slane %v658, %v671
        %v673 = vcombine.low %v617, %v649
        %v674 = vcombine.high %v617, %v649
        %v675 = vcombine.low %v624, %v656
        %v676 = vcombine.high %v624, %v656
        %v677 = vcombine.low %v633, %v665
        %v678 = vcombine.high %v633, %v665
        %v679 = vcombine.low %v640, %v672
        %v680 = vcombine.high %v640, %v672
        %v681 = vcombine.low %v225, %v270
        %v682 = vcombine.high %v225, %v270
        %v684 = vunpack.c.l.s4 1983009808
        %v685 = vunpack.c.0.s8 %v684
        %v686 = vlaneseq
        %v687 = vshrl.u32 %v686, 7
        %v688 = vsub.s32 %v685, %v687
        %v689 = vrot.slane %v681, %v688
        %v691 = vunpack.c.l.s4 1983009808
        %v692 = vunpack.c.0.s8 %v691
        %v693 = vlaneseq
        %v694 = vshrl.u32 %v693, 7
        %v695 = vsub.s32 %v692, %v694
        %v696 = vrot.slane %v682, %v695
        %v697 = vcombine.low %v246, %v294
        %v698 = vcombine.high %v246, %v294
        %v700 = vunpack.c.l.s4 1983009808
        %v701 = vunpack.c.0.s8 %v700
        %v702 = vlaneseq
        %v703 = vshrl.u32 %v702, 7
        %v704 = vsub.s32 %v701, %v703
        %v705 = vrot.slane %v697, %v704
        %v707 = vunpack.c.l.s4 1983009808
        %v708 = vunpack.c.0.s8 %v707
        %v709 = vlaneseq
        %v710 = vshrl.u32 %v709, 7
        %v711 = vsub.s32 %v708, %v710
        %v712 = vrot.slane %v698, %v711
        %v713 = vcombine.low %v318, %v366
        %v714 = vcombine.high %v318, %v366
        %v716 = vunpack.c.l.s4 1983009808
        %v717 = vunpack.c.0.s8 %v716
        %v718 = vlaneseq
        %v719 = vshrl.u32 %v718, 7
        %v720 = vsub.s32 %v717, %v719
        %v721 = vrot.slane %v713, %v720
        %v723 = vunpack.c.l.s4 1983009808
        %v724 = vunpack.c.0.s8 %v723
        %v725 = vlaneseq
        %v726 = vshrl.u32 %v725, 7
        %v727 = vsub.s32 %v724, %v726
        %v728 = vrot.slane %v714, %v727
        %v729 = vcombine.low %v342, %v390
        %v730 = vcombine.high %v342, %v390
        %v732 = vunpack.c.l.s4 1983009808
        %v733 = vunpack.c.0.s8 %v732
        %v734 = vlaneseq
        %v735 = vshrl.u32 %v734, 7
        %v736 = vsub.s32 %v733, %v735
        %v737 = vrot.slane %v729, %v736
        %v739 = vunpack.c.l.s4 1983009808
        %v740 = vunpack.c.0.s8 %v739
        %v741 = vlaneseq
        %v742 = vshrl.u32 %v741, 7
        %v743 = vsub.s32 %v740, %v742
        %v744 = vrot.slane %v730, %v743
        %v745 = vcombine.low %v689, %v705
        %v746 = vcombine.high %v689, %v705
        %v748 = vunpack.c.l.s4 1934713408
        %v749 = vunpack.c.0.s8 %v748
        %v750 = vlaneseq
        %v751 = vshrl.u32 %v750, 7
        %v752 = vsub.s32 %v749, %v751
        %v753 = vrot.slane %v745, %v752
        %v755 = vunpack.c.l.s4 1934713408
        %v756 = vunpack.c.0.s8 %v755
        %v757 = vlaneseq
        %v758 = vshrl.u32 %v757, 7
        %v759 = vsub.s32 %v756, %v758
        %v760 = vrot.slane %v746, %v759
        %v761 = vcombine.low %v696, %v712
        %v762 = vcombine.high %v696, %v712
        %v764 = vunpack.c.l.s4 1934713408
        %v765 = vunpack.c.0.s8 %v764
        %v766 = vlaneseq
        %v767 = vshrl.u32 %v766, 7
        %v768 = vsub.s32 %v765, %v767
        %v769 = vrot.slane %v761, %v768
        %v771 = vunpack.c.l.s4 1934713408
        %v772 = vunpack.c.0.s8 %v771
        %v773 = vlaneseq
        %v774 = vshrl.u32 %v773, 7
        %v775 = vsub.s32 %v772, %v774
        %v776 = vrot.slane %v762, %v775
        %v777 = vcombine.low %v721, %v737
        %v778 = vcombine.high %v721, %v737
        %v780 = vunpack.c.l.s4 1934713408
        %v781 = vunpack.c.0.s8 %v780
        %v782 = vlaneseq
        %v783 = vshrl.u32 %v782, 7
        %v784 = vsub.s32 %v781, %v783
        %v785 = vrot.slane %v777, %v784
        %v787 = vunpack.c.l.s4 1934713408
        %v788 = vunpack.c.0.s8 %v787
        %v789 = vlaneseq
        %v790 = vshrl.u32 %v789, 7
        %v791 = vsub.s32 %v788, %v790
        %v792 = vrot.slane %v778, %v791
        %v793 = vcombine.low %v728, %v744
        %v794 = vcombine.high %v728, %v744
        %v796 = vunpack.c.l.s4 1934713408
        %v797 = vunpack.c.0.s8 %v796
        %v798 = vlaneseq
        %v799 = vshrl.u32 %v798, 7
        %v800 = vsub.s32 %v797, %v799
        %v801 = vrot.slane %v793, %v800
        %v803 = vunpack.c.l.s4 1934713408
        %v804 = vunpack.c.0.s8 %v803
        %v805 = vlaneseq
        %v806 = vshrl.u32 %v805, 7
        %v807 = vsub.s32 %v804, %v806
        %v808 = vrot.slane %v794, %v807
        %v809 = vcombine.low %v753, %v785
        %v810 = vcombine.high %v753, %v785
        %v811 = vcombine.low %v760, %v792
        %v812 = vcombine.high %v760, %v792
        %v813 = vcombine.low %v769, %v801
        %v814 = vcombine.high %v769, %v801
        %v815 = vcombine.low %v776, %v808
        %v816 = vcombine.high %v776, %v808
        %v817 = vcombine.low %v226, %v272
        %v818 = vcombine.high %v226, %v272
        %v820 = vunpack.c.l.s4 1983009808
        %v821 = vunpack.c.0.s8 %v820
        %v822 = vlaneseq
        %v823 = vshrl.u32 %v822, 7
        %v824 = vsub.s32 %v821, %v823
        %v825 = vrot.slane %v817, %v824
        %v827 = vunpack.c.l.s4 1983009808
        %v828 = vunpack.c.0.s8 %v827
        %v829 = vlaneseq
        %v830 = vshrl.u32 %v829, 7
        %v831 = vsub.s32 %v828, %v830
        %v832 = vrot.slane %v818, %v831
        %v833 = vcombine.low %v248, %v296
        %v834 = vcombine.high %v248, %v296
        %v836 = vunpack.c.l.s4 1983009808
        %v837 = vunpack.c.0.s8 %v836
        %v838 = vlaneseq
        %v839 = vshrl.u32 %v838, 7
        %v840 = vsub.s32 %v837, %v839
        %v841 = vrot.slane %v833, %v840
        %v843 = vunpack.c.l.s4 1983009808
        %v844 = vunpack.c.0.s8 %v843
        %v845 = vlaneseq
        %v846 = vshrl.u32 %v845, 7
        %v847 = vsub.s32 %v844, %v846
        %v848 = vrot.slane %v834, %v847
        %v849 = vcombine.low %v320, %v368
        %v850 = vcombine.high %v320, %v368
        %v852 = vunpack.c.l.s4 1983009808
        %v853 = vunpack.c.0.s8 %v852
        %v854 = vlaneseq
        %v855 = vshrl.u32 %v854, 7
        %v856 = vsub.s32 %v853, %v855
        %v857 = vrot.slane %v849, %v856
        %v859 = vunpack.c.l.s4 1983009808
        %v860 = vunpack.c.0.s8 %v859
        %v861 = vlaneseq
        %v862 = vshrl.u32 %v861, 7
        %v863 = vsub.s32 %v860, %v862
        %v864 = vrot.slane %v850, %v863
        %v865 = vcombine.low %v344, %v392
        %v866 = vcombine.high %v344, %v392
        %v868 = vunpack.c.l.s4 1983009808
        %v869 = vunpack.c.0.s8 %v868
        %v870 = vlaneseq
        %v871 = vshrl.u32 %v870, 7
        %v872 = vsub.s32 %v869, %v871
        %v873 = vrot.slane %v865, %v872
        %v875 = vunpack.c.l.s4 1983009808
        %v876 = vunpack.c.0.s8 %v875
        %v877 = vlaneseq
        %v878 = vshrl.u32 %v877, 7
        %v879 = vsub.s32 %v876, %v878
        %v880 = vrot.slane %v866, %v879
        %v881 = vcombine.low %v825, %v841
        %v882 = vcombine.high %v825, %v841
        %v884 = vunpack.c.l.s4 1934713408
        %v885 = vunpack.c.0.s8 %v884
        %v886 = vlaneseq
        %v887 = vshrl.u32 %v886, 7
        %v888 = vsub.s32 %v885, %v887
        %v889 = vrot.slane %v881, %v888
        %v891 = vunpack.c.l.s4 1934713408
        %v892 = vunpack.c.0.s8 %v891
        %v893 = vlaneseq
        %v894 = vshrl.u32 %v893, 7
        %v895 = vsub.s32 %v892, %v894
        %v896 = vrot.slane %v882, %v895
        %v897 = vcombine.low %v832, %v848
        %v898 = vcombine.high %v832, %v848
        %v900 = vunpack.c.l.s4 1934713408
        %v901 = vunpack.c.0.s8 %v900
        %v902 = vlaneseq
        %v903 = vshrl.u32 %v902, 7
        %v904 = vsub.s32 %v901, %v903
        %v905 = vrot.slane %v897, %v904
        %v907 = vunpack.c.l.s4 1934713408
        %v908 = vunpack.c.0.s8 %v907
        %v909 = vlaneseq
        %v910 = vshrl.u32 %v909, 7
        %v911 = vsub.s32 %v908, %v910
        %v912 = vrot.slane %v898, %v911
        %v913 = vcombine.low %v857, %v873
        %v914 = vcombine.high %v857, %v873
        %v916 = vunpack.c.l.s4 1934713408
        %v917 = vunpack.c.0.s8 %v916
        %v918 = vlaneseq
        %v919 = vshrl.u32 %v918, 7
        %v920 = vsub.s32 %v917, %v919
        %v921 = vrot.slane %v913, %v920
        %v923 = vunpack.c.l.s4 1934713408
        %v924 = vunpack.c.0.s8 %v923
        %v925 = vlaneseq
        %v926 = vshrl.u32 %v925, 7
        %v927 = vsub.s32 %v924, %v926
        %v928 = vrot.slane %v914, %v927
        %v929 = vcombine.low %v864, %v880
        %v930 = vcombine.high %v864, %v880
        %v932 = vunpack.c.l.s4 1934713408
        %v933 = vunpack.c.0.s8 %v932
        %v934 = vlaneseq
        %v935 = vshrl.u32 %v934, 7
        %v936 = vsub.s32 %v933, %v935
        %v937 = vrot.slane %v929, %v936
        %v939 = vunpack.c.l.s4 1934713408
        %v940 = vunpack.c.0.s8 %v939
        %v941 = vlaneseq
        %v942 = vshrl.u32 %v941, 7
        %v943 = vsub.s32 %v940, %v942
        %v944 = vrot.slane %v930, %v943
        %v945 = vcombine.low %v889, %v921
        %v946 = vcombine.high %v889, %v921
        %v947 = vcombine.low %v896, %v928
        %v948 = vcombine.high %v896, %v928
        %v949 = vcombine.low %v905, %v937
        %v950 = vcombine.high %v905, %v937
        %v951 = vcombine.low %v912, %v944
        %v952 = vcombine.high %v912, %v944
        %v953 = vcombine.low %v227, %v274
        %v954 = vcombine.high %v227, %v274
        %v956 = vunpack.c.l.s4 1983009808
        %v957 = vunpack.c.0.s8 %v956
        %v958 = vlaneseq
        %v959 = vshrl.u32 %v958, 7
        %v960 = vsub.s32 %v957, %v959
        %v961 = vrot.slane %v953, %v960
        %v963 = vunpack.c.l.s4 1983009808
        %v964 = vunpack.c.0.s8 %v963
        %v965 = vlaneseq
        %v966 = vshrl.u32 %v965, 7
        %v967 = vsub.s32 %v964, %v966
        %v968 = vrot.slane %v954, %v967
        %v969 = vcombine.low %v250, %v298
        %v970 = vcombine.high %v250, %v298
        %v972 = vunpack.c.l.s4 1983009808
        %v973 = vunpack.c.0.s8 %v972
        %v974 = vlaneseq
        %v975 = vshrl.u32 %v974, 7
        %v976 = vsub.s32 %v973, %v975
        %v977 = vrot.slane %v969, %v976
        %v979 = vunpack.c.l.s4 1983009808
        %v980 = vunpack.c.0.s8 %v979
        %v981 = vlaneseq
        %v982 = vshrl.u32 %v981, 7
        %v983 = vsub.s32 %v980, %v982
        %v984 = vrot.slane %v970, %v983
        %v985 = vcombine.low %v322, %v370
        %v986 = vcombine.high %v322, %v370
        %v988 = vunpack.c.l.s4 1983009808
        %v989 = vunpack.c.0.s8 %v988
        %v990 = vlaneseq
        %v991 = vshrl.u32 %v990, 7
        %v992 = vsub.s32 %v989, %v991
        %v993 = vrot.slane %v985, %v992
        %v995 = vunpack.c.l.s4 1983009808
        %v996 = vunpack.c.0.s8 %v995
        %v997 = vlaneseq
        %v998 = vshrl.u32 %v997, 7
        %v999 = vsub.s32 %v996, %v998
        %v1000 = vrot.slane %v986, %v999
        %v1001 = vcombine.low %v346, %v394
        %v1002 = vcombine.high %v346, %v394
        %v1004 = vunpack.c.l.s4 1983009808
        %v1005 = vunpack.c.0.s8 %v1004
        %v1006 = vlaneseq
        %v1007 = vshrl.u32 %v1006, 7
        %v1008 = vsub.s32 %v1005, %v1007
        %v1009 = vrot.slane %v1001, %v1008
        %v1011 = vunpack.c.l.s4 1983009808
        %v1012 = vunpack.c.0.s8 %v1011
        %v1013 = vlaneseq
        %v1014 = vshrl.u32 %v1013, 7
        %v1015 = vsub.s32 %v1012, %v1014
        %v1016 = vrot.slane %v1002, %v1015
        %v1017 = vcombine.low %v961, %v977
        %v1018 = vcombine.high %v961, %v977
        %v1020 = vunpack.c.l.s4 1934713408
        %v1021 = vunpack.c.0.s8 %v1020
        %v1022 = vlaneseq
        %v1023 = vshrl.u32 %v1022, 7
        %v1024 = vsub.s32 %v1021, %v1023
        %v1025 = vrot.slane %v1017, %v1024
        %v1027 = vunpack.c.l.s4 1934713408
        %v1028 = vunpack.c.0.s8 %v1027
        %v1029 = vlaneseq
        %v1030 = vshrl.u32 %v1029, 7
        %v1031 = vsub.s32 %v1028, %v1030
        %v1032 = vrot.slane %v1018, %v1031
        %v1033 = vcombine.low %v968, %v984
        %v1034 = vcombine.high %v968, %v984
        %v1036 = vunpack.c.l.s4 1934713408
        %v1037 = vunpack.c.0.s8 %v1036
        %v1038 = vlaneseq
        %v1039 = vshrl.u32 %v1038, 7
        %v1040 = vsub.s32 %v1037, %v1039
        %v1041 = vrot.slane %v1033, %v1040
        %v1043 = vunpack.c.l.s4 1934713408
        %v1044 = vunpack.c.0.s8 %v1043
        %v1045 = vlaneseq
        %v1046 = vshrl.u32 %v1045, 7
        %v1047 = vsub.s32 %v1044, %v1046
        %v1048 = vrot.slane %v1034, %v1047
        %v1049 = vcombine.low %v993, %v1009
        %v1050 = vcombine.high %v993, %v1009
        %v1052 = vunpack.c.l.s4 1934713408
        %v1053 = vunpack.c.0.s8 %v1052
        %v1054 = vlaneseq
        %v1055 = vshrl.u32 %v1054, 7
        %v1056 = vsub.s32 %v1053, %v1055
        %v1057 = vrot.slane %v1049, %v1056
        %v1059 = vunpack.c.l.s4 1934713408
        %v1060 = vunpack.c.0.s8 %v1059
        %v1061 = vlaneseq
        %v1062 = vshrl.u32 %v1061, 7
        %v1063 = vsub.s32 %v1060, %v1062
        %v1064 = vrot.slane %v1050, %v1063
        %v1065 = vcombine.low %v1000, %v1016
        %v1066 = vcombine.high %v1000, %v1016
        %v1068 = vunpack.c.l.s4 1934713408
        %v1069 = vunpack.c.0.s8 %v1068
        %v1070 = vlaneseq
        %v1071 = vshrl.u32 %v1070, 7
        %v1072 = vsub.s32 %v1069, %v1071
        %v1073 = vrot.slane %v1065, %v1072
        %v1075 = vunpack.c.l.s4 1934713408
        %v1076 = vunpack.c.0.s8 %v1075
        %v1077 = vlaneseq
        %v1078 = vshrl.u32 %v1077, 7
        %v1079 = vsub.s32 %v1076, %v1078
        %v1080 = vrot.slane %v1066, %v1079
        %v1081 = vcombine.low %v1025, %v1057
        %v1082 = vcombine.high %v1025, %v1057
        %v1083 = vcombine.low %v1032, %v1064
        %v1084 = vcombine.high %v1032, %v1064
        %v1085 = vcombine.low %v1041, %v1073
        %v1086 = vcombine.high %v1041, %v1073
        %v1087 = vcombine.low %v1048, %v1080
        %v1088 = vcombine.high %v1048, %v1080
        %v1089 = vcombine.low %v228, %v276
        %v1090 = vcombine.high %v228, %v276
        %v1092 = vunpack.c.l.s4 1983009808
        %v1093 = vunpack.c.0.s8 %v1092
        %v1094 = vlaneseq
        %v1095 = vshrl.u32 %v1094, 7
        %v1096 = vsub.s32 %v1093, %v1095
        %v1097 = vrot.slane %v1089, %v1096
        %v1099 = vunpack.c.l.s4 1983009808
        %v1100 = vunpack.c.0.s8 %v1099
        %v1101 = vlaneseq
        %v1102 = vshrl.u32 %v1101, 7
        %v1103 = vsub.s32 %v1100, %v1102
        %v1104 = vrot.slane %v1090, %v1103
        %v1105 = vcombine.low %v252, %v300
        %v1106 = vcombine.high %v252, %v300
        %v1108 = vunpack.c.l.s4 1983009808
        %v1109 = vunpack.c.0.s8 %v1108
        %v1110 = vlaneseq
        %v1111 = vshrl.u32 %v1110, 7
        %v1112 = vsub.s32 %v1109, %v1111
        %v1113 = vrot.slane %v1105, %v1112
        %v1115 = vunpack.c.l.s4 1983009808
        %v1116 = vunpack.c.0.s8 %v1115
        %v1117 = vlaneseq
        %v1118 = vshrl.u32 %v1117, 7
        %v1119 = vsub.s32 %v1116, %v1118
        %v1120 = vrot.slane %v1106, %v1119
        %v1121 = vcombine.low %v324, %v372
        %v1122 = vcombine.high %v324, %v372
        %v1124 = vunpack.c.l.s4 1983009808
        %v1125 = vunpack.c.0.s8 %v1124
        %v1126 = vlaneseq
        %v1127 = vshrl.u32 %v1126, 7
        %v1128 = vsub.s32 %v1125, %v1127
        %v1129 = vrot.slane %v1121, %v1128
        %v1131 = vunpack.c.l.s4 1983009808
        %v1132 = vunpack.c.0.s8 %v1131
        %v1133 = vlaneseq
        %v1134 = vshrl.u32 %v1133, 7
        %v1135 = vsub.s32 %v1132, %v1134
        %v1136 = vrot.slane %v1122, %v1135
        %v1137 = vcombine.low %v348, %v396
        %v1138 = vcombine.high %v348, %v396
        %v1140 = vunpack.c.l.s4 1983009808
        %v1141 = vunpack.c.0.s8 %v1140
        %v1142 = vlaneseq
        %v1143 = vshrl.u32 %v1142, 7
        %v1144 = vsub.s32 %v1141, %v1143
        %v1145 = vrot.slane %v1137, %v1144
        %v1147 = vunpack.c.l.s4 1983009808
        %v1148 = vunpack.c.0.s8 %v1147
        %v1149 = vlaneseq
        %v1150 = vshrl.u32 %v1149, 7
        %v1151 = vsub.s32 %v1148, %v1150
        %v1152 = vrot.slane %v1138, %v1151
        %v1153 = vcombine.low %v1097, %v1113
        %v1154 = vcombine.high %v1097, %v1113
        %v1156 = vunpack.c.l.s4 1934713408
        %v1157 = vunpack.c.0.s8 %v1156
        %v1158 = vlaneseq
        %v1159 = vshrl.u32 %v1158, 7
        %v1160 = vsub.s32 %v1157, %v1159
        %v1161 = vrot.slane %v1153, %v1160
        %v1163 = vunpack.c.l.s4 1934713408
        %v1164 = vunpack.c.0.s8 %v1163
        %v1165 = vlaneseq
        %v1166 = vshrl.u32 %v1165, 7
        %v1167 = vsub.s32 %v1164, %v1166
        %v1168 = vrot.slane %v1154, %v1167
        %v1169 = vcombine.low %v1104, %v1120
        %v1170 = vcombine.high %v1104, %v1120
        %v1172 = vunpack.c.l.s4 1934713408
        %v1173 = vunpack.c.0.s8 %v1172
        %v1174 = vlaneseq
        %v1175 = vshrl.u32 %v1174, 7
        %v1176 = vsub.s32 %v1173, %v1175
        %v1177 = vrot.slane %v1169, %v1176
        %v1179 = vunpack.c.l.s4 1934713408
        %v1180 = vunpack.c.0.s8 %v1179
        %v1181 = vlaneseq
        %v1182 = vshrl.u32 %v1181, 7
        %v1183 = vsub.s32 %v1180, %v1182
        %v1184 = vrot.slane %v1170, %v1183
        %v1185 = vcombine.low %v1129, %v1145
        %v1186 = vcombine.high %v1129, %v1145
        %v1188 = vunpack.c.l.s4 1934713408
        %v1189 = vunpack.c.0.s8 %v1188
        %v1190 = vlaneseq
        %v1191 = vshrl.u32 %v1190, 7
        %v1192 = vsub.s32 %v1189, %v1191
        %v1193 = vrot.slane %v1185, %v1192
        %v1195 = vunpack.c.l.s4 1934713408
        %v1196 = vunpack.c.0.s8 %v1195
        %v1197 = vlaneseq
        %v1198 = vshrl.u32 %v1197, 7
        %v1199 = vsub.s32 %v1196, %v1198
        %v1200 = vrot.slane %v1186, %v1199
        %v1201 = vcombine.low %v1136, %v1152
        %v1202 = vcombine.high %v1136, %v1152
        %v1204 = vunpack.c.l.s4 1934713408
        %v1205 = vunpack.c.0.s8 %v1204
        %v1206 = vlaneseq
        %v1207 = vshrl.u32 %v1206, 7
        %v1208 = vsub.s32 %v1205, %v1207
        %v1209 = vrot.slane %v1201, %v1208
        %v1211 = vunpack.c.l.s4 1934713408
        %v1212 = vunpack.c.0.s8 %v1211
        %v1213 = vlaneseq
        %v1214 = vshrl.u32 %v1213, 7
        %v1215 = vsub.s32 %v1212, %v1214
        %v1216 = vrot.slane %v1202, %v1215
        %v1217 = vcombine.low %v1161, %v1193
        %v1218 = vcombine.high %v1161, %v1193
        %v1219 = vcombine.low %v1168, %v1200
        %v1220 = vcombine.high %v1168, %v1200
        %v1221 = vcombine.low %v1177, %v1209
        %v1222 = vcombine.high %v1177, %v1209
        %v1223 = vcombine.low %v1184, %v1216
        %v1224 = vcombine.high %v1184, %v1216
        %v1225 = vcombine.low %v229, %v278
        %v1226 = vcombine.high %v229, %v278
        %v1228 = vunpack.c.l.s4 1983009808
        %v1229 = vunpack.c.0.s8 %v1228
        %v1230 = vlaneseq
        %v1231 = vshrl.u32 %v1230, 7
        %v1232 = vsub.s32 %v1229, %v1231
        %v1233 = vrot.slane %v1225, %v1232
        %v1235 = vunpack.c.l.s4 1983009808
        %v1236 = vunpack.c.0.s8 %v1235
        %v1237 = vlaneseq
        %v1238 = vshrl.u32 %v1237, 7
        %v1239 = vsub.s32 %v1236, %v1238
        %v1240 = vrot.slane %v1226, %v1239
        %v1241 = vcombine.low %v254, %v302
        %v1242 = vcombine.high %v254, %v302
        %v1244 = vunpack.c.l.s4 1983009808
        %v1245 = vunpack.c.0.s8 %v1244
        %v1246 = vlaneseq
        %v1247 = vshrl.u32 %v1246, 7
        %v1248 = vsub.s32 %v1245, %v1247
        %v1249 = vrot.slane %v1241, %v1248
        %v1251 = vunpack.c.l.s4 1983009808
        %v1252 = vunpack.c.0.s8 %v1251
        %v1253 = vlaneseq
        %v1254 = vshrl.u32 %v1253, 7
        %v1255 = vsub.s32 %v1252, %v1254
        %v1256 = vrot.slane %v1242, %v1255
        %v1257 = vcombine.low %v326, %v374
        %v1258 = vcombine.high %v326, %v374
        %v1260 = vunpack.c.l.s4 1983009808
        %v1261 = vunpack.c.0.s8 %v1260
        %v1262 = vlaneseq
        %v1263 = vshrl.u32 %v1262, 7
        %v1264 = vsub.s32 %v1261, %v1263
        %v1265 = vrot.slane %v1257, %v1264
        %v1267 = vunpack.c.l.s4 1983009808
        %v1268 = vunpack.c.0.s8 %v1267
        %v1269 = vlaneseq
        %v1270 = vshrl.u32 %v1269, 7
        %v1271 = vsub.s32 %v1268, %v1270
        %v1272 = vrot.slane %v1258, %v1271
        %v1273 = vcombine.low %v350, %v398
        %v1274 = vcombine.high %v350, %v398
        %v1276 = vunpack.c.l.s4 1983009808
        %v1277 = vunpack.c.0.s8 %v1276
        %v1278 = vlaneseq
        %v1279 = vshrl.u32 %v1278, 7
        %v1280 = vsub.s32 %v1277, %v1279
        %v1281 = vrot.slane %v1273, %v1280
        %v1283 = vunpack.c.l.s4 1983009808
        %v1284 = vunpack.c.0.s8 %v1283
        %v1285 = vlaneseq
        %v1286 = vshrl.u32 %v1285, 7
        %v1287 = vsub.s32 %v1284, %v1286
        %v1288 = vrot.slane %v1274, %v1287
        %v1289 = vcombine.low %v1233, %v1249
        %v1290 = vcombine.high %v1233, %v1249
        %v1292 = vunpack.c.l.s4 1934713408
        %v1293 = vunpack.c.0.s8 %v1292
        %v1294 = vlaneseq
        %v1295 = vshrl.u32 %v1294, 7
        %v1296 = vsub.s32 %v1293, %v1295
        %v1297 = vrot.slane %v1289, %v1296
        %v1299 = vunpack.c.l.s4 1934713408
        %v1300 = vunpack.c.0.s8 %v1299
        %v1301 = vlaneseq
        %v1302 = vshrl.u32 %v1301, 7
        %v1303 = vsub.s32 %v1300, %v1302
        %v1304 = vrot.slane %v1290, %v1303
        %v1305 = vcombine.low %v1240, %v1256
        %v1306 = vcombine.high %v1240, %v1256
        %v1308 = vunpack.c.l.s4 1934713408
        %v1309 = vunpack.c.0.s8 %v1308
        %v1310 = vlaneseq
        %v1311 = vshrl.u32 %v1310, 7
        %v1312 = vsub.s32 %v1309, %v1311
        %v1313 = vrot.slane %v1305, %v1312
        %v1315 = vunpack.c.l.s4 1934713408
        %v1316 = vunpack.c.0.s8 %v1315
        %v1317 = vlaneseq
        %v1318 = vshrl.u32 %v1317, 7
        %v1319 = vsub.s32 %v1316, %v1318
        %v1320 = vrot.slane %v1306, %v1319
        %v1321 = vcombine.low %v1265, %v1281
        %v1322 = vcombine.high %v1265, %v1281
        %v1324 = vunpack.c.l.s4 1934713408
        %v1325 = vunpack.c.0.s8 %v1324
        %v1326 = vlaneseq
        %v1327 = vshrl.u32 %v1326, 7
        %v1328 = vsub.s32 %v1325, %v1327
        %v1329 = vrot.slane %v1321, %v1328
        %v1331 = vunpack.c.l.s4 1934713408
        %v1332 = vunpack.c.0.s8 %v1331
        %v1333 = vlaneseq
        %v1334 = vshrl.u32 %v1333, 7
        %v1335 = vsub.s32 %v1332, %v1334
        %v1336 = vrot.slane %v1322, %v1335
        %v1337 = vcombine.low %v1272, %v1288
        %v1338 = vcombine.high %v1272, %v1288
        %v1340 = vunpack.c.l.s4 1934713408
        %v1341 = vunpack.c.0.s8 %v1340
        %v1342 = vlaneseq
        %v1343 = vshrl.u32 %v1342, 7
        %v1344 = vsub.s32 %v1341, %v1343
        %v1345 = vrot.slane %v1337, %v1344
        %v1347 = vunpack.c.l.s4 1934713408
        %v1348 = vunpack.c.0.s8 %v1347
        %v1349 = vlaneseq
        %v1350 = vshrl.u32 %v1349, 7
        %v1351 = vsub.s32 %v1348, %v1350
        %v1352 = vrot.slane %v1338, %v1351
        %v1353 = vcombine.low %v1297, %v1329
        %v1354 = vcombine.high %v1297, %v1329
        %v1355 = vcombine.low %v1304, %v1336
        %v1356 = vcombine.high %v1304, %v1336
        %v1357 = vcombine.low %v1313, %v1345
        %v1358 = vcombine.high %v1313, %v1345
        %v1359 = vcombine.low %v1320, %v1352
        %v1360 = vcombine.high %v1320, %v1352
        %v1361 = vcombine.low %v230, %v280
        %v1362 = vcombine.high %v230, %v280
        %v1364 = vunpack.c.l.s4 1983009808
        %v1365 = vunpack.c.0.s8 %v1364
        %v1366 = vlaneseq
        %v1367 = vshrl.u32 %v1366, 7
        %v1368 = vsub.s32 %v1365, %v1367
        %v1369 = vrot.slane %v1361, %v1368
        %v1371 = vunpack.c.l.s4 1983009808
        %v1372 = vunpack.c.0.s8 %v1371
        %v1373 = vlaneseq
        %v1374 = vshrl.u32 %v1373, 7
        %v1375 = vsub.s32 %v1372, %v1374
        %v1376 = vrot.slane %v1362, %v1375
        %v1377 = vcombine.low %v256, %v304
        %v1378 = vcombine.high %v256, %v304
        %v1380 = vunpack.c.l.s4 1983009808
        %v1381 = vunpack.c.0.s8 %v1380
        %v1382 = vlaneseq
        %v1383 = vshrl.u32 %v1382, 7
        %v1384 = vsub.s32 %v1381, %v1383
        %v1385 = vrot.slane %v1377, %v1384
        %v1387 = vunpack.c.l.s4 1983009808
        %v1388 = vunpack.c.0.s8 %v1387
        %v1389 = vlaneseq
        %v1390 = vshrl.u32 %v1389, 7
        %v1391 = vsub.s32 %v1388, %v1390
        %v1392 = vrot.slane %v1378, %v1391
        %v1393 = vcombine.low %v328, %v376
        %v1394 = vcombine.high %v328, %v376
        %v1396 = vunpack.c.l.s4 1983009808
        %v1397 = vunpack.c.0.s8 %v1396
        %v1398 = vlaneseq
        %v1399 = vshrl.u32 %v1398, 7
        %v1400 = vsub.s32 %v1397, %v1399
        %v1401 = vrot.slane %v1393, %v1400
        %v1403 = vunpack.c.l.s4 1983009808
        %v1404 = vunpack.c.0.s8 %v1403
        %v1405 = vlaneseq
        %v1406 = vshrl.u32 %v1405, 7
        %v1407 = vsub.s32 %v1404, %v1406
        %v1408 = vrot.slane %v1394, %v1407
        %v1409 = vcombine.low %v352, %v400
        %v1410 = vcombine.high %v352, %v400
        %v1412 = vunpack.c.l.s4 1983009808
        %v1413 = vunpack.c.0.s8 %v1412
        %v1414 = vlaneseq
        %v1415 = vshrl.u32 %v1414, 7
        %v1416 = vsub.s32 %v1413, %v1415
        %v1417 = vrot.slane %v1409, %v1416
        %v1419 = vunpack.c.l.s4 1983009808
        %v1420 = vunpack.c.0.s8 %v1419
        %v1421 = vlaneseq
        %v1422 = vshrl.u32 %v1421, 7
        %v1423 = vsub.s32 %v1420, %v1422
        %v1424 = vrot.slane %v1410, %v1423
        %v1425 = vcombine.low %v1369, %v1385
        %v1426 = vcombine.high %v1369, %v1385
        %v1428 = vunpack.c.l.s4 1934713408
        %v1429 = vunpack.c.0.s8 %v1428
        %v1430 = vlaneseq
        %v1431 = vshrl.u32 %v1430, 7
        %v1432 = vsub.s32 %v1429, %v1431
        %v1433 = vrot.slane %v1425, %v1432
        %v1435 = vunpack.c.l.s4 1934713408
        %v1436 = vunpack.c.0.s8 %v1435
        %v1437 = vlaneseq
        %v1438 = vshrl.u32 %v1437, 7
        %v1439 = vsub.s32 %v1436, %v1438
        %v1440 = vrot.slane %v1426, %v1439
        %v1441 = vcombine.low %v1376, %v1392
        %v1442 = vcombine.high %v1376, %v1392
        %v1444 = vunpack.c.l.s4 1934713408
        %v1445 = vunpack.c.0.s8 %v1444
        %v1446 = vlaneseq
        %v1447 = vshrl.u32 %v1446, 7
        %v1448 = vsub.s32 %v1445, %v1447
        %v1449 = vrot.slane %v1441, %v1448
        %v1451 = vunpack.c.l.s4 1934713408
        %v1452 = vunpack.c.0.s8 %v1451
        %v1453 = vlaneseq
        %v1454 = vshrl.u32 %v1453, 7
        %v1455 = vsub.s32 %v1452, %v1454
        %v1456 = vrot.slane %v1442, %v1455
        %v1457 = vcombine.low %v1401, %v1417
        %v1458 = vcombine.high %v1401, %v1417
        %v1460 = vunpack.c.l.s4 1934713408
        %v1461 = vunpack.c.0.s8 %v1460
        %v1462 = vlaneseq
        %v1463 = vshrl.u32 %v1462, 7
        %v1464 = vsub.s32 %v1461, %v1463
        %v1465 = vrot.slane %v1457, %v1464
        %v1467 = vunpack.c.l.s4 1934713408
        %v1468 = vunpack.c.0.s8 %v1467
        %v1469 = vlaneseq
        %v1470 = vshrl.u32 %v1469, 7
        %v1471 = vsub.s32 %v1468, %v1470
        %v1472 = vrot.slane %v1458, %v1471
        %v1473 = vcombine.low %v1408, %v1424
        %v1474 = vcombine.high %v1408, %v1424
        %v1476 = vunpack.c.l.s4 1934713408
        %v1477 = vunpack.c.0.s8 %v1476
        %v1478 = vlaneseq
        %v1479 = vshrl.u32 %v1478, 7
        %v1480 = vsub.s32 %v1477, %v1479
        %v1481 = vrot.slane %v1473, %v1480
        %v1483 = vunpack.c.l.s4 1934713408
        %v1484 = vunpack.c.0.s8 %v1483
        %v1485 = vlaneseq
        %v1486 = vshrl.u32 %v1485, 7
        %v1487 = vsub.s32 %v1484, %v1486
        %v1488 = vrot.slane %v1474, %v1487
        %v1489 = vcombine.low %v1433, %v1465
        %v1490 = vcombine.high %v1433, %v1465
        %v1491 = vcombine.low %v1440, %v1472
        %v1492 = vcombine.high %v1440, %v1472
        %v1493 = vcombine.low %v1449, %v1481
        %v1494 = vcombine.high %v1449, %v1481
        %v1495 = vcombine.low %v1456, %v1488
        %v1496 = vcombine.high %v1456, %v1488
        %vm1497 = vcmask 15360
        %v1498 = vsel %vm1497, %v537, 0.0
        %v1499 = vsel %vm1497, %v538, 0.0
        %v1500 = vadd.f32 %v1498, %v1499
        %1501 = vadd.xlane.f32.xlu0 %v1500
        %v1502 = vpop.xlane.xlu0 %1501
        %v1503 = vsel %vm1497, %v539, 0.0
        %v1504 = vsel %vm1497, %v540, 0.0
        %v1505 = vadd.f32 %v1503, %v1504
        %1506 = vadd.xlane.f32.xlu0 %v1505
        %v1507 = vpop.xlane.xlu0 %1506
        %v1508 = vsel %vm1497, %v541, 0.0
        %v1509 = vsel %vm1497, %v542, 0.0
        %v1510 = vadd.f32 %v1508, %v1509
        %1511 = vadd.xlane.f32.xlu0 %v1510
        %v1512 = vpop.xlane.xlu0 %1511
        %v1513 = vsel %vm1497, %v543, 0.0
        %v1514 = vsel %vm1497, %v544, 0.0
        %v1515 = vadd.f32 %v1513, %v1514
        %1516 = vadd.xlane.f32.xlu0 %v1515
        %v1517 = vpop.xlane.xlu0 %1516
        %v1518 = vsel %vm1497, %v673, 0.0
        %v1519 = vsel %vm1497, %v674, 0.0
        %v1520 = vadd.f32 %v1518, %v1519
        %1521 = vadd.xlane.f32.xlu0 %v1520
        %v1522 = vpop.xlane.xlu0 %1521
        %v1523 = vsel %vm1497, %v675, 0.0
        %v1524 = vsel %vm1497, %v676, 0.0
        %v1525 = vadd.f32 %v1523, %v1524
        %1526 = vadd.xlane.f32.xlu0 %v1525
        %v1527 = vpop.xlane.xlu0 %1526
        %v1528 = vsel %vm1497, %v677, 0.0
        %v1529 = vsel %vm1497, %v678, 0.0
        %v1530 = vadd.f32 %v1528, %v1529
        %1531 = vadd.xlane.f32.xlu0 %v1530
        %v1532 = vpop.xlane.xlu0 %1531
        %v1533 = vsel %vm1497, %v679, 0.0
        %v1534 = vsel %vm1497, %v680, 0.0
        %v1535 = vadd.f32 %v1533, %v1534
        %1536 = vadd.xlane.f32.xlu0 %v1535
        %v1537 = vpop.xlane.xlu0 %1536
        %v1538 = vsel %vm1497, %v809, 0.0
        %v1539 = vsel %vm1497, %v810, 0.0
        %v1540 = vadd.f32 %v1538, %v1539
        %1541 = vadd.xlane.f32.xlu0 %v1540
        %v1542 = vpop.xlane.xlu0 %1541
        %v1543 = vsel %vm1497, %v811, 0.0
        %v1544 = vsel %vm1497, %v812, 0.0
        %v1545 = vadd.f32 %v1543, %v1544
        %1546 = vadd.xlane.f32.xlu0 %v1545
        %v1547 = vpop.xlane.xlu0 %1546
        %v1548 = vsel %vm1497, %v813, 0.0
        %v1549 = vsel %vm1497, %v814, 0.0
        %v1550 = vadd.f32 %v1548, %v1549
        %1551 = vadd.xlane.f32.xlu0 %v1550
        %v1552 = vpop.xlane.xlu0 %1551
        %v1553 = vsel %vm1497, %v815, 0.0
        %v1554 = vsel %vm1497, %v816, 0.0
        %v1555 = vadd.f32 %v1553, %v1554
        %1556 = vadd.xlane.f32.xlu0 %v1555
        %v1557 = vpop.xlane.xlu0 %1556
        %v1558 = vsel %vm1497, %v945, 0.0
        %v1559 = vsel %vm1497, %v946, 0.0
        %v1560 = vadd.f32 %v1558, %v1559
        %1561 = vadd.xlane.f32.xlu0 %v1560
        %v1562 = vpop.xlane.xlu0 %1561
        %v1563 = vsel %vm1497, %v947, 0.0
        %v1564 = vsel %vm1497, %v948, 0.0
        %v1565 = vadd.f32 %v1563, %v1564
        %1566 = vadd.xlane.f32.xlu0 %v1565
        %v1567 = vpop.xlane.xlu0 %1566
        %v1568 = vsel %vm1497, %v949, 0.0
        %v1569 = vsel %vm1497, %v950, 0.0
        %v1570 = vadd.f32 %v1568, %v1569
        %1571 = vadd.xlane.f32.xlu0 %v1570
        %v1572 = vpop.xlane.xlu0 %1571
        %v1573 = vsel %vm1497, %v951, 0.0
        %v1574 = vsel %vm1497, %v952, 0.0
        %v1575 = vadd.f32 %v1573, %v1574
        %1576 = vadd.xlane.f32.xlu0 %v1575
        %v1577 = vpop.xlane.xlu0 %1576
        %v1578 = vsel %vm1497, %v1081, 0.0
        %v1579 = vsel %vm1497, %v1082, 0.0
        %v1580 = vadd.f32 %v1578, %v1579
        %1581 = vadd.xlane.f32.xlu0 %v1580
        %v1582 = vpop.xlane.xlu0 %1581
        %v1583 = vsel %vm1497, %v1083, 0.0
        %v1584 = vsel %vm1497, %v1084, 0.0
        %v1585 = vadd.f32 %v1583, %v1584
        %1586 = vadd.xlane.f32.xlu0 %v1585
        %v1587 = vpop.xlane.xlu0 %1586
        %v1588 = vsel %vm1497, %v1085, 0.0
        %v1589 = vsel %vm1497, %v1086, 0.0
        %v1590 = vadd.f32 %v1588, %v1589
        %1591 = vadd.xlane.f32.xlu0 %v1590
        %v1592 = vpop.xlane.xlu0 %1591
        %v1593 = vsel %vm1497, %v1087, 0.0
        %v1594 = vsel %vm1497, %v1088, 0.0
        %v1595 = vadd.f32 %v1593, %v1594
        %1596 = vadd.xlane.f32.xlu0 %v1595
        %v1597 = vpop.xlane.xlu0 %1596
        %v1598 = vsel %vm1497, %v1217, 0.0
        %v1599 = vsel %vm1497, %v1218, 0.0
        %v1600 = vadd.f32 %v1598, %v1599
        %1601 = vadd.xlane.f32.xlu0 %v1600
        %v1602 = vpop.xlane.xlu0 %1601
        %v1603 = vsel %vm1497, %v1219, 0.0
        %v1604 = vsel %vm1497, %v1220, 0.0
        %v1605 = vadd.f32 %v1603, %v1604
        %1606 = vadd.xlane.f32.xlu0 %v1605
        %v1607 = vpop.xlane.xlu0 %1606
        %v1608 = vsel %vm1497, %v1221, 0.0
        %v1609 = vsel %vm1497, %v1222, 0.0
        %v1610 = vadd.f32 %v1608, %v1609
        %1611 = vadd.xlane.f32.xlu0 %v1610
        %v1612 = vpop.xlane.xlu0 %1611
        %v1613 = vsel %vm1497, %v1223, 0.0
        %v1614 = vsel %vm1497, %v1224, 0.0
        %v1615 = vadd.f32 %v1613, %v1614
        %1616 = vadd.xlane.f32.xlu0 %v1615
        %v1617 = vpop.xlane.xlu0 %1616
        %v1618 = vsel %vm1497, %v1353, 0.0
        %v1619 = vsel %vm1497, %v1354, 0.0
        %v1620 = vadd.f32 %v1618, %v1619
        %1621 = vadd.xlane.f32.xlu0 %v1620
        %v1622 = vpop.xlane.xlu0 %1621
        %v1623 = vsel %vm1497, %v1355, 0.0
        %v1624 = vsel %vm1497, %v1356, 0.0
        %v1625 = vadd.f32 %v1623, %v1624
        %1626 = vadd.xlane.f32.xlu0 %v1625
        %v1627 = vpop.xlane.xlu0 %1626
        %v1628 = vsel %vm1497, %v1357, 0.0
        %v1629 = vsel %vm1497, %v1358, 0.0
        %v1630 = vadd.f32 %v1628, %v1629
        %1631 = vadd.xlane.f32.xlu0 %v1630
        %v1632 = vpop.xlane.xlu0 %1631
        %v1633 = vsel %vm1497, %v1359, 0.0
        %v1634 = vsel %vm1497, %v1360, 0.0
        %v1635 = vadd.f32 %v1633, %v1634
        %1636 = vadd.xlane.f32.xlu0 %v1635
        %v1637 = vpop.xlane.xlu0 %1636
        %v1638 = vsel %vm1497, %v1489, 0.0
        %v1639 = vsel %vm1497, %v1490, 0.0
        %v1640 = vadd.f32 %v1638, %v1639
        %1641 = vadd.xlane.f32.xlu0 %v1640
        %v1642 = vpop.xlane.xlu0 %1641
        %v1643 = vsel %vm1497, %v1491, 0.0
        %v1644 = vsel %vm1497, %v1492, 0.0
        %v1645 = vadd.f32 %v1643, %v1644
        %1646 = vadd.xlane.f32.xlu0 %v1645
        %v1647 = vpop.xlane.xlu0 %1646
        %v1648 = vsel %vm1497, %v1493, 0.0
        %v1649 = vsel %vm1497, %v1494, 0.0
        %v1650 = vadd.f32 %v1648, %v1649
        %1651 = vadd.xlane.f32.xlu0 %v1650
        %v1652 = vpop.xlane.xlu0 %1651
        %v1653 = vsel %vm1497, %v1495, 0.0
        %v1654 = vsel %vm1497, %v1496, 0.0
        %v1655 = vadd.f32 %v1653, %v1654
        %1656 = vadd.xlane.f32.xlu0 %v1655
        %v1657 = vpop.xlane.xlu0 %1656
        %v1658 = vmul.f32 %v1502, 0.25
        %v1659 = vmul.f32 %v1507, 0.25
        %v1660 = vmul.f32 %v1512, 0.25
        %v1661 = vmul.f32 %v1517, 0.25
        %v1662 = vmul.f32 %v1522, 0.25
        %v1663 = vmul.f32 %v1527, 0.25
        %v1664 = vmul.f32 %v1532, 0.25
        %v1665 = vmul.f32 %v1537, 0.25
        %v1666 = vmul.f32 %v1542, 0.25
        %v1667 = vmul.f32 %v1547, 0.25
        %v1668 = vmul.f32 %v1552, 0.25
        %v1669 = vmul.f32 %v1557, 0.25
        %v1670 = vmul.f32 %v1562, 0.25
        %v1671 = vmul.f32 %v1567, 0.25
        %v1672 = vmul.f32 %v1572, 0.25
        %v1673 = vmul.f32 %v1577, 0.25
        %v1674 = vmul.f32 %v1582, 0.25
        %v1675 = vmul.f32 %v1587, 0.25
        %v1676 = vmul.f32 %v1592, 0.25
        %v1677 = vmul.f32 %v1597, 0.25
        %v1678 = vmul.f32 %v1602, 0.25
        %v1679 = vmul.f32 %v1607, 0.25
        %v1680 = vmul.f32 %v1612, 0.25
        %v1681 = vmul.f32 %v1617, 0.25
        %v1682 = vmul.f32 %v1622, 0.25
        %v1683 = vmul.f32 %v1627, 0.25
        %v1684 = vmul.f32 %v1632, 0.25
        %v1685 = vmul.f32 %v1637, 0.25
        %v1686 = vmul.f32 %v1642, 0.25
        %v1687 = vmul.f32 %v1647, 0.25
        %v1688 = vmul.f32 %v1652, 0.25
        %v1689 = vmul.f32 %v1657, 0.25
        %v1690 = vpack.c.bf16 %v1658, %v1658
        %v1691 = vpack.c.bf16 %v1659, %v1659
        %v1692 = vpack.c.bf16 %v1660, %v1660
        %v1693 = vpack.c.bf16 %v1661, %v1661
        %v1694 = vpack.c.bf16 %v1662, %v1662
        %v1695 = vpack.c.bf16 %v1663, %v1663
        %v1696 = vpack.c.bf16 %v1664, %v1664
        %v1697 = vpack.c.bf16 %v1665, %v1665
        %v1698 = vpack.c.bf16 %v1666, %v1666
        %v1699 = vpack.c.bf16 %v1667, %v1667
        %v1700 = vpack.c.bf16 %v1668, %v1668
        %v1701 = vpack.c.bf16 %v1669, %v1669
        %v1702 = vpack.c.bf16 %v1670, %v1670
        %v1703 = vpack.c.bf16 %v1671, %v1671
        %v1704 = vpack.c.bf16 %v1672, %v1672
        %v1705 = vpack.c.bf16 %v1673, %v1673
        %v1706 = vpack.c.bf16 %v1674, %v1674
        %v1707 = vpack.c.bf16 %v1675, %v1675
        %v1708 = vpack.c.bf16 %v1676, %v1676
        %v1709 = vpack.c.bf16 %v1677, %v1677
        %v1710 = vpack.c.bf16 %v1678, %v1678
        %v1711 = vpack.c.bf16 %v1679, %v1679
        %v1712 = vpack.c.bf16 %v1680, %v1680
        %v1713 = vpack.c.bf16 %v1681, %v1681
        %v1714 = vpack.c.bf16 %v1682, %v1682
        %v1715 = vpack.c.bf16 %v1683, %v1683
        %v1716 = vpack.c.bf16 %v1684, %v1684
        %v1717 = vpack.c.bf16 %v1685, %v1685
        %v1718 = vpack.c.bf16 %v1686, %v1686
        %v1719 = vpack.c.bf16 %v1687, %v1687
        %v1720 = vpack.c.bf16 %v1688, %v1688
        %v1721 = vpack.c.bf16 %v1689, %v1689
        %v1754 = vunpack.c.l.b16 %v1690
        %v1755 = vunpack.c.l.b16 %v1691
        %v1756 = vunpack.c.l.b16 %v1692
        %v1757 = vunpack.c.l.b16 %v1693
        %v1758 = vunpack.c.l.b16 %v1694
        %v1759 = vunpack.c.l.b16 %v1695
        %v1760 = vunpack.c.l.b16 %v1696
        %v1761 = vunpack.c.l.b16 %v1697
        %v1762 = vunpack.c.l.b16 %v1698
        %v1763 = vunpack.c.l.b16 %v1699
        %v1764 = vunpack.c.l.b16 %v1700
        %v1765 = vunpack.c.l.b16 %v1701
        %v1766 = vunpack.c.l.b16 %v1702
        %v1767 = vunpack.c.l.b16 %v1703
        %v1768 = vunpack.c.l.b16 %v1704
        %v1769 = vunpack.c.l.b16 %v1705
        %v1770 = vunpack.c.l.b16 %v1706
        %v1771 = vunpack.c.l.b16 %v1707
        %v1772 = vunpack.c.l.b16 %v1708
        %v1773 = vunpack.c.l.b16 %v1709
        %v1774 = vunpack.c.l.b16 %v1710
        %v1775 = vunpack.c.l.b16 %v1711
        %v1776 = vunpack.c.l.b16 %v1712
        %v1777 = vunpack.c.l.b16 %v1713
        %v1778 = vunpack.c.l.b16 %v1714
        %v1779 = vunpack.c.l.b16 %v1715
        %v1780 = vunpack.c.l.b16 %v1716
        %v1781 = vunpack.c.l.b16 %v1717
        %v1782 = vunpack.c.l.b16 %v1718
        %v1783 = vunpack.c.l.b16 %v1719
        %v1784 = vunpack.c.l.b16 %v1720
        %v1785 = vunpack.c.l.b16 %v1721
        %v1786 = vlaneseq
        %v1787 = vand.u32 %v1786, 127
        %v1788 = vlaneseq
        %v1789 = vshrl.u32 %v1788, 7
        %v1790 = vsub.s32 %v1787, %v1789
        %v1791 = vrot.slane %v1754, %v1790
        %v1792 = vlaneseq
        %v1793 = vshrl.u32 %v1792, 7
        %v1794 = vsub.s32 %v1787, %v1793
        %v1795 = vrot.slane %v1755, %v1794
        %v1796 = vlaneseq
        %v1797 = vshrl.u32 %v1796, 7
        %v1798 = vsub.s32 %v1787, %v1797
        %v1799 = vrot.slane %v1756, %v1798
        %v1800 = vlaneseq
        %v1801 = vshrl.u32 %v1800, 7
        %v1802 = vsub.s32 %v1787, %v1801
        %v1803 = vrot.slane %v1757, %v1802
        %v1804 = vlaneseq
        %v1805 = vshrl.u32 %v1804, 7
        %v1806 = vsub.s32 %v1787, %v1805
        %v1807 = vrot.slane %v1758, %v1806
        %v1808 = vlaneseq
        %v1809 = vshrl.u32 %v1808, 7
        %v1810 = vsub.s32 %v1787, %v1809
        %v1811 = vrot.slane %v1759, %v1810
        %v1812 = vlaneseq
        %v1813 = vshrl.u32 %v1812, 7
        %v1814 = vsub.s32 %v1787, %v1813
        %v1815 = vrot.slane %v1760, %v1814
        %v1816 = vlaneseq
        %v1817 = vshrl.u32 %v1816, 7
        %v1818 = vsub.s32 %v1787, %v1817
        %v1819 = vrot.slane %v1761, %v1818
        %v1820 = vlaneseq
        %v1821 = vshrl.u32 %v1820, 7
        %v1822 = vsub.s32 %v1787, %v1821
        %v1823 = vrot.slane %v1762, %v1822
        %v1824 = vlaneseq
        %v1825 = vshrl.u32 %v1824, 7
        %v1826 = vsub.s32 %v1787, %v1825
        %v1827 = vrot.slane %v1763, %v1826
        %v1828 = vlaneseq
        %v1829 = vshrl.u32 %v1828, 7
        %v1830 = vsub.s32 %v1787, %v1829
        %v1831 = vrot.slane %v1764, %v1830
        %v1832 = vlaneseq
        %v1833 = vshrl.u32 %v1832, 7
        %v1834 = vsub.s32 %v1787, %v1833
        %v1835 = vrot.slane %v1765, %v1834
        %v1836 = vlaneseq
        %v1837 = vshrl.u32 %v1836, 7
        %v1838 = vsub.s32 %v1787, %v1837
        %v1839 = vrot.slane %v1766, %v1838
        %v1840 = vlaneseq
        %v1841 = vshrl.u32 %v1840, 7
        %v1842 = vsub.s32 %v1787, %v1841
        %v1843 = vrot.slane %v1767, %v1842
        %v1844 = vlaneseq
        %v1845 = vshrl.u32 %v1844, 7
        %v1846 = vsub.s32 %v1787, %v1845
        %v1847 = vrot.slane %v1768, %v1846
        %v1848 = vlaneseq
        %v1849 = vshrl.u32 %v1848, 7
        %v1850 = vsub.s32 %v1787, %v1849
        %v1851 = vrot.slane %v1769, %v1850
        %v1852 = vlaneseq
        %v1853 = vshrl.u32 %v1852, 7
        %v1854 = vsub.s32 %v1787, %v1853
        %v1855 = vrot.slane %v1770, %v1854
        %v1856 = vlaneseq
        %v1857 = vshrl.u32 %v1856, 7
        %v1858 = vsub.s32 %v1787, %v1857
        %v1859 = vrot.slane %v1771, %v1858
        %v1860 = vlaneseq
        %v1861 = vshrl.u32 %v1860, 7
        %v1862 = vsub.s32 %v1787, %v1861
        %v1863 = vrot.slane %v1772, %v1862
        %v1864 = vlaneseq
        %v1865 = vshrl.u32 %v1864, 7
        %v1866 = vsub.s32 %v1787, %v1865
        %v1867 = vrot.slane %v1773, %v1866
        %v1868 = vlaneseq
        %v1869 = vshrl.u32 %v1868, 7
        %v1870 = vsub.s32 %v1787, %v1869
        %v1871 = vrot.slane %v1774, %v1870
        %v1872 = vlaneseq
        %v1873 = vshrl.u32 %v1872, 7
        %v1874 = vsub.s32 %v1787, %v1873
        %v1875 = vrot.slane %v1775, %v1874
        %v1876 = vlaneseq
        %v1877 = vshrl.u32 %v1876, 7
        %v1878 = vsub.s32 %v1787, %v1877
        %v1879 = vrot.slane %v1776, %v1878
        %v1880 = vlaneseq
        %v1881 = vshrl.u32 %v1880, 7
        %v1882 = vsub.s32 %v1787, %v1881
        %v1883 = vrot.slane %v1777, %v1882
        %v1884 = vlaneseq
        %v1885 = vshrl.u32 %v1884, 7
        %v1886 = vsub.s32 %v1787, %v1885
        %v1887 = vrot.slane %v1778, %v1886
        %v1888 = vlaneseq
        %v1889 = vshrl.u32 %v1888, 7
        %v1890 = vsub.s32 %v1787, %v1889
        %v1891 = vrot.slane %v1779, %v1890
        %v1892 = vlaneseq
        %v1893 = vshrl.u32 %v1892, 7
        %v1894 = vsub.s32 %v1787, %v1893
        %v1895 = vrot.slane %v1780, %v1894
        %v1896 = vlaneseq
        %v1897 = vshrl.u32 %v1896, 7
        %v1898 = vsub.s32 %v1787, %v1897
        %v1899 = vrot.slane %v1781, %v1898
        %v1900 = vlaneseq
        %v1901 = vshrl.u32 %v1900, 7
        %v1902 = vsub.s32 %v1787, %v1901
        %v1903 = vrot.slane %v1782, %v1902
        %v1904 = vlaneseq
        %v1905 = vshrl.u32 %v1904, 7
        %v1906 = vsub.s32 %v1787, %v1905
        %v1907 = vrot.slane %v1783, %v1906
        %v1908 = vlaneseq
        %v1909 = vshrl.u32 %v1908, 7
        %v1910 = vsub.s32 %v1787, %v1909
        %v1911 = vrot.slane %v1784, %v1910
        %v1912 = vlaneseq
        %v1913 = vshrl.u32 %v1912, 7
        %v1914 = vsub.s32 %v1787, %v1913
        %v1915 = vrot.slane %v1785, %v1914
        %vm1916 = vcmask 1042434
        %v1917 = vsel %vm1916, %v1795, %v1791
        %vm1918 = vcmask 1043459
        %v1919 = vsel %vm1918, %v1799, %v1917
        %vm1920 = vcmask 1044484
        %v1921 = vsel %vm1920, %v1803, %v1919
        %vm1922 = vcmask 1045509
        %v1923 = vsel %vm1922, %v1807, %v1921
        %vm1924 = vcmask 1046534
        %v1925 = vsel %vm1924, %v1811, %v1923
        %vm1926 = vcmask 1047559
        %v1927 = vsel %vm1926, %v1815, %v1925
        %v1928 = vsel %vm1916, %v1827, %v1823
        %v1929 = vsel %vm1918, %v1831, %v1928
        %v1930 = vsel %vm1920, %v1835, %v1929
        %v1931 = vsel %vm1922, %v1839, %v1930
        %v1932 = vsel %vm1924, %v1843, %v1931
        %v1933 = vsel %vm1926, %v1847, %v1932
        %v1934 = vsel %vm1916, %v1859, %v1855
        %v1935 = vsel %vm1918, %v1863, %v1934
        %v1936 = vsel %vm1920, %v1867, %v1935
        %v1937 = vsel %vm1922, %v1871, %v1936
        %v1938 = vsel %vm1924, %v1875, %v1937
        %v1939 = vsel %vm1926, %v1879, %v1938
        %v1940 = vsel %vm1916, %v1891, %v1887
        %v1941 = vsel %vm1918, %v1895, %v1940
        %v1942 = vsel %vm1920, %v1899, %v1941
        %v1943 = vsel %vm1922, %v1903, %v1942
        %v1944 = vsel %vm1924, %v1907, %v1943
        %v1945 = vsel %vm1926, %v1911, %v1944
        %v1946 = vpack.c.b16 %v1819, %v1927
        %v1947 = vpack.c.b16 %v1851, %v1933
        %v1948 = vpack.c.b16 %v1883, %v1939
        %v1949 = vpack.c.b16 %v1915, %v1945
        %vm1954 = vcmask 1040384
        %vm1955 = vsmask.f32 256
        %vm1956 = vmand %vm1954, %vm1955
        %v1957 = vsel %vm1956, 0, %v1946
        %v1958 = vsel %vm1956, 0, %v1947
        %v1959 = vsel %vm1956, 0, %v1948
        %v1960 = vsel %vm1956, 0, %v1949
        %vm1961 = vcmask 1044480
        %vm1962 = vsmask.f32 4352
        %vm1963 = vmand %vm1961, %vm1962
        %v1964 = vsel %vm1963, %v1957, 0
        %v1965 = vsel %vm1963, %v1958, 0
        %v1966 = vsel %vm1963, %v1959, 0
        %v1967 = vsel %vm1963, %v1960, 0
        %1972 = vrot.lane.b32.xlu0 %v1964, 1
        %v1973 = vpop.permute.xlu0 %1972
        %1974 = vrot.lane.b32.xlu0 %v1965, 1
        %v1975 = vpop.permute.xlu0 %1974
        %1976 = vrot.lane.b32.xlu0 %v1966, 1
        %v1977 = vpop.permute.xlu0 %1976
        %1978 = vrot.lane.b32.xlu0 %v1967, 1
        %v1979 = vpop.permute.xlu0 %1978
        %vm1980 = vcmask 7168
        %v1983 = vsel %vm1980, 0, %v1973
        %v1985 = vsel %vm1980, 0, %v1975
        %v1987 = vsel %vm1980, 0, %v1977
        %v1989 = vsel %vm1980, 0, %v1979
        %vm1990 = vcmask 72704
        %v1991 = vsel %vm1990, %v1983, 0
        %v1993 = vsel %vm1990, %v1985, 0
        %v1995 = vsel %vm1990, %v1987, 0
        %v1997 = vsel %vm1990, %v1989, 0
        %2003 = vrot.lane.b32.xlu0 %v1991, 127
        %v2004 = vpop.permute.xlu0 %2003
        %2005 = vrot.lane.b32.xlu0 %v1993, 127
        %v2006 = vpop.permute.xlu0 %2005
        %2007 = vrot.lane.b32.xlu0 %v1995, 127
        %v2008 = vpop.permute.xlu0 %2007
        %2009 = vrot.lane.b32.xlu0 %v1997, 127
        %v2010 = vpop.permute.xlu0 %2009
        %2015 = vrot.lane.b32.xlu0 %v1991, 126
        %v2016 = vpop.permute.xlu0 %2015
        %2017 = vrot.lane.b32.xlu0 %v1993, 126
        %v2018 = vpop.permute.xlu0 %2017
        %2019 = vrot.lane.b32.xlu0 %v1995, 126
        %v2020 = vpop.permute.xlu0 %2019
        %2021 = vrot.lane.b32.xlu0 %v1997, 126
        %v2022 = vpop.permute.xlu0 %2021
        %v2027 = vshrl.u32 %v1991, 16
        %v2029 = vshll.u32 %v1991, 16
        %v2031 = vrot.slane %v2029, 1
        %v2032 = vor.u32 %v2027, %v2031
        %v2033 = vshrl.u32 %v1993, 16
        %v2035 = vshll.u32 %v1993, 16
        %v2037 = vrot.slane %v2035, 1
        %v2038 = vor.u32 %v2033, %v2037
        %v2039 = vshrl.u32 %v1995, 16
        %v2041 = vshll.u32 %v1995, 16
        %v2043 = vrot.slane %v2041, 1
        %v2044 = vor.u32 %v2039, %v2043
        %v2045 = vshrl.u32 %v1997, 16
        %v2047 = vshll.u32 %v1997, 16
        %v2049 = vrot.slane %v2047, 1
        %v2050 = vor.u32 %v2045, %v2049
        %2055 = vrot.lane.b32.xlu0 %v2032, 127
        %v2056 = vpop.permute.xlu0 %2055
        %2057 = vrot.lane.b32.xlu0 %v2038, 127
        %v2058 = vpop.permute.xlu0 %2057
        %2059 = vrot.lane.b32.xlu0 %v2044, 127
        %v2060 = vpop.permute.xlu0 %2059
        %2061 = vrot.lane.b32.xlu0 %v2050, 127
        %v2062 = vpop.permute.xlu0 %2061
        %2067 = vrot.lane.b32.xlu0 %v2032, 126
        %v2068 = vpop.permute.xlu0 %2067
        %2069 = vrot.lane.b32.xlu0 %v2038, 126
        %v2070 = vpop.permute.xlu0 %2069
        %2071 = vrot.lane.b32.xlu0 %v2044, 126
        %v2072 = vpop.permute.xlu0 %2071
        %2073 = vrot.lane.b32.xlu0 %v2050, 126
        %v2074 = vpop.permute.xlu0 %2073
        %v2079 = vrot.slane %v1991, 1
        %v2080 = vrot.slane %v1993, 1
        %v2081 = vrot.slane %v1995, 1
        %v2082 = vrot.slane %v1997, 1
        %2087 = vrot.lane.b32.xlu0 %v2079, 127
        %v2088 = vpop.permute.xlu0 %2087
        %2089 = vrot.lane.b32.xlu0 %v2080, 127
        %v2090 = vpop.permute.xlu0 %2089
        %2091 = vrot.lane.b32.xlu0 %v2081, 127
        %v2092 = vpop.permute.xlu0 %2091
        %2093 = vrot.lane.b32.xlu0 %v2082, 127
        %v2094 = vpop.permute.xlu0 %2093
        %2099 = vrot.lane.b32.xlu0 %v2079, 126
        %v2100 = vpop.permute.xlu0 %2099
        %2101 = vrot.lane.b32.xlu0 %v2080, 126
        %v2102 = vpop.permute.xlu0 %2101
        %2103 = vrot.lane.b32.xlu0 %v2081, 126
        %v2104 = vpop.permute.xlu0 %2103
        %2105 = vrot.lane.b32.xlu0 %v2082, 126
        %v2106 = vpop.permute.xlu0 %2105
        %v2107 = vcombine.low %v1991, %v2004
        %v2109 = vunpack.c.l.s4 1983009808
        %v2110 = vunpack.c.0.s8 %v2109
        %v2111 = vlaneseq
        %v2112 = vshrl.u32 %v2111, 7
        %v2113 = vsub.s32 %v2110, %v2112
        %v2114 = vrot.slane %v2107, %v2113
        %v2115 = vcombine.low %v1995, %v2008
        %v2117 = vunpack.c.l.s4 1983009808
        %v2118 = vunpack.c.0.s8 %v2117
        %v2119 = vlaneseq
        %v2120 = vshrl.u32 %v2119, 7
        %v2121 = vsub.s32 %v2118, %v2120
        %v2122 = vrot.slane %v2115, %v2121
        %v2123 = vcombine.low %v2016, %v2032
        %v2125 = vunpack.c.l.s4 1983009808
        %v2126 = vunpack.c.0.s8 %v2125
        %v2127 = vlaneseq
        %v2128 = vshrl.u32 %v2127, 7
        %v2129 = vsub.s32 %v2126, %v2128
        %v2130 = vrot.slane %v2123, %v2129
        %v2131 = vcombine.low %v2020, %v2044
        %v2133 = vunpack.c.l.s4 1983009808
        %v2134 = vunpack.c.0.s8 %v2133
        %v2135 = vlaneseq
        %v2136 = vshrl.u32 %v2135, 7
        %v2137 = vsub.s32 %v2134, %v2136
        %v2138 = vrot.slane %v2131, %v2137
        %v2139 = vcombine.low %v2114, %v2122
        %v2140 = vcombine.high %v2114, %v2122
        %v2142 = vunpack.c.l.s4 1934713408
        %v2143 = vunpack.c.0.s8 %v2142
        %v2144 = vlaneseq
        %v2145 = vshrl.u32 %v2144, 7
        %v2146 = vsub.s32 %v2143, %v2145
        %v2147 = vrot.slane %v2139, %v2146
        %v2149 = vunpack.c.l.s4 1934713408
        %v2150 = vunpack.c.0.s8 %v2149
        %v2151 = vlaneseq
        %v2152 = vshrl.u32 %v2151, 7
        %v2153 = vsub.s32 %v2150, %v2152
        %v2154 = vrot.slane %v2140, %v2153
        %v2155 = vcombine.low %v2130, %v2138
        %v2156 = vcombine.high %v2130, %v2138
        %v2158 = vunpack.c.l.s4 1934713408
        %v2159 = vunpack.c.0.s8 %v2158
        %v2160 = vlaneseq
        %v2161 = vshrl.u32 %v2160, 7
        %v2162 = vsub.s32 %v2159, %v2161
        %v2163 = vrot.slane %v2155, %v2162
        %v2165 = vunpack.c.l.s4 1934713408
        %v2166 = vunpack.c.0.s8 %v2165
        %v2167 = vlaneseq
        %v2168 = vshrl.u32 %v2167, 7
        %v2169 = vsub.s32 %v2166, %v2168
        %v2170 = vrot.slane %v2156, %v2169
        %v2171 = vcombine.low %v2147, %v2163
        %v2172 = vcombine.high %v2147, %v2163
        %v2173 = vcombine.low %v2154, %v2170
        %v2174 = vcombine.high %v2154, %v2170
        %v2175 = vcombine.low %v1993, %v2006
        %v2177 = vunpack.c.l.s4 1983009808
        %v2178 = vunpack.c.0.s8 %v2177
        %v2179 = vlaneseq
        %v2180 = vshrl.u32 %v2179, 7
        %v2181 = vsub.s32 %v2178, %v2180
        %v2182 = vrot.slane %v2175, %v2181
        %v2183 = vcombine.low %v1997, %v2010
        %v2185 = vunpack.c.l.s4 1983009808
        %v2186 = vunpack.c.0.s8 %v2185
        %v2187 = vlaneseq
        %v2188 = vshrl.u32 %v2187, 7
        %v2189 = vsub.s32 %v2186, %v2188
        %v2190 = vrot.slane %v2183, %v2189
        %v2191 = vcombine.low %v2018, %v2038
        %v2193 = vunpack.c.l.s4 1983009808
        %v2194 = vunpack.c.0.s8 %v2193
        %v2195 = vlaneseq
        %v2196 = vshrl.u32 %v2195, 7
        %v2197 = vsub.s32 %v2194, %v2196
        %v2198 = vrot.slane %v2191, %v2197
        %v2199 = vcombine.low %v2022, %v2050
        %v2201 = vunpack.c.l.s4 1983009808
        %v2202 = vunpack.c.0.s8 %v2201
        %v2203 = vlaneseq
        %v2204 = vshrl.u32 %v2203, 7
        %v2205 = vsub.s32 %v2202, %v2204
        %v2206 = vrot.slane %v2199, %v2205
        %v2207 = vcombine.low %v2182, %v2190
        %v2208 = vcombine.high %v2182, %v2190
        %v2210 = vunpack.c.l.s4 1934713408
        %v2211 = vunpack.c.0.s8 %v2210
        %v2212 = vlaneseq
        %v2213 = vshrl.u32 %v2212, 7
        %v2214 = vsub.s32 %v2211, %v2213
        %v2215 = vrot.slane %v2207, %v2214
        %v2217 = vunpack.c.l.s4 1934713408
        %v2218 = vunpack.c.0.s8 %v2217
        %v2219 = vlaneseq
        %v2220 = vshrl.u32 %v2219, 7
        %v2221 = vsub.s32 %v2218, %v2220
        %v2222 = vrot.slane %v2208, %v2221
        %v2223 = vcombine.low %v2198, %v2206
        %v2224 = vcombine.high %v2198, %v2206
        %v2226 = vunpack.c.l.s4 1934713408
        %v2227 = vunpack.c.0.s8 %v2226
        %v2228 = vlaneseq
        %v2229 = vshrl.u32 %v2228, 7
        %v2230 = vsub.s32 %v2227, %v2229
        %v2231 = vrot.slane %v2223, %v2230
        %v2233 = vunpack.c.l.s4 1934713408
        %v2234 = vunpack.c.0.s8 %v2233
        %v2235 = vlaneseq
        %v2236 = vshrl.u32 %v2235, 7
        %v2237 = vsub.s32 %v2234, %v2236
        %v2238 = vrot.slane %v2224, %v2237
        %v2239 = vcombine.low %v2215, %v2231
        %v2240 = vcombine.high %v2215, %v2231
        %v2241 = vcombine.low %v2222, %v2238
        %v2242 = vcombine.high %v2222, %v2238
        %v2243 = vcombine.low %v2056, %v2068
        %v2245 = vunpack.c.l.s4 1983009808
        %v2246 = vunpack.c.0.s8 %v2245
        %v2247 = vlaneseq
        %v2248 = vshrl.u32 %v2247, 7
        %v2249 = vsub.s32 %v2246, %v2248
        %v2250 = vrot.slane %v2243, %v2249
        %v2251 = vcombine.low %v2060, %v2072
        %v2253 = vunpack.c.l.s4 1983009808
        %v2254 = vunpack.c.0.s8 %v2253
        %v2255 = vlaneseq
        %v2256 = vshrl.u32 %v2255, 7
        %v2257 = vsub.s32 %v2254, %v2256
        %v2258 = vrot.slane %v2251, %v2257
        %v2259 = vcombine.low %v2079, %v2088
        %v2261 = vunpack.c.l.s4 1983009808
        %v2262 = vunpack.c.0.s8 %v2261
        %v2263 = vlaneseq
        %v2264 = vshrl.u32 %v2263, 7
        %v2265 = vsub.s32 %v2262, %v2264
        %v2266 = vrot.slane %v2259, %v2265
        %v2267 = vcombine.low %v2081, %v2092
        %v2269 = vunpack.c.l.s4 1983009808
        %v2270 = vunpack.c.0.s8 %v2269
        %v2271 = vlaneseq
        %v2272 = vshrl.u32 %v2271, 7
        %v2273 = vsub.s32 %v2270, %v2272
        %v2274 = vrot.slane %v2267, %v2273
        %v2275 = vcombine.low %v2250, %v2258
        %v2276 = vcombine.high %v2250, %v2258
        %v2278 = vunpack.c.l.s4 1934713408
        %v2279 = vunpack.c.0.s8 %v2278
        %v2280 = vlaneseq
        %v2281 = vshrl.u32 %v2280, 7
        %v2282 = vsub.s32 %v2279, %v2281
        %v2283 = vrot.slane %v2275, %v2282
        %v2285 = vunpack.c.l.s4 1934713408
        %v2286 = vunpack.c.0.s8 %v2285
        %v2287 = vlaneseq
        %v2288 = vshrl.u32 %v2287, 7
        %v2289 = vsub.s32 %v2286, %v2288
        %v2290 = vrot.slane %v2276, %v2289
        %v2291 = vcombine.low %v2266, %v2274
        %v2292 = vcombine.high %v2266, %v2274
        %v2294 = vunpack.c.l.s4 1934713408
        %v2295 = vunpack.c.0.s8 %v2294
        %v2296 = vlaneseq
        %v2297 = vshrl.u32 %v2296, 7
        %v2298 = vsub.s32 %v2295, %v2297
        %v2299 = vrot.slane %v2291, %v2298
        %v2301 = vunpack.c.l.s4 1934713408
        %v2302 = vunpack.c.0.s8 %v2301
        %v2303 = vlaneseq
        %v2304 = vshrl.u32 %v2303, 7
        %v2305 = vsub.s32 %v2302, %v2304
        %v2306 = vrot.slane %v2292, %v2305
        %v2307 = vcombine.low %v2283, %v2299
        %v2308 = vcombine.high %v2283, %v2299
        %v2309 = vcombine.low %v2290, %v2306
        %v2310 = vcombine.high %v2290, %v2306
        %v2311 = vcombine.low %v2058, %v2070
        %v2313 = vunpack.c.l.s4 1983009808
        %v2314 = vunpack.c.0.s8 %v2313
        %v2315 = vlaneseq
        %v2316 = vshrl.u32 %v2315, 7
        %v2317 = vsub.s32 %v2314, %v2316
        %v2318 = vrot.slane %v2311, %v2317
        %v2319 = vcombine.low %v2062, %v2074
        %v2321 = vunpack.c.l.s4 1983009808
        %v2322 = vunpack.c.0.s8 %v2321
        %v2323 = vlaneseq
        %v2324 = vshrl.u32 %v2323, 7
        %v2325 = vsub.s32 %v2322, %v2324
        %v2326 = vrot.slane %v2319, %v2325
        %v2327 = vcombine.low %v2080, %v2090
        %v2329 = vunpack.c.l.s4 1983009808
        %v2330 = vunpack.c.0.s8 %v2329
        %v2331 = vlaneseq
        %v2332 = vshrl.u32 %v2331, 7
        %v2333 = vsub.s32 %v2330, %v2332
        %v2334 = vrot.slane %v2327, %v2333
        %v2335 = vcombine.low %v2082, %v2094
        %v2337 = vunpack.c.l.s4 1983009808
        %v2338 = vunpack.c.0.s8 %v2337
        %v2339 = vlaneseq
        %v2340 = vshrl.u32 %v2339, 7
        %v2341 = vsub.s32 %v2338, %v2340
        %v2342 = vrot.slane %v2335, %v2341
        %v2343 = vcombine.low %v2318, %v2326
        %v2344 = vcombine.high %v2318, %v2326
        %v2346 = vunpack.c.l.s4 1934713408
        %v2347 = vunpack.c.0.s8 %v2346
        %v2348 = vlaneseq
        %v2349 = vshrl.u32 %v2348, 7
        %v2350 = vsub.s32 %v2347, %v2349
        %v2351 = vrot.slane %v2343, %v2350
        %v2353 = vunpack.c.l.s4 1934713408
        %v2354 = vunpack.c.0.s8 %v2353
        %v2355 = vlaneseq
        %v2356 = vshrl.u32 %v2355, 7
        %v2357 = vsub.s32 %v2354, %v2356
        %v2358 = vrot.slane %v2344, %v2357
        %v2359 = vcombine.low %v2334, %v2342
        %v2360 = vcombine.high %v2334, %v2342
        %v2362 = vunpack.c.l.s4 1934713408
        %v2363 = vunpack.c.0.s8 %v2362
        %v2364 = vlaneseq
        %v2365 = vshrl.u32 %v2364, 7
        %v2366 = vsub.s32 %v2363, %v2365
        %v2367 = vrot.slane %v2359, %v2366
        %v2369 = vunpack.c.l.s4 1934713408
        %v2370 = vunpack.c.0.s8 %v2369
        %v2371 = vlaneseq
        %v2372 = vshrl.u32 %v2371, 7
        %v2373 = vsub.s32 %v2370, %v2372
        %v2374 = vrot.slane %v2360, %v2373
        %v2375 = vcombine.low %v2351, %v2367
        %v2376 = vcombine.high %v2351, %v2367
        %v2377 = vcombine.low %v2358, %v2374
        %v2378 = vcombine.high %v2358, %v2374
        %v2381 = vunpack.c.l.s4 1983009808
        %v2382 = vunpack.c.0.s8 %v2381
        %v2383 = vlaneseq
        %v2384 = vshrl.u32 %v2383, 7
        %v2385 = vsub.s32 %v2382, %v2384
        %v2386 = vrot.slane %v2100, %v2385
        %v2389 = vunpack.c.l.s4 1983009808
        %v2390 = vunpack.c.0.s8 %v2389
        %v2391 = vlaneseq
        %v2392 = vshrl.u32 %v2391, 7
        %v2393 = vsub.s32 %v2390, %v2392
        %v2394 = vrot.slane %v2104, %v2393
        %v2395 = vcombine.low %v2386, %v2394
        %v2396 = vcombine.high %v2386, %v2394
        %v2398 = vunpack.c.l.s4 1934713408
        %v2399 = vunpack.c.0.s8 %v2398
        %v2400 = vlaneseq
        %v2401 = vshrl.u32 %v2400, 7
        %v2402 = vsub.s32 %v2399, %v2401
        %v2403 = vrot.slane %v2395, %v2402
        %v2405 = vunpack.c.l.s4 1934713408
        %v2406 = vunpack.c.0.s8 %v2405
        %v2407 = vlaneseq
        %v2408 = vshrl.u32 %v2407, 7
        %v2409 = vsub.s32 %v2406, %v2408
        %v2410 = vrot.slane %v2396, %v2409
        %v2411 = vcombine.high %v2403, 0
        %v2412 = vcombine.high %v2410, 0
        %v2415 = vunpack.c.l.s4 1983009808
        %v2416 = vunpack.c.0.s8 %v2415
        %v2417 = vlaneseq
        %v2418 = vshrl.u32 %v2417, 7
        %v2419 = vsub.s32 %v2416, %v2418
        %v2420 = vrot.slane %v2102, %v2419
        %v2423 = vunpack.c.l.s4 1983009808
        %v2424 = vunpack.c.0.s8 %v2423
        %v2425 = vlaneseq
        %v2426 = vshrl.u32 %v2425, 7
        %v2427 = vsub.s32 %v2424, %v2426
        %v2428 = vrot.slane %v2106, %v2427
        %v2429 = vcombine.low %v2420, %v2428
        %v2430 = vcombine.high %v2420, %v2428
        %v2432 = vunpack.c.l.s4 1934713408
        %v2433 = vunpack.c.0.s8 %v2432
        %v2434 = vlaneseq
        %v2435 = vshrl.u32 %v2434, 7
        %v2436 = vsub.s32 %v2433, %v2435
        %v2437 = vrot.slane %v2429, %v2436
        %v2439 = vunpack.c.l.s4 1934713408
        %v2440 = vunpack.c.0.s8 %v2439
        %v2441 = vlaneseq
        %v2442 = vshrl.u32 %v2441, 7
        %v2443 = vsub.s32 %v2440, %v2442
        %v2444 = vrot.slane %v2430, %v2443
        %v2445 = vcombine.high %v2437, 0
        %v2446 = vcombine.high %v2444, 0
        %v2449 = vpack.i.b16 %v2239, %v2171
        %v2450 = vshrl.u32 %v2171, 16
        %v2451 = vshrl.u32 %v2239, 16
        %v2452 = vpack.i.b16 %v2451, %v2450
        %v2455 = vpack.i.b16 %v2240, %v2172
        %v2456 = vshrl.u32 %v2172, 16
        %v2457 = vshrl.u32 %v2240, 16
        %v2458 = vpack.i.b16 %v2457, %v2456
        %v2461 = vpack.i.b16 %v2241, %v2173
        %v2462 = vshrl.u32 %v2173, 16
        %v2463 = vshrl.u32 %v2241, 16
        %v2464 = vpack.i.b16 %v2463, %v2462
        %v2467 = vpack.i.b16 %v2242, %v2174
        %v2468 = vshrl.u32 %v2174, 16
        %v2469 = vshrl.u32 %v2242, 16
        %v2470 = vpack.i.b16 %v2469, %v2468
        %v2473 = vpack.i.b16 %v2375, %v2307
        %v2474 = vshrl.u32 %v2307, 16
        %v2475 = vshrl.u32 %v2375, 16
        %v2476 = vpack.i.b16 %v2475, %v2474
        %v2479 = vpack.i.b16 %v2376, %v2308
        %v2480 = vshrl.u32 %v2308, 16
        %v2481 = vshrl.u32 %v2376, 16
        %v2482 = vpack.i.b16 %v2481, %v2480
        %v2485 = vpack.i.b16 %v2377, %v2309
        %v2486 = vshrl.u32 %v2309, 16
        %v2487 = vshrl.u32 %v2377, 16
        %v2488 = vpack.i.b16 %v2487, %v2486
        %v2491 = vpack.i.b16 %v2378, %v2310
        %v2492 = vshrl.u32 %v2310, 16
        %v2493 = vshrl.u32 %v2378, 16
        %v2494 = vpack.i.b16 %v2493, %v2492
        %v2497 = vpack.i.b16 %v2437, %v2403
        %v2498 = vshrl.u32 %v2403, 16
        %v2499 = vshrl.u32 %v2437, 16
        %v2500 = vpack.i.b16 %v2499, %v2498
        %v2503 = vpack.i.b16 %v2445, %v2411
        %v2504 = vshrl.u32 %v2411, 16
        %v2505 = vshrl.u32 %v2445, 16
        %v2506 = vpack.i.b16 %v2505, %v2504
        %v2509 = vpack.i.b16 %v2444, %v2410
        %v2510 = vshrl.u32 %v2410, 16
        %v2511 = vshrl.u32 %v2444, 16
        %v2512 = vpack.i.b16 %v2511, %v2510
        %v2515 = vpack.i.b16 %v2446, %v2412
        %v2516 = vshrl.u32 %v2412, 16
        %v2517 = vshrl.u32 %v2446, 16
        %v2518 = vpack.i.b16 %v2517, %v2516
        %2519 = vrot.lane.b32.xlu0 %v2452, 8
        %v2520 = vpop.permute.xlu0 %2519
        %2521 = vrot.lane.b32.xlu0 %v2476, 8
        %v2522 = vpop.permute.xlu0 %2521
        %2523 = vrot.lane.b32.xlu0 %v2500, 8
        %v2524 = vpop.permute.xlu0 %2523
        %2525 = vrot.lane.b32.xlu0 %v2455, 16
        %v2526 = vpop.permute.xlu0 %2525
        %2527 = vrot.lane.b32.xlu0 %v2479, 16
        %v2528 = vpop.permute.xlu0 %2527
        %2529 = vrot.lane.b32.xlu0 %v2503, 16
        %v2530 = vpop.permute.xlu0 %2529
        %2531 = vrot.lane.b32.xlu0 %v2458, 24
        %v2532 = vpop.permute.xlu0 %2531
        %2533 = vrot.lane.b32.xlu0 %v2482, 24
        %v2534 = vpop.permute.xlu0 %2533
        %2535 = vrot.lane.b32.xlu0 %v2506, 24
        %v2536 = vpop.permute.xlu0 %2535
        %2537 = vrot.lane.b32.xlu0 %v2461, 32
        %v2538 = vpop.permute.xlu0 %2537
        %2539 = vrot.lane.b32.xlu0 %v2485, 32
        %v2540 = vpop.permute.xlu0 %2539
        %2541 = vrot.lane.b32.xlu0 %v2509, 32
        %v2542 = vpop.permute.xlu0 %2541
        %2543 = vrot.lane.b32.xlu0 %v2464, 40
        %v2544 = vpop.permute.xlu0 %2543
        %2545 = vrot.lane.b32.xlu0 %v2488, 40
        %v2546 = vpop.permute.xlu0 %2545
        %2547 = vrot.lane.b32.xlu0 %v2512, 40
        %v2548 = vpop.permute.xlu0 %2547
        %2549 = vrot.lane.b32.xlu0 %v2467, 48
        %v2550 = vpop.permute.xlu0 %2549
        %2551 = vrot.lane.b32.xlu0 %v2491, 48
        %v2552 = vpop.permute.xlu0 %2551
        %2553 = vrot.lane.b32.xlu0 %v2515, 48
        %v2554 = vpop.permute.xlu0 %2553
        %2555 = vrot.lane.b32.xlu0 %v2470, 56
        %v2556 = vpop.permute.xlu0 %2555
        %2557 = vrot.lane.b32.xlu0 %v2494, 56
        %v2558 = vpop.permute.xlu0 %2557
        %2559 = vrot.lane.b32.xlu0 %v2518, 56
        %v2560 = vpop.permute.xlu0 %2559
        %vm2561 = vcmask 64512
        %v2564 = vsel %vm2561, %v2449, %v2520
        %v2567 = vsel %vm2561, %v2473, %v2522
        %v2570 = vsel %vm2561, %v2497, %v2524
        %vm2571 = vcmask 130048
        %v2573 = vsel %vm2571, %v2564, %v2526
        %v2575 = vsel %vm2571, %v2567, %v2528
        %v2577 = vsel %vm2571, %v2570, %v2530
        %vm2578 = vcmask 195584
        %v2580 = vsel %vm2578, %v2573, %v2532
        %v2582 = vsel %vm2578, %v2575, %v2534
        %v2584 = vsel %vm2578, %v2577, %v2536
        %vm2585 = vcmask 261120
        %v2587 = vsel %vm2585, %v2580, %v2538
        %v2589 = vsel %vm2585, %v2582, %v2540
        %v2591 = vsel %vm2585, %v2584, %v2542
        %vm2592 = vcmask 326656
        %v2594 = vsel %vm2592, %v2587, %v2544
        %v2596 = vsel %vm2592, %v2589, %v2546
        %v2598 = vsel %vm2592, %v2591, %v2548
        %vm2599 = vcmask 392192
        %v2601 = vsel %vm2599, %v2594, %v2550
        %v2603 = vsel %vm2599, %v2596, %v2552
        %v2605 = vsel %vm2599, %v2598, %v2554
        %vm2606 = vcmask 457728
        %v2608 = vsel %vm2606, %v2601, %v2556
        %v2611 = vsel %vm2606, %v2603, %v2558
        %v2614 = vsel %vm2606, %v2605, %v2560
        %vm2615 = vcmask 293888
        %v2617 = vsel %vm2615, %v231, 0
        %vm2619 = vcmask 1041408
        %v2620 = vsel %vm2619, %v2614, 0
        %2622 = vmatprep.subr.bf16.mxu0 0
        %2623 = vmatpush1.bf16.msra.mxu0 0
        %2624 = vmatprep.subr.bf16.mxu0 0
        %2625 = vmatpush1.bf16.msra.mxu0 0
        %2626 = vmatprep.subr.bf16.mxu0 0
        %2627 = vmatpush1.bf16.msra.mxu0 0
        %2628 = vmatprep.subr.bf16.mxu0 0
        %2629 = vmatpush1.bf16.msra.mxu0 0
        %2630 = vmatprep.subr.bf16.mxu0 0
        %2631 = vmatpush1.bf16.msra.mxu0 0
        %2632 = vmatprep.subr.bf16.mxu0 0
        %2633 = vmatpush1.bf16.msra.mxu0 %v2620
        %2634 = vmatprep.subr.bf16.mxu0 0
        %2635 = vmatpush1.bf16.msra.mxu0 %v2611
        %2636 = vmatprep.subr.bf16.mxu0 0
        %2637 = vmatpush1.bf16.msra.mxu0 %v2608
        %2638 = vmatprep.subr.bf16.mxu0 0
        %2639 = vmatpush2.bf16.msra.mxu0 0
        %2640 = vmatprep.subr.bf16.mxu0 0
        %2641 = vmatpush2.bf16.msra.mxu0 0
        %2642 = vmatprep.subr.bf16.mxu0 0
        %2643 = vmatpush2.bf16.msra.mxu0 0
        %2644 = vmatprep.subr.bf16.mxu0 0
        %2645 = vmatpush2.bf16.msra.mxu0 0
        %2646 = vmatprep.subr.bf16.mxu0 0
        %2647 = vmatpush2.bf16.msra.mxu0 0
        %2648 = vmatprep.subr.bf16.mxu0 0
        %2649 = vmatpush2.bf16.msra.mxu0 0
        %2650 = vmatprep.subr.bf16.mxu0 0
        %2651 = vmatpush2.bf16.msra.mxu0 0
        %2652 = vmatprep.subr.bf16.mxu0 0
        %2653 = vmatpush2.bf16.msra.mxu0 0
        %2654 = vmatprep.mubr.bf16.mxu0 0
        %2655 = vmatmul.mubr.bf16.gmra.mxu0 %v2617
        %v2656 = vpop.f32.mrf.mxu0
        %v2657 = vadd.f32 0.0, %v2656
        %v2658 = vpop.f32.mrf.mxu0
        %v2659 = vpop.f32.mrf.mxu0
        %v2660 = vpop.f32.mrf.mxu0
        %2661 = vdwg.mxu0
        %2663 = vrot.lane.b32.xlu0 %v2657, 120
        %v2664 = vpop.permute.xlu0 %2663
        %2666 = vrot.lane.b32.xlu0 %v2657, 112
        %v2667 = vpop.permute.xlu0 %2666
        %2669 = vrot.lane.b32.xlu0 %v2657, 104
        %v2670 = vpop.permute.xlu0 %2669
        %2672 = vrot.lane.b32.xlu0 %v2657, 96
        %v2673 = vpop.permute.xlu0 %2672
        %2675 = vrot.lane.b32.xlu0 %v2657, 88
        %v2676 = vpop.permute.xlu0 %2675
        %2678 = vrot.lane.b32.xlu0 %v2657, 80
        %v2679 = vpop.permute.xlu0 %2678
        %2681 = vrot.lane.b32.xlu0 %v2657, 72
        %v2682 = vpop.permute.xlu0 %2681
        %v2684 = vcombine.low %v2657, %v2667
        %v2685 = vcombine.high %v2657, %v2667
        %v2687 = vunpack.c.l.s4 1983009808
        %v2688 = vunpack.c.0.s8 %v2687
        %v2689 = vlaneseq
        %v2690 = vshrl.u32 %v2689, 7
        %v2691 = vsub.s32 %v2688, %v2690
        %v2692 = vrot.slane %v2684, %v2691
        %v2694 = vunpack.c.l.s4 1983009808
        %v2695 = vunpack.c.0.s8 %v2694
        %v2696 = vlaneseq
        %v2697 = vshrl.u32 %v2696, 7
        %v2698 = vsub.s32 %v2695, %v2697
        %v2699 = vrot.slane %v2685, %v2698
        %v2700 = vcombine.low %v2664, %v2670
        %v2701 = vcombine.high %v2664, %v2670
        %v2703 = vunpack.c.l.s4 1983009808
        %v2704 = vunpack.c.0.s8 %v2703
        %v2705 = vlaneseq
        %v2706 = vshrl.u32 %v2705, 7
        %v2707 = vsub.s32 %v2704, %v2706
        %v2708 = vrot.slane %v2700, %v2707
        %v2710 = vunpack.c.l.s4 1983009808
        %v2711 = vunpack.c.0.s8 %v2710
        %v2712 = vlaneseq
        %v2713 = vshrl.u32 %v2712, 7
        %v2714 = vsub.s32 %v2711, %v2713
        %v2715 = vrot.slane %v2701, %v2714
        %v2716 = vcombine.low %v2673, %v2679
        %v2717 = vcombine.high %v2673, %v2679
        %v2719 = vunpack.c.l.s4 1983009808
        %v2720 = vunpack.c.0.s8 %v2719
        %v2721 = vlaneseq
        %v2722 = vshrl.u32 %v2721, 7
        %v2723 = vsub.s32 %v2720, %v2722
        %v2724 = vrot.slane %v2716, %v2723
        %v2726 = vunpack.c.l.s4 1983009808
        %v2727 = vunpack.c.0.s8 %v2726
        %v2728 = vlaneseq
        %v2729 = vshrl.u32 %v2728, 7
        %v2730 = vsub.s32 %v2727, %v2729
        %v2731 = vrot.slane %v2717, %v2730
        %v2732 = vcombine.low %v2676, %v2682
        %v2733 = vcombine.high %v2676, %v2682
        %v2735 = vunpack.c.l.s4 1983009808
        %v2736 = vunpack.c.0.s8 %v2735
        %v2737 = vlaneseq
        %v2738 = vshrl.u32 %v2737, 7
        %v2739 = vsub.s32 %v2736, %v2738
        %v2740 = vrot.slane %v2732, %v2739
        %v2742 = vunpack.c.l.s4 1983009808
        %v2743 = vunpack.c.0.s8 %v2742
        %v2744 = vlaneseq
        %v2745 = vshrl.u32 %v2744, 7
        %v2746 = vsub.s32 %v2743, %v2745
        %v2747 = vrot.slane %v2733, %v2746
        %v2748 = vcombine.low %v2692, %v2708
        %v2749 = vcombine.high %v2692, %v2708
        %v2751 = vunpack.c.l.s4 1934713408
        %v2752 = vunpack.c.0.s8 %v2751
        %v2753 = vlaneseq
        %v2754 = vshrl.u32 %v2753, 7
        %v2755 = vsub.s32 %v2752, %v2754
        %v2756 = vrot.slane %v2748, %v2755
        %v2758 = vunpack.c.l.s4 1934713408
        %v2759 = vunpack.c.0.s8 %v2758
        %v2760 = vlaneseq
        %v2761 = vshrl.u32 %v2760, 7
        %v2762 = vsub.s32 %v2759, %v2761
        %v2763 = vrot.slane %v2749, %v2762
        %v2764 = vcombine.low %v2699, %v2715
        %v2765 = vcombine.high %v2699, %v2715
        %v2767 = vunpack.c.l.s4 1934713408
        %v2768 = vunpack.c.0.s8 %v2767
        %v2769 = vlaneseq
        %v2770 = vshrl.u32 %v2769, 7
        %v2771 = vsub.s32 %v2768, %v2770
        %v2772 = vrot.slane %v2764, %v2771
        %v2774 = vunpack.c.l.s4 1934713408
        %v2775 = vunpack.c.0.s8 %v2774
        %v2776 = vlaneseq
        %v2777 = vshrl.u32 %v2776, 7
        %v2778 = vsub.s32 %v2775, %v2777
        %v2779 = vrot.slane %v2765, %v2778
        %v2780 = vcombine.low %v2724, %v2740
        %v2781 = vcombine.high %v2724, %v2740
        %v2783 = vunpack.c.l.s4 1934713408
        %v2784 = vunpack.c.0.s8 %v2783
        %v2785 = vlaneseq
        %v2786 = vshrl.u32 %v2785, 7
        %v2787 = vsub.s32 %v2784, %v2786
        %v2788 = vrot.slane %v2780, %v2787
        %v2790 = vunpack.c.l.s4 1934713408
        %v2791 = vunpack.c.0.s8 %v2790
        %v2792 = vlaneseq
        %v2793 = vshrl.u32 %v2792, 7
        %v2794 = vsub.s32 %v2791, %v2793
        %v2795 = vrot.slane %v2781, %v2794
        %v2796 = vcombine.low %v2731, %v2747
        %v2797 = vcombine.high %v2731, %v2747
        %v2799 = vunpack.c.l.s4 1934713408
        %v2800 = vunpack.c.0.s8 %v2799
        %v2801 = vlaneseq
        %v2802 = vshrl.u32 %v2801, 7
        %v2803 = vsub.s32 %v2800, %v2802
        %v2804 = vrot.slane %v2796, %v2803
        %v2806 = vunpack.c.l.s4 1934713408
        %v2807 = vunpack.c.0.s8 %v2806
        %v2808 = vlaneseq
        %v2809 = vshrl.u32 %v2808, 7
        %v2810 = vsub.s32 %v2807, %v2809
        %v2811 = vrot.slane %v2797, %v2810
        %v2812 = vcombine.low %v2756, %v2788
        %v2813 = vcombine.high %v2756, %v2788
        %v2814 = vcombine.low %v2763, %v2795
        %v2815 = vcombine.high %v2763, %v2795
        %v2816 = vcombine.low %v2772, %v2804
        %v2817 = vcombine.high %v2772, %v2804
        %v2818 = vcombine.low %v2779, %v2811
        %v2819 = vcombine.high %v2779, %v2811
        %v2820 = vsel %vm2561, %v2812, 0.0
        %2821 = vadd.xlane.f32.xlu0 %v2820
        %v2822 = vpop.xlane.xlu0 %2821
        %v2823 = vrot.slane %v2822, 4
        %v2824 = vadd.f32 %v2822, %v2823
        %v2825 = vrot.slane %v2824, 2
        %v2826 = vadd.f32 %v2824, %v2825
        %v2827 = vrot.slane %v2826, 1
        %v2828 = vadd.f32 %v2826, %v2827
        %v2829 = vsel %vm2561, %v2813, 0.0
        %2830 = vadd.xlane.f32.xlu0 %v2829
        %v2831 = vpop.xlane.xlu0 %2830
        %v2832 = vrot.slane %v2831, 4
        %v2833 = vadd.f32 %v2831, %v2832
        %v2834 = vrot.slane %v2833, 2
        %v2835 = vadd.f32 %v2833, %v2834
        %v2836 = vrot.slane %v2835, 1
        %v2837 = vadd.f32 %v2835, %v2836
        %v2838 = vsel %vm2561, %v2814, 0.0
        %2839 = vadd.xlane.f32.xlu0 %v2838
        %v2840 = vpop.xlane.xlu0 %2839
        %v2841 = vrot.slane %v2840, 4
        %v2842 = vadd.f32 %v2840, %v2841
        %v2843 = vrot.slane %v2842, 2
        %v2844 = vadd.f32 %v2842, %v2843
        %v2845 = vrot.slane %v2844, 1
        %v2846 = vadd.f32 %v2844, %v2845
        %v2847 = vsel %vm2561, %v2815, 0.0
        %2848 = vadd.xlane.f32.xlu0 %v2847
        %v2849 = vpop.xlane.xlu0 %2848
        %v2850 = vrot.slane %v2849, 4
        %v2851 = vadd.f32 %v2849, %v2850
        %v2852 = vrot.slane %v2851, 2
        %v2853 = vadd.f32 %v2851, %v2852
        %v2854 = vrot.slane %v2853, 1
        %v2855 = vadd.f32 %v2853, %v2854
        %v2856 = vsel %vm2561, %v2816, 0.0
        %2857 = vadd.xlane.f32.xlu0 %v2856
        %v2858 = vpop.xlane.xlu0 %2857
        %v2859 = vrot.slane %v2858, 4
        %v2860 = vadd.f32 %v2858, %v2859
        %v2861 = vrot.slane %v2860, 2
        %v2862 = vadd.f32 %v2860, %v2861
        %v2863 = vrot.slane %v2862, 1
        %v2864 = vadd.f32 %v2862, %v2863
        %v2865 = vsel %vm2561, %v2817, 0.0
        %2866 = vadd.xlane.f32.xlu0 %v2865
        %v2867 = vpop.xlane.xlu0 %2866
        %v2868 = vrot.slane %v2867, 4
        %v2869 = vadd.f32 %v2867, %v2868
        %v2870 = vrot.slane %v2869, 2
        %v2871 = vadd.f32 %v2869, %v2870
        %v2872 = vrot.slane %v2871, 1
        %v2873 = vadd.f32 %v2871, %v2872
        %v2874 = vsel %vm2561, %v2818, 0.0
        %2875 = vadd.xlane.f32.xlu0 %v2874
        %v2876 = vpop.xlane.xlu0 %2875
        %v2877 = vrot.slane %v2876, 4
        %v2878 = vadd.f32 %v2876, %v2877
        %v2879 = vrot.slane %v2878, 2
        %v2880 = vadd.f32 %v2878, %v2879
        %v2881 = vrot.slane %v2880, 1
        %v2882 = vadd.f32 %v2880, %v2881
        %v2883 = vsel %vm2561, %v2819, 0.0
        %2884 = vadd.xlane.f32.xlu0 %v2883
        %v2885 = vpop.xlane.xlu0 %2884
        %v2886 = vrot.slane %v2885, 4
        %v2887 = vadd.f32 %v2885, %v2886
        %v2888 = vrot.slane %v2887, 2
        %v2889 = vadd.f32 %v2887, %v2888
        %v2890 = vrot.slane %v2889, 1
        %v2891 = vadd.f32 %v2889, %v2890
        %v2892 = vmul.f32 %v2812, %v2812
        %v2893 = vmul.f32 %v2813, %v2813
        %v2894 = vmul.f32 %v2814, %v2814
        %v2895 = vmul.f32 %v2815, %v2815
        %v2896 = vmul.f32 %v2816, %v2816
        %v2897 = vmul.f32 %v2817, %v2817
        %v2898 = vmul.f32 %v2818, %v2818
        %v2899 = vmul.f32 %v2819, %v2819
        %v2900 = vsel %vm2561, %v2892, 0.0
        %2901 = vadd.xlane.f32.xlu0 %v2900
        %v2902 = vpop.xlane.xlu0 %2901
        %v2903 = vrot.slane %v2902, 4
        %v2904 = vadd.f32 %v2902, %v2903
        %v2905 = vrot.slane %v2904, 2
        %v2906 = vadd.f32 %v2904, %v2905
        %v2907 = vrot.slane %v2906, 1
        %v2908 = vadd.f32 %v2906, %v2907
        %v2909 = vsel %vm2561, %v2893, 0.0
        %2910 = vadd.xlane.f32.xlu0 %v2909
        %v2911 = vpop.xlane.xlu0 %2910
        %v2912 = vrot.slane %v2911, 4
        %v2913 = vadd.f32 %v2911, %v2912
        %v2914 = vrot.slane %v2913, 2
        %v2915 = vadd.f32 %v2913, %v2914
        %v2916 = vrot.slane %v2915, 1
        %v2917 = vadd.f32 %v2915, %v2916
        %v2918 = vsel %vm2561, %v2894, 0.0
        %2919 = vadd.xlane.f32.xlu0 %v2918
        %v2920 = vpop.xlane.xlu0 %2919
        %v2921 = vrot.slane %v2920, 4
        %v2922 = vadd.f32 %v2920, %v2921
        %v2923 = vrot.slane %v2922, 2
        %v2924 = vadd.f32 %v2922, %v2923
        %v2925 = vrot.slane %v2924, 1
        %v2926 = vadd.f32 %v2924, %v2925
        %v2927 = vsel %vm2561, %v2895, 0.0
        %2928 = vadd.xlane.f32.xlu0 %v2927
        %v2929 = vpop.xlane.xlu0 %2928
        %v2930 = vrot.slane %v2929, 4
        %v2931 = vadd.f32 %v2929, %v2930
        %v2932 = vrot.slane %v2931, 2
        %v2933 = vadd.f32 %v2931, %v2932
        %v2934 = vrot.slane %v2933, 1
        %v2935 = vadd.f32 %v2933, %v2934
        %v2936 = vsel %vm2561, %v2896, 0.0
        %2937 = vadd.xlane.f32.xlu0 %v2936
        %v2938 = vpop.xlane.xlu0 %2937
        %v2939 = vrot.slane %v2938, 4
        %v2940 = vadd.f32 %v2938, %v2939
        %v2941 = vrot.slane %v2940, 2
        %v2942 = vadd.f32 %v2940, %v2941
        %v2943 = vrot.slane %v2942, 1
        %v2944 = vadd.f32 %v2942, %v2943
        %v2945 = vsel %vm2561, %v2897, 0.0
        %2946 = vadd.xlane.f32.xlu0 %v2945
        %v2947 = vpop.xlane.xlu0 %2946
        %v2948 = vrot.slane %v2947, 4
        %v2949 = vadd.f32 %v2947, %v2948
        %v2950 = vrot.slane %v2949, 2
        %v2951 = vadd.f32 %v2949, %v2950
        %v2952 = vrot.slane %v2951, 1
        %v2953 = vadd.f32 %v2951, %v2952
        %v2954 = vsel %vm2561, %v2898, 0.0
        %2955 = vadd.xlane.f32.xlu0 %v2954
        %v2956 = vpop.xlane.xlu0 %2955
        %v2957 = vrot.slane %v2956, 4
        %v2958 = vadd.f32 %v2956, %v2957
        %v2959 = vrot.slane %v2958, 2
        %v2960 = vadd.f32 %v2958, %v2959
        %v2961 = vrot.slane %v2960, 1
        %v2962 = vadd.f32 %v2960, %v2961
        %v2963 = vsel %vm2561, %v2899, 0.0
        %2964 = vadd.xlane.f32.xlu0 %v2963
        %v2965 = vpop.xlane.xlu0 %2964
        %v2966 = vrot.slane %v2965, 4
        %v2967 = vadd.f32 %v2965, %v2966
        %v2968 = vrot.slane %v2967, 2
        %v2969 = vadd.f32 %v2967, %v2968
        %v2970 = vrot.slane %v2969, 1
        %v2971 = vadd.f32 %v2969, %v2970
        %v2972 = vmul.f32 %v2828, 0.015625
        %v2973 = vmul.f32 %v2837, 0.015625
        %v2974 = vmul.f32 %v2846, 0.015625
        %v2975 = vmul.f32 %v2855, 0.015625
        %v2976 = vmul.f32 %v2864, 0.015625
        %v2977 = vmul.f32 %v2873, 0.015625
        %v2978 = vmul.f32 %v2882, 0.015625
        %v2979 = vmul.f32 %v2891, 0.015625
        %v2980 = vmul.f32 %v2908, 0.015625
        %v2981 = vmul.f32 %v2917, 0.015625
        %v2982 = vmul.f32 %v2926, 0.015625
        %v2983 = vmul.f32 %v2935, 0.015625
        %v2984 = vmul.f32 %v2944, 0.015625
        %v2985 = vmul.f32 %v2953, 0.015625
        %v2986 = vmul.f32 %v2962, 0.015625
        %v2987 = vmul.f32 %v2971, 0.015625
        %v2988 = vmul.f32 %v2972, %v2972
        %v2989 = vmul.f32 %v2973, %v2973
        %v2990 = vmul.f32 %v2974, %v2974
        %v2991 = vmul.f32 %v2975, %v2975
        %v2992 = vmul.f32 %v2976, %v2976
        %v2993 = vmul.f32 %v2977, %v2977
        %v2994 = vmul.f32 %v2978, %v2978
        %v2995 = vmul.f32 %v2979, %v2979
        %v2996 = vsub.f32 %v2980, %v2988
        %v2997 = vsub.f32 %v2981, %v2989
        %v2998 = vsub.f32 %v2982, %v2990
        %v2999 = vsub.f32 %v2983, %v2991
        %v3000 = vsub.f32 %v2984, %v2992
        %v3001 = vsub.f32 %v2985, %v2993
        %v3002 = vsub.f32 %v2986, %v2994
        %v3003 = vsub.f32 %v2987, %v2995
        %v3004 = vmax.f32 %v2996, 0.0
        %v3005 = vmax.f32 %v2997, 0.0
        %v3006 = vmax.f32 %v2998, 0.0
        %v3007 = vmax.f32 %v2999, 0.0
        %v3008 = vmax.f32 %v3000, 0.0
        %v3009 = vmax.f32 %v3001, 0.0
        %v3010 = vmax.f32 %v3002, 0.0
        %v3011 = vmax.f32 %v3003, 0.0
        %v3012 = vsub.f32 %v2812, %v2972
        %v3013 = vsub.f32 %v2813, %v2973
        %v3014 = vsub.f32 %v2814, %v2974
        %v3015 = vsub.f32 %v2815, %v2975
        %v3016 = vsub.f32 %v2816, %v2976
        %v3017 = vsub.f32 %v2817, %v2977
        %v3018 = vsub.f32 %v2818, %v2978
        %v3019 = vsub.f32 %v2819, %v2979
        %v3020 = vadd.f32 %v3004, 1e-05
        %v3021 = vadd.f32 %v3005, 1e-05
        %v3022 = vadd.f32 %v3006, 1e-05
        %v3023 = vadd.f32 %v3007, 1e-05
        %v3024 = vadd.f32 %v3008, 1e-05
        %v3025 = vadd.f32 %v3009, 1e-05
        %v3026 = vadd.f32 %v3010, 1e-05
        %v3027 = vadd.f32 %v3011, 1e-05
        %v3028 = vrsqrt.pop %v3020
        %v3029 = vrsqrt.pop %v3021
        %v3030 = vrsqrt.pop %v3022
        %v3031 = vrsqrt.pop %v3023
        %v3032 = vrsqrt.pop %v3024
        %v3033 = vrsqrt.pop %v3025
        %v3034 = vrsqrt.pop %v3026
        %v3035 = vrsqrt.pop %v3027
        %v3036 = vmul.f32 %v3012, %v3028
        %v3037 = vmul.f32 %v3013, %v3029
        %v3038 = vmul.f32 %v3014, %v3030
        %v3039 = vmul.f32 %v3015, %v3031
        %v3040 = vmul.f32 %v3016, %v3032
        %v3041 = vmul.f32 %v3017, %v3033
        %v3042 = vmul.f32 %v3018, %v3034
        %v3043 = vmul.f32 %v3019, %v3035
        %v3044 = vmul.f32 %v3036, 0.2
        %v3045 = vmul.f32 %v3037, 0.2
        %v3046 = vmul.f32 %v3038, 0.2
        %v3047 = vmul.f32 %v3039, 0.2
        %v3048 = vmul.f32 %v3040, 0.2
        %v3049 = vmul.f32 %v3041, 0.2
        %v3050 = vmul.f32 %v3042, 0.2
        %v3051 = vmul.f32 %v3043, 0.2
        %v3052 = vmax.f32 %v3036, %v3044
        %v3053 = vmax.f32 %v3037, %v3045
        %v3054 = vmax.f32 %v3038, %v3046
        %v3055 = vmax.f32 %v3039, %v3047
        %v3056 = vmax.f32 %v3040, %v3048
        %v3057 = vmax.f32 %v3041, %v3049
        %v3058 = vmax.f32 %v3042, %v3050
        %v3059 = vmax.f32 %v3043, %v3051
        %v3060 = vpack.c.bf16 %v3052, %v3052
        %v3061 = vpack.c.bf16 %v3053, %v3053
        %v3062 = vpack.c.bf16 %v3054, %v3054
        %v3063 = vpack.c.bf16 %v3055, %v3055
        %v3064 = vpack.c.bf16 %v3056, %v3056
        %v3065 = vpack.c.bf16 %v3057, %v3057
        %v3066 = vpack.c.bf16 %v3058, %v3058
        %v3067 = vpack.c.bf16 %v3059, %v3059
        %v3069 = vshrl.u32 %v3060, 16
        %v3071 = vrot.slane %v3069, 7
        %v3072 = vshll.u32 %v3060, 16
        %v3074 = vor.u32 %v3071, %v3072
        %v3076 = vshrl.u32 %v3061, 16
        %v3078 = vrot.slane %v3076, 7
        %v3079 = vshll.u32 %v3061, 16
        %v3081 = vor.u32 %v3078, %v3079
        %v3083 = vshrl.u32 %v3062, 16
        %v3085 = vrot.slane %v3083, 7
        %v3086 = vshll.u32 %v3062, 16
        %v3088 = vor.u32 %v3085, %v3086
        %v3090 = vshrl.u32 %v3063, 16
        %v3092 = vrot.slane %v3090, 7
        %v3093 = vshll.u32 %v3063, 16
        %v3095 = vor.u32 %v3092, %v3093
        %v3097 = vshrl.u32 %v3064, 16
        %v3099 = vrot.slane %v3097, 7
        %v3100 = vshll.u32 %v3064, 16
        %v3102 = vor.u32 %v3099, %v3100
        %v3104 = vshrl.u32 %v3065, 16
        %v3106 = vrot.slane %v3104, 7
        %v3107 = vshll.u32 %v3065, 16
        %v3109 = vor.u32 %v3106, %v3107
        %v3111 = vshrl.u32 %v3066, 16
        %v3113 = vrot.slane %v3111, 7
        %v3114 = vshll.u32 %v3066, 16
        %v3116 = vor.u32 %v3113, %v3114
        %v3118 = vshrl.u32 %v3067, 16
        %v3120 = vrot.slane %v3118, 7
        %v3121 = vshll.u32 %v3067, 16
        %v3123 = vor.u32 %v3120, %v3121
        %v3132 = vsel %vm1956, 0, %v3074
        %v3133 = vsel %vm1956, 0, %v3081
        %v3134 = vsel %vm1956, 0, %v3088
        %v3135 = vsel %vm1956, 0, %v3095
        %v3136 = vsel %vm1956, 0, %v3102
        %v3137 = vsel %vm1956, 0, %v3109
        %v3138 = vsel %vm1956, 0, %v3116
        %v3139 = vsel %vm1956, 0, %v3123
        %v3140 = vsel %vm1963, %v3132, 0
        %v3141 = vsel %vm1963, %v3133, 0
        %v3142 = vsel %vm1963, %v3134, 0
        %v3143 = vsel %vm1963, %v3135, 0
        %v3144 = vsel %vm1963, %v3136, 0
        %v3145 = vsel %vm1963, %v3137, 0
        %v3146 = vsel %vm1963, %v3138, 0
        %v3147 = vsel %vm1963, %v3139, 0
        %3156 = vrot.lane.b32.xlu0 %v3140, 1
        %v3157 = vpop.permute.xlu0 %3156
        %3158 = vrot.lane.b32.xlu0 %v3141, 1
        %v3159 = vpop.permute.xlu0 %3158
        %3160 = vrot.lane.b32.xlu0 %v3142, 1
        %v3161 = vpop.permute.xlu0 %3160
        %3162 = vrot.lane.b32.xlu0 %v3143, 1
        %v3163 = vpop.permute.xlu0 %3162
        %3164 = vrot.lane.b32.xlu0 %v3144, 1
        %v3165 = vpop.permute.xlu0 %3164
        %3166 = vrot.lane.b32.xlu0 %v3145, 1
        %v3167 = vpop.permute.xlu0 %3166
        %3168 = vrot.lane.b32.xlu0 %v3146, 1
        %v3169 = vpop.permute.xlu0 %3168
        %3170 = vrot.lane.b32.xlu0 %v3147, 1
        %v3171 = vpop.permute.xlu0 %3170
        %v3173 = vsel %vm1980, 0, %v3157
        %v3175 = vsel %vm1980, 0, %v3159
        %v3177 = vsel %vm1980, 0, %v3161
        %v3179 = vsel %vm1980, 0, %v3163
        %v3181 = vsel %vm1980, 0, %v3165
        %v3183 = vsel %vm1980, 0, %v3167
        %v3185 = vsel %vm1980, 0, %v3169
        %v3187 = vsel %vm1980, 0, %v3171
        %v3188 = vsel %vm1990, %v3173, 0
        %v3190 = vsel %vm1990, %v3175, 0
        %v3192 = vsel %vm1990, %v3177, 0
        %v3194 = vsel %vm1990, %v3179, 0
        %v3196 = vsel %vm1990, %v3181, 0
        %v3198 = vsel %vm1990, %v3183, 0
        %v3200 = vsel %vm1990, %v3185, 0
        %v3202 = vsel %vm1990, %v3187, 0
        %3212 = vrot.lane.b32.xlu0 %v3188, 127
        %v3213 = vpop.permute.xlu0 %3212
        %3214 = vrot.lane.b32.xlu0 %v3190, 127
        %v3215 = vpop.permute.xlu0 %3214
        %3216 = vrot.lane.b32.xlu0 %v3192, 127
        %v3217 = vpop.permute.xlu0 %3216
        %3218 = vrot.lane.b32.xlu0 %v3194, 127
        %v3219 = vpop.permute.xlu0 %3218
        %3220 = vrot.lane.b32.xlu0 %v3196, 127
        %v3221 = vpop.permute.xlu0 %3220
        %3222 = vrot.lane.b32.xlu0 %v3198, 127
        %v3223 = vpop.permute.xlu0 %3222
        %3224 = vrot.lane.b32.xlu0 %v3200, 127
        %v3225 = vpop.permute.xlu0 %3224
        %3226 = vrot.lane.b32.xlu0 %v3202, 127
        %v3227 = vpop.permute.xlu0 %3226
        %3236 = vrot.lane.b32.xlu0 %v3188, 126
        %v3237 = vpop.permute.xlu0 %3236
        %3238 = vrot.lane.b32.xlu0 %v3190, 126
        %v3239 = vpop.permute.xlu0 %3238
        %3240 = vrot.lane.b32.xlu0 %v3192, 126
        %v3241 = vpop.permute.xlu0 %3240
        %3242 = vrot.lane.b32.xlu0 %v3194, 126
        %v3243 = vpop.permute.xlu0 %3242
        %3244 = vrot.lane.b32.xlu0 %v3196, 126
        %v3245 = vpop.permute.xlu0 %3244
        %3246 = vrot.lane.b32.xlu0 %v3198, 126
        %v3247 = vpop.permute.xlu0 %3246
        %3248 = vrot.lane.b32.xlu0 %v3200, 126
        %v3249 = vpop.permute.xlu0 %3248
        %3250 = vrot.lane.b32.xlu0 %v3202, 126
        %v3251 = vpop.permute.xlu0 %3250
        %v3260 = vshrl.u32 %v3188, 16
        %v3262 = vshll.u32 %v3188, 16
        %v3264 = vrot.slane %v3262, 1
        %v3265 = vor.u32 %v3260, %v3264
        %v3266 = vshrl.u32 %v3190, 16
        %v3268 = vshll.u32 %v3190, 16
        %v3270 = vrot.slane %v3268, 1
        %v3271 = vor.u32 %v3266, %v3270
        %v3272 = vshrl.u32 %v3192, 16
        %v3274 = vshll.u32 %v3192, 16
        %v3276 = vrot.slane %v3274, 1
        %v3277 = vor.u32 %v3272, %v3276
        %v3278 = vshrl.u32 %v3194, 16
        %v3280 = vshll.u32 %v3194, 16
        %v3282 = vrot.slane %v3280, 1
        %v3283 = vor.u32 %v3278, %v3282
        %v3284 = vshrl.u32 %v3196, 16
        %v3286 = vshll.u32 %v3196, 16
        %v3288 = vrot.slane %v3286, 1
        %v3289 = vor.u32 %v3284, %v3288
        %v3290 = vshrl.u32 %v3198, 16
        %v3292 = vshll.u32 %v3198, 16
        %v3294 = vrot.slane %v3292, 1
        %v3295 = vor.u32 %v3290, %v3294
        %v3296 = vshrl.u32 %v3200, 16
        %v3298 = vshll.u32 %v3200, 16
        %v3300 = vrot.slane %v3298, 1
        %v3301 = vor.u32 %v3296, %v3300
        %v3302 = vshrl.u32 %v3202, 16
        %v3304 = vshll.u32 %v3202, 16
        %v3306 = vrot.slane %v3304, 1
        %v3307 = vor.u32 %v3302, %v3306
        %3316 = vrot.lane.b32.xlu0 %v3265, 127
        %v3317 = vpop.permute.xlu0 %3316
        %3318 = vrot.lane.b32.xlu0 %v3271, 127
        %v3319 = vpop.permute.xlu0 %3318
        %3320 = vrot.lane.b32.xlu0 %v3277, 127
        %v3321 = vpop.permute.xlu0 %3320
        %3322 = vrot.lane.b32.xlu0 %v3283, 127
        %v3323 = vpop.permute.xlu0 %3322
        %3324 = vrot.lane.b32.xlu0 %v3289, 127
        %v3325 = vpop.permute.xlu0 %3324
        %3326 = vrot.lane.b32.xlu0 %v3295, 127
        %v3327 = vpop.permute.xlu0 %3326
        %3328 = vrot.lane.b32.xlu0 %v3301, 127
        %v3329 = vpop.permute.xlu0 %3328
        %3330 = vrot.lane.b32.xlu0 %v3307, 127
        %v3331 = vpop.permute.xlu0 %3330
        %3340 = vrot.lane.b32.xlu0 %v3265, 126
        %v3341 = vpop.permute.xlu0 %3340
        %3342 = vrot.lane.b32.xlu0 %v3271, 126
        %v3343 = vpop.permute.xlu0 %3342
        %3344 = vrot.lane.b32.xlu0 %v3277, 126
        %v3345 = vpop.permute.xlu0 %3344
        %3346 = vrot.lane.b32.xlu0 %v3283, 126
        %v3347 = vpop.permute.xlu0 %3346
        %3348 = vrot.lane.b32.xlu0 %v3289, 126
        %v3349 = vpop.permute.xlu0 %3348
        %3350 = vrot.lane.b32.xlu0 %v3295, 126
        %v3351 = vpop.permute.xlu0 %3350
        %3352 = vrot.lane.b32.xlu0 %v3301, 126
        %v3353 = vpop.permute.xlu0 %3352
        %3354 = vrot.lane.b32.xlu0 %v3307, 126
        %v3355 = vpop.permute.xlu0 %3354
        %v3364 = vrot.slane %v3188, 1
        %v3365 = vrot.slane %v3190, 1
        %v3366 = vrot.slane %v3192, 1
        %v3367 = vrot.slane %v3194, 1
        %v3368 = vrot.slane %v3196, 1
        %v3369 = vrot.slane %v3198, 1
        %v3370 = vrot.slane %v3200, 1
        %v3371 = vrot.slane %v3202, 1
        %3380 = vrot.lane.b32.xlu0 %v3364, 127
        %v3381 = vpop.permute.xlu0 %3380
        %3382 = vrot.lane.b32.xlu0 %v3365, 127
        %v3383 = vpop.permute.xlu0 %3382
        %3384 = vrot.lane.b32.xlu0 %v3366, 127
        %v3385 = vpop.permute.xlu0 %3384
        %3386 = vrot.lane.b32.xlu0 %v3367, 127
        %v3387 = vpop.permute.xlu0 %3386
        %3388 = vrot.lane.b32.xlu0 %v3368, 127
        %v3389 = vpop.permute.xlu0 %3388
        %3390 = vrot.lane.b32.xlu0 %v3369, 127
        %v3391 = vpop.permute.xlu0 %3390
        %3392 = vrot.lane.b32.xlu0 %v3370, 127
        %v3393 = vpop.permute.xlu0 %3392
        %3394 = vrot.lane.b32.xlu0 %v3371, 127
        %v3395 = vpop.permute.xlu0 %3394
        %3404 = vrot.lane.b32.xlu0 %v3364, 126
        %v3405 = vpop.permute.xlu0 %3404
        %3406 = vrot.lane.b32.xlu0 %v3365, 126
        %v3407 = vpop.permute.xlu0 %3406
        %3408 = vrot.lane.b32.xlu0 %v3366, 126
        %v3409 = vpop.permute.xlu0 %3408
        %3410 = vrot.lane.b32.xlu0 %v3367, 126
        %v3411 = vpop.permute.xlu0 %3410
        %3412 = vrot.lane.b32.xlu0 %v3368, 126
        %v3413 = vpop.permute.xlu0 %3412
        %3414 = vrot.lane.b32.xlu0 %v3369, 126
        %v3415 = vpop.permute.xlu0 %3414
        %3416 = vrot.lane.b32.xlu0 %v3370, 126
        %v3417 = vpop.permute.xlu0 %3416
        %3418 = vrot.lane.b32.xlu0 %v3371, 126
        %v3419 = vpop.permute.xlu0 %3418
        %v3428 = vcombine.low %v3188, %v3196
        %v3430 = vunpack.c.l.s4 1983009808
        %v3431 = vunpack.c.0.s8 %v3430
        %v3432 = vlaneseq
        %v3433 = vshrl.u32 %v3432, 7
        %v3434 = vsub.s32 %v3431, %v3433
        %v3435 = vrot.slane %v3428, %v3434
        %v3436 = vcombine.low %v3192, %v3200
        %v3438 = vunpack.c.l.s4 1983009808
        %v3439 = vunpack.c.0.s8 %v3438
        %v3440 = vlaneseq
        %v3441 = vshrl.u32 %v3440, 7
        %v3442 = vsub.s32 %v3439, %v3441
        %v3443 = vrot.slane %v3436, %v3442
        %v3444 = vcombine.low %v3213, %v3221
        %v3446 = vunpack.c.l.s4 1983009808
        %v3447 = vunpack.c.0.s8 %v3446
        %v3448 = vlaneseq
        %v3449 = vshrl.u32 %v3448, 7
        %v3450 = vsub.s32 %v3447, %v3449
        %v3451 = vrot.slane %v3444, %v3450
        %v3452 = vcombine.low %v3217, %v3225
        %v3454 = vunpack.c.l.s4 1983009808
        %v3455 = vunpack.c.0.s8 %v3454
        %v3456 = vlaneseq
        %v3457 = vshrl.u32 %v3456, 7
        %v3458 = vsub.s32 %v3455, %v3457
        %v3459 = vrot.slane %v3452, %v3458
        %v3460 = vcombine.low %v3435, %v3443
        %v3461 = vcombine.high %v3435, %v3443
        %v3463 = vunpack.c.l.s4 1934713408
        %v3464 = vunpack.c.0.s8 %v3463
        %v3465 = vlaneseq
        %v3466 = vshrl.u32 %v3465, 7
        %v3467 = vsub.s32 %v3464, %v3466
        %v3468 = vrot.slane %v3460, %v3467
        %v3470 = vunpack.c.l.s4 1934713408
        %v3471 = vunpack.c.0.s8 %v3470
        %v3472 = vlaneseq
        %v3473 = vshrl.u32 %v3472, 7
        %v3474 = vsub.s32 %v3471, %v3473
        %v3475 = vrot.slane %v3461, %v3474
        %v3476 = vcombine.low %v3451, %v3459
        %v3477 = vcombine.high %v3451, %v3459
        %v3479 = vunpack.c.l.s4 1934713408
        %v3480 = vunpack.c.0.s8 %v3479
        %v3481 = vlaneseq
        %v3482 = vshrl.u32 %v3481, 7
        %v3483 = vsub.s32 %v3480, %v3482
        %v3484 = vrot.slane %v3476, %v3483
        %v3486 = vunpack.c.l.s4 1934713408
        %v3487 = vunpack.c.0.s8 %v3486
        %v3488 = vlaneseq
        %v3489 = vshrl.u32 %v3488, 7
        %v3490 = vsub.s32 %v3487, %v3489
        %v3491 = vrot.slane %v3477, %v3490
        %v3492 = vcombine.low %v3468, %v3484
        %v3493 = vcombine.high %v3468, %v3484
        %v3494 = vcombine.low %v3475, %v3491
        %v3495 = vcombine.high %v3475, %v3491
        %v3496 = vcombine.low %v3190, %v3198
        %v3498 = vunpack.c.l.s4 1983009808
        %v3499 = vunpack.c.0.s8 %v3498
        %v3500 = vlaneseq
        %v3501 = vshrl.u32 %v3500, 7
        %v3502 = vsub.s32 %v3499, %v3501
        %v3503 = vrot.slane %v3496, %v3502
        %v3504 = vcombine.low %v3194, %v3202
        %v3506 = vunpack.c.l.s4 1983009808
        %v3507 = vunpack.c.0.s8 %v3506
        %v3508 = vlaneseq
        %v3509 = vshrl.u32 %v3508, 7
        %v3510 = vsub.s32 %v3507, %v3509
        %v3511 = vrot.slane %v3504, %v3510
        %v3512 = vcombine.low %v3215, %v3223
        %v3514 = vunpack.c.l.s4 1983009808
        %v3515 = vunpack.c.0.s8 %v3514
        %v3516 = vlaneseq
        %v3517 = vshrl.u32 %v3516, 7
        %v3518 = vsub.s32 %v3515, %v3517
        %v3519 = vrot.slane %v3512, %v3518
        %v3520 = vcombine.low %v3219, %v3227
        %v3522 = vunpack.c.l.s4 1983009808
        %v3523 = vunpack.c.0.s8 %v3522
        %v3524 = vlaneseq
        %v3525 = vshrl.u32 %v3524, 7
        %v3526 = vsub.s32 %v3523, %v3525
        %v3527 = vrot.slane %v3520, %v3526
        %v3528 = vcombine.low %v3503, %v3511
        %v3529 = vcombine.high %v3503, %v3511
        %v3531 = vunpack.c.l.s4 1934713408
        %v3532 = vunpack.c.0.s8 %v3531
        %v3533 = vlaneseq
        %v3534 = vshrl.u32 %v3533, 7
        %v3535 = vsub.s32 %v3532, %v3534
        %v3536 = vrot.slane %v3528, %v3535
        %v3538 = vunpack.c.l.s4 1934713408
        %v3539 = vunpack.c.0.s8 %v3538
        %v3540 = vlaneseq
        %v3541 = vshrl.u32 %v3540, 7
        %v3542 = vsub.s32 %v3539, %v3541
        %v3543 = vrot.slane %v3529, %v3542
        %v3544 = vcombine.low %v3519, %v3527
        %v3545 = vcombine.high %v3519, %v3527
        %v3547 = vunpack.c.l.s4 1934713408
        %v3548 = vunpack.c.0.s8 %v3547
        %v3549 = vlaneseq
        %v3550 = vshrl.u32 %v3549, 7
        %v3551 = vsub.s32 %v3548, %v3550
        %v3552 = vrot.slane %v3544, %v3551
        %v3554 = vunpack.c.l.s4 1934713408
        %v3555 = vunpack.c.0.s8 %v3554
        %v3556 = vlaneseq
        %v3557 = vshrl.u32 %v3556, 7
        %v3558 = vsub.s32 %v3555, %v3557
        %v3559 = vrot.slane %v3545, %v3558
        %v3560 = vcombine.low %v3536, %v3552
        %v3561 = vcombine.high %v3536, %v3552
        %v3562 = vcombine.low %v3543, %v3559
        %v3563 = vcombine.high %v3543, %v3559
        %v3564 = vcombine.low %v3237, %v3245
        %v3566 = vunpack.c.l.s4 1983009808
        %v3567 = vunpack.c.0.s8 %v3566
        %v3568 = vlaneseq
        %v3569 = vshrl.u32 %v3568, 7
        %v3570 = vsub.s32 %v3567, %v3569
        %v3571 = vrot.slane %v3564, %v3570
        %v3572 = vcombine.low %v3241, %v3249
        %v3574 = vunpack.c.l.s4 1983009808
        %v3575 = vunpack.c.0.s8 %v3574
        %v3576 = vlaneseq
        %v3577 = vshrl.u32 %v3576, 7
        %v3578 = vsub.s32 %v3575, %v3577
        %v3579 = vrot.slane %v3572, %v3578
        %v3580 = vcombine.low %v3265, %v3289
        %v3582 = vunpack.c.l.s4 1983009808
        %v3583 = vunpack.c.0.s8 %v3582
        %v3584 = vlaneseq
        %v3585 = vshrl.u32 %v3584, 7
        %v3586 = vsub.s32 %v3583, %v3585
        %v3587 = vrot.slane %v3580, %v3586
        %v3588 = vcombine.low %v3277, %v3301
        %v3590 = vunpack.c.l.s4 1983009808
        %v3591 = vunpack.c.0.s8 %v3590
        %v3592 = vlaneseq
        %v3593 = vshrl.u32 %v3592, 7
        %v3594 = vsub.s32 %v3591, %v3593
        %v3595 = vrot.slane %v3588, %v3594
        %v3596 = vcombine.low %v3571, %v3579
        %v3597 = vcombine.high %v3571, %v3579
        %v3599 = vunpack.c.l.s4 1934713408
        %v3600 = vunpack.c.0.s8 %v3599
        %v3601 = vlaneseq
        %v3602 = vshrl.u32 %v3601, 7
        %v3603 = vsub.s32 %v3600, %v3602
        %v3604 = vrot.slane %v3596, %v3603
        %v3606 = vunpack.c.l.s4 1934713408
        %v3607 = vunpack.c.0.s8 %v3606
        %v3608 = vlaneseq
        %v3609 = vshrl.u32 %v3608, 7
        %v3610 = vsub.s32 %v3607, %v3609
        %v3611 = vrot.slane %v3597, %v3610
        %v3612 = vcombine.low %v3587, %v3595
        %v3613 = vcombine.high %v3587, %v3595
        %v3615 = vunpack.c.l.s4 1934713408
        %v3616 = vunpack.c.0.s8 %v3615
        %v3617 = vlaneseq
        %v3618 = vshrl.u32 %v3617, 7
        %v3619 = vsub.s32 %v3616, %v3618
        %v3620 = vrot.slane %v3612, %v3619
        %v3622 = vunpack.c.l.s4 1934713408
        %v3623 = vunpack.c.0.s8 %v3622
        %v3624 = vlaneseq
        %v3625 = vshrl.u32 %v3624, 7
        %v3626 = vsub.s32 %v3623, %v3625
        %v3627 = vrot.slane %v3613, %v3626
        %v3628 = vcombine.low %v3604, %v3620
        %v3629 = vcombine.high %v3604, %v3620
        %v3630 = vcombine.low %v3611, %v3627
        %v3631 = vcombine.high %v3611, %v3627
        %v3632 = vcombine.low %v3239, %v3247
        %v3634 = vunpack.c.l.s4 1983009808
        %v3635 = vunpack.c.0.s8 %v3634
        %v3636 = vlaneseq
        %v3637 = vshrl.u32 %v3636, 7
        %v3638 = vsub.s32 %v3635, %v3637
        %v3639 = vrot.slane %v3632, %v3638
        %v3640 = vcombine.low %v3243, %v3251
        %v3642 = vunpack.c.l.s4 1983009808
        %v3643 = vunpack.c.0.s8 %v3642
        %v3644 = vlaneseq
        %v3645 = vshrl.u32 %v3644, 7
        %v3646 = vsub.s32 %v3643, %v3645
        %v3647 = vrot.slane %v3640, %v3646
        %v3648 = vcombine.low %v3271, %v3295
        %v3650 = vunpack.c.l.s4 1983009808
        %v3651 = vunpack.c.0.s8 %v3650
        %v3652 = vlaneseq
        %v3653 = vshrl.u32 %v3652, 7
        %v3654 = vsub.s32 %v3651, %v3653
        %v3655 = vrot.slane %v3648, %v3654
        %v3656 = vcombine.low %v3283, %v3307
        %v3658 = vunpack.c.l.s4 1983009808
        %v3659 = vunpack.c.0.s8 %v3658
        %v3660 = vlaneseq
        %v3661 = vshrl.u32 %v3660, 7
        %v3662 = vsub.s32 %v3659, %v3661
        %v3663 = vrot.slane %v3656, %v3662
        %v3664 = vcombine.low %v3639, %v3647
        %v3665 = vcombine.high %v3639, %v3647
        %v3667 = vunpack.c.l.s4 1934713408
        %v3668 = vunpack.c.0.s8 %v3667
        %v3669 = vlaneseq
        %v3670 = vshrl.u32 %v3669, 7
        %v3671 = vsub.s32 %v3668, %v3670
        %v3672 = vrot.slane %v3664, %v3671
        %v3674 = vunpack.c.l.s4 1934713408
        %v3675 = vunpack.c.0.s8 %v3674
        %v3676 = vlaneseq
        %v3677 = vshrl.u32 %v3676, 7
        %v3678 = vsub.s32 %v3675, %v3677
        %v3679 = vrot.slane %v3665, %v3678
        %v3680 = vcombine.low %v3655, %v3663
        %v3681 = vcombine.high %v3655, %v3663
        %v3683 = vunpack.c.l.s4 1934713408
        %v3684 = vunpack.c.0.s8 %v3683
        %v3685 = vlaneseq
        %v3686 = vshrl.u32 %v3685, 7
        %v3687 = vsub.s32 %v3684, %v3686
        %v3688 = vrot.slane %v3680, %v3687
        %v3690 = vunpack.c.l.s4 1934713408
        %v3691 = vunpack.c.0.s8 %v3690
        %v3692 = vlaneseq
        %v3693 = vshrl.u32 %v3692, 7
        %v3694 = vsub.s32 %v3691, %v3693
        %v3695 = vrot.slane %v3681, %v3694
        %v3696 = vcombine.low %v3672, %v3688
        %v3697 = vcombine.high %v3672, %v3688
        %v3698 = vcombine.low %v3679, %v3695
        %v3699 = vcombine.high %v3679, %v3695
        %v3700 = vcombine.low %v3317, %v3325
        %v3702 = vunpack.c.l.s4 1983009808
        %v3703 = vunpack.c.0.s8 %v3702
        %v3704 = vlaneseq
        %v3705 = vshrl.u32 %v3704, 7
        %v3706 = vsub.s32 %v3703, %v3705
        %v3707 = vrot.slane %v3700, %v3706
        %v3708 = vcombine.low %v3321, %v3329
        %v3710 = vunpack.c.l.s4 1983009808
        %v3711 = vunpack.c.0.s8 %v3710
        %v3712 = vlaneseq
        %v3713 = vshrl.u32 %v3712, 7
        %v3714 = vsub.s32 %v3711, %v3713
        %v3715 = vrot.slane %v3708, %v3714
        %v3716 = vcombine.low %v3341, %v3349
        %v3718 = vunpack.c.l.s4 1983009808
        %v3719 = vunpack.c.0.s8 %v3718
        %v3720 = vlaneseq
        %v3721 = vshrl.u32 %v3720, 7
        %v3722 = vsub.s32 %v3719, %v3721
        %v3723 = vrot.slane %v3716, %v3722
        %v3724 = vcombine.low %v3345, %v3353
        %v3726 = vunpack.c.l.s4 1983009808
        %v3727 = vunpack.c.0.s8 %v3726
        %v3728 = vlaneseq
        %v3729 = vshrl.u32 %v3728, 7
        %v3730 = vsub.s32 %v3727, %v3729
        %v3731 = vrot.slane %v3724, %v3730
        %v3732 = vcombine.low %v3707, %v3715
        %v3733 = vcombine.high %v3707, %v3715
        %v3735 = vunpack.c.l.s4 1934713408
        %v3736 = vunpack.c.0.s8 %v3735
        %v3737 = vlaneseq
        %v3738 = vshrl.u32 %v3737, 7
        %v3739 = vsub.s32 %v3736, %v3738
        %v3740 = vrot.slane %v3732, %v3739
        %v3742 = vunpack.c.l.s4 1934713408
        %v3743 = vunpack.c.0.s8 %v3742
        %v3744 = vlaneseq
        %v3745 = vshrl.u32 %v3744, 7
        %v3746 = vsub.s32 %v3743, %v3745
        %v3747 = vrot.slane %v3733, %v3746
        %v3748 = vcombine.low %v3723, %v3731
        %v3749 = vcombine.high %v3723, %v3731
        %v3751 = vunpack.c.l.s4 1934713408
        %v3752 = vunpack.c.0.s8 %v3751
        %v3753 = vlaneseq
        %v3754 = vshrl.u32 %v3753, 7
        %v3755 = vsub.s32 %v3752, %v3754
        %v3756 = vrot.slane %v3748, %v3755
        %v3758 = vunpack.c.l.s4 1934713408
        %v3759 = vunpack.c.0.s8 %v3758
        %v3760 = vlaneseq
        %v3761 = vshrl.u32 %v3760, 7
        %v3762 = vsub.s32 %v3759, %v3761
        %v3763 = vrot.slane %v3749, %v3762
        %v3764 = vcombine.low %v3740, %v3756
        %v3765 = vcombine.high %v3740, %v3756
        %v3766 = vcombine.low %v3747, %v3763
        %v3767 = vcombine.high %v3747, %v3763
        %v3768 = vcombine.low %v3319, %v3327
        %v3770 = vunpack.c.l.s4 1983009808
        %v3771 = vunpack.c.0.s8 %v3770
        %v3772 = vlaneseq
        %v3773 = vshrl.u32 %v3772, 7
        %v3774 = vsub.s32 %v3771, %v3773
        %v3775 = vrot.slane %v3768, %v3774
        %v3776 = vcombine.low %v3323, %v3331
        %v3778 = vunpack.c.l.s4 1983009808
        %v3779 = vunpack.c.0.s8 %v3778
        %v3780 = vlaneseq
        %v3781 = vshrl.u32 %v3780, 7
        %v3782 = vsub.s32 %v3779, %v3781
        %v3783 = vrot.slane %v3776, %v3782
        %v3784 = vcombine.low %v3343, %v3351
        %v3786 = vunpack.c.l.s4 1983009808
        %v3787 = vunpack.c.0.s8 %v3786
        %v3788 = vlaneseq
        %v3789 = vshrl.u32 %v3788, 7
        %v3790 = vsub.s32 %v3787, %v3789
        %v3791 = vrot.slane %v3784, %v3790
        %v3792 = vcombine.low %v3347, %v3355
        %v3794 = vunpack.c.l.s4 1983009808
        %v3795 = vunpack.c.0.s8 %v3794
        %v3796 = vlaneseq
        %v3797 = vshrl.u32 %v3796, 7
        %v3798 = vsub.s32 %v3795, %v3797
        %v3799 = vrot.slane %v3792, %v3798
        %v3800 = vcombine.low %v3775, %v3783
        %v3801 = vcombine.high %v3775, %v3783
        %v3803 = vunpack.c.l.s4 1934713408
        %v3804 = vunpack.c.0.s8 %v3803
        %v3805 = vlaneseq
        %v3806 = vshrl.u32 %v3805, 7
        %v3807 = vsub.s32 %v3804, %v3806
        %v3808 = vrot.slane %v3800, %v3807
        %v3810 = vunpack.c.l.s4 1934713408
        %v3811 = vunpack.c.0.s8 %v3810
        %v3812 = vlaneseq
        %v3813 = vshrl.u32 %v3812, 7
        %v3814 = vsub.s32 %v3811, %v3813
        %v3815 = vrot.slane %v3801, %v3814
        %v3816 = vcombine.low %v3791, %v3799
        %v3817 = vcombine.high %v3791, %v3799
        %v3819 = vunpack.c.l.s4 1934713408
        %v3820 = vunpack.c.0.s8 %v3819
        %v3821 = vlaneseq
        %v3822 = vshrl.u32 %v3821, 7
        %v3823 = vsub.s32 %v3820, %v3822
        %v3824 = vrot.slane %v3816, %v3823
        %v3826 = vunpack.c.l.s4 1934713408
        %v3827 = vunpack.c.0.s8 %v3826
        %v3828 = vlaneseq
        %v3829 = vshrl.u32 %v3828, 7
        %v3830 = vsub.s32 %v3827, %v3829
        %v3831 = vrot.slane %v3817, %v3830
        %v3832 = vcombine.low %v3808, %v3824
        %v3833 = vcombine.high %v3808, %v3824
        %v3834 = vcombine.low %v3815, %v3831
        %v3835 = vcombine.high %v3815, %v3831
        %v3836 = vcombine.low %v3364, %v3368
        %v3838 = vunpack.c.l.s4 1983009808
        %v3839 = vunpack.c.0.s8 %v3838
        %v3840 = vlaneseq
        %v3841 = vshrl.u32 %v3840, 7
        %v3842 = vsub.s32 %v3839, %v3841
        %v3843 = vrot.slane %v3836, %v3842
        %v3844 = vcombine.low %v3366, %v3370
        %v3846 = vunpack.c.l.s4 1983009808
        %v3847 = vunpack.c.0.s8 %v3846
        %v3848 = vlaneseq
        %v3849 = vshrl.u32 %v3848, 7
        %v3850 = vsub.s32 %v3847, %v3849
        %v3851 = vrot.slane %v3844, %v3850
        %v3852 = vcombine.low %v3381, %v3389
        %v3854 = vunpack.c.l.s4 1983009808
        %v3855 = vunpack.c.0.s8 %v3854
        %v3856 = vlaneseq
        %v3857 = vshrl.u32 %v3856, 7
        %v3858 = vsub.s32 %v3855, %v3857
        %v3859 = vrot.slane %v3852, %v3858
        %v3860 = vcombine.low %v3385, %v3393
        %v3862 = vunpack.c.l.s4 1983009808
        %v3863 = vunpack.c.0.s8 %v3862
        %v3864 = vlaneseq
        %v3865 = vshrl.u32 %v3864, 7
        %v3866 = vsub.s32 %v3863, %v3865
        %v3867 = vrot.slane %v3860, %v3866
        %v3868 = vcombine.low %v3843, %v3851
        %v3869 = vcombine.high %v3843, %v3851
        %v3871 = vunpack.c.l.s4 1934713408
        %v3872 = vunpack.c.0.s8 %v3871
        %v3873 = vlaneseq
        %v3874 = vshrl.u32 %v3873, 7
        %v3875 = vsub.s32 %v3872, %v3874
        %v3876 = vrot.slane %v3868, %v3875
        %v3878 = vunpack.c.l.s4 1934713408
        %v3879 = vunpack.c.0.s8 %v3878
        %v3880 = vlaneseq
        %v3881 = vshrl.u32 %v3880, 7
        %v3882 = vsub.s32 %v3879, %v3881
        %v3883 = vrot.slane %v3869, %v3882
        %v3884 = vcombine.low %v3859, %v3867
        %v3885 = vcombine.high %v3859, %v3867
        %v3887 = vunpack.c.l.s4 1934713408
        %v3888 = vunpack.c.0.s8 %v3887
        %v3889 = vlaneseq
        %v3890 = vshrl.u32 %v3889, 7
        %v3891 = vsub.s32 %v3888, %v3890
        %v3892 = vrot.slane %v3884, %v3891
        %v3894 = vunpack.c.l.s4 1934713408
        %v3895 = vunpack.c.0.s8 %v3894
        %v3896 = vlaneseq
        %v3897 = vshrl.u32 %v3896, 7
        %v3898 = vsub.s32 %v3895, %v3897
        %v3899 = vrot.slane %v3885, %v3898
        %v3900 = vcombine.low %v3876, %v3892
        %v3901 = vcombine.high %v3876, %v3892
        %v3902 = vcombine.low %v3883, %v3899
        %v3903 = vcombine.high %v3883, %v3899
        %v3904 = vcombine.low %v3365, %v3369
        %v3906 = vunpack.c.l.s4 1983009808
        %v3907 = vunpack.c.0.s8 %v3906
        %v3908 = vlaneseq
        %v3909 = vshrl.u32 %v3908, 7
        %v3910 = vsub.s32 %v3907, %v3909
        %v3911 = vrot.slane %v3904, %v3910
        %v3912 = vcombine.low %v3367, %v3371
        %v3914 = vunpack.c.l.s4 1983009808
        %v3915 = vunpack.c.0.s8 %v3914
        %v3916 = vlaneseq
        %v3917 = vshrl.u32 %v3916, 7
        %v3918 = vsub.s32 %v3915, %v3917
        %v3919 = vrot.slane %v3912, %v3918
        %v3920 = vcombine.low %v3383, %v3391
        %v3922 = vunpack.c.l.s4 1983009808
        %v3923 = vunpack.c.0.s8 %v3922
        %v3924 = vlaneseq
        %v3925 = vshrl.u32 %v3924, 7
        %v3926 = vsub.s32 %v3923, %v3925
        %v3927 = vrot.slane %v3920, %v3926
        %v3928 = vcombine.low %v3387, %v3395
        %v3930 = vunpack.c.l.s4 1983009808
        %v3931 = vunpack.c.0.s8 %v3930
        %v3932 = vlaneseq
        %v3933 = vshrl.u32 %v3932, 7
        %v3934 = vsub.s32 %v3931, %v3933
        %v3935 = vrot.slane %v3928, %v3934
        %v3936 = vcombine.low %v3911, %v3919
        %v3937 = vcombine.high %v3911, %v3919
        %v3939 = vunpack.c.l.s4 1934713408
        %v3940 = vunpack.c.0.s8 %v3939
        %v3941 = vlaneseq
        %v3942 = vshrl.u32 %v3941, 7
        %v3943 = vsub.s32 %v3940, %v3942
        %v3944 = vrot.slane %v3936, %v3943
        %v3946 = vunpack.c.l.s4 1934713408
        %v3947 = vunpack.c.0.s8 %v3946
        %v3948 = vlaneseq
        %v3949 = vshrl.u32 %v3948, 7
        %v3950 = vsub.s32 %v3947, %v3949
        %v3951 = vrot.slane %v3937, %v3950
        %v3952 = vcombine.low %v3927, %v3935
        %v3953 = vcombine.high %v3927, %v3935
        %v3955 = vunpack.c.l.s4 1934713408
        %v3956 = vunpack.c.0.s8 %v3955
        %v3957 = vlaneseq
        %v3958 = vshrl.u32 %v3957, 7
        %v3959 = vsub.s32 %v3956, %v3958
        %v3960 = vrot.slane %v3952, %v3959
        %v3962 = vunpack.c.l.s4 1934713408
        %v3963 = vunpack.c.0.s8 %v3962
        %v3964 = vlaneseq
        %v3965 = vshrl.u32 %v3964, 7
        %v3966 = vsub.s32 %v3963, %v3965
        %v3967 = vrot.slane %v3953, %v3966
        %v3968 = vcombine.low %v3944, %v3960
        %v3969 = vcombine.high %v3944, %v3960
        %v3970 = vcombine.low %v3951, %v3967
        %v3971 = vcombine.high %v3951, %v3967
        %v3972 = vcombine.low %v3405, %v3413
        %v3974 = vunpack.c.l.s4 1983009808
        %v3975 = vunpack.c.0.s8 %v3974
        %v3976 = vlaneseq
        %v3977 = vshrl.u32 %v3976, 7
        %v3978 = vsub.s32 %v3975, %v3977
        %v3979 = vrot.slane %v3972, %v3978
        %v3980 = vcombine.low %v3409, %v3417
        %v3982 = vunpack.c.l.s4 1983009808
        %v3983 = vunpack.c.0.s8 %v3982
        %v3984 = vlaneseq
        %v3985 = vshrl.u32 %v3984, 7
        %v3986 = vsub.s32 %v3983, %v3985
        %v3987 = vrot.slane %v3980, %v3986
        %v3988 = vcombine.low %v3979, %v3987
        %v3989 = vcombine.high %v3979, %v3987
        %v3991 = vunpack.c.l.s4 1934713408
        %v3992 = vunpack.c.0.s8 %v3991
        %v3993 = vlaneseq
        %v3994 = vshrl.u32 %v3993, 7
        %v3995 = vsub.s32 %v3992, %v3994
        %v3996 = vrot.slane %v3988, %v3995
        %v3998 = vunpack.c.l.s4 1934713408
        %v3999 = vunpack.c.0.s8 %v3998
        %v4000 = vlaneseq
        %v4001 = vshrl.u32 %v4000, 7
        %v4002 = vsub.s32 %v3999, %v4001
        %v4003 = vrot.slane %v3989, %v4002
        %v4004 = vcombine.high %v3996, 0
        %v4005 = vcombine.high %v4003, 0
        %v4006 = vcombine.low %v3407, %v3415
        %v4008 = vunpack.c.l.s4 1983009808
        %v4009 = vunpack.c.0.s8 %v4008
        %v4010 = vlaneseq
        %v4011 = vshrl.u32 %v4010, 7
        %v4012 = vsub.s32 %v4009, %v4011
        %v4013 = vrot.slane %v4006, %v4012
        %v4014 = vcombine.low %v3411, %v3419
        %v4016 = vunpack.c.l.s4 1983009808
        %v4017 = vunpack.c.0.s8 %v4016
        %v4018 = vlaneseq
        %v4019 = vshrl.u32 %v4018, 7
        %v4020 = vsub.s32 %v4017, %v4019
        %v4021 = vrot.slane %v4014, %v4020
        %v4022 = vcombine.low %v4013, %v4021
        %v4023 = vcombine.high %v4013, %v4021
        %v4025 = vunpack.c.l.s4 1934713408
        %v4026 = vunpack.c.0.s8 %v4025
        %v4027 = vlaneseq
        %v4028 = vshrl.u32 %v4027, 7
        %v4029 = vsub.s32 %v4026, %v4028
        %v4030 = vrot.slane %v4022, %v4029
        %v4032 = vunpack.c.l.s4 1934713408
        %v4033 = vunpack.c.0.s8 %v4032
        %v4034 = vlaneseq
        %v4035 = vshrl.u32 %v4034, 7
        %v4036 = vsub.s32 %v4033, %v4035
        %v4037 = vrot.slane %v4023, %v4036
        %v4038 = vcombine.high %v4030, 0
        %v4039 = vcombine.high %v4037, 0
        %v4042 = vpack.i.b16 %v3560, %v3492
        %v4043 = vshrl.u32 %v3492, 16
        %v4044 = vshrl.u32 %v3560, 16
        %v4045 = vpack.i.b16 %v4044, %v4043
        %v4048 = vpack.i.b16 %v3561, %v3493
        %v4049 = vshrl.u32 %v3493, 16
        %v4050 = vshrl.u32 %v3561, 16
        %v4051 = vpack.i.b16 %v4050, %v4049
        %v4054 = vpack.i.b16 %v3562, %v3494
        %v4055 = vshrl.u32 %v3494, 16
        %v4056 = vshrl.u32 %v3562, 16
        %v4057 = vpack.i.b16 %v4056, %v4055
        %v4060 = vpack.i.b16 %v3563, %v3495
        %v4061 = vshrl.u32 %v3495, 16
        %v4062 = vshrl.u32 %v3563, 16
        %v4063 = vpack.i.b16 %v4062, %v4061
        %v4066 = vpack.i.b16 %v3696, %v3628
        %v4067 = vshrl.u32 %v3628, 16
        %v4068 = vshrl.u32 %v3696, 16
        %v4069 = vpack.i.b16 %v4068, %v4067
        %v4072 = vpack.i.b16 %v3697, %v3629
        %v4073 = vshrl.u32 %v3629, 16
        %v4074 = vshrl.u32 %v3697, 16
        %v4075 = vpack.i.b16 %v4074, %v4073
        %v4078 = vpack.i.b16 %v3698, %v3630
        %v4079 = vshrl.u32 %v3630, 16
        %v4080 = vshrl.u32 %v3698, 16
        %v4081 = vpack.i.b16 %v4080, %v4079
        %v4084 = vpack.i.b16 %v3699, %v3631
        %v4085 = vshrl.u32 %v3631, 16
        %v4086 = vshrl.u32 %v3699, 16
        %v4087 = vpack.i.b16 %v4086, %v4085
        %v4090 = vpack.i.b16 %v3832, %v3764
        %v4091 = vshrl.u32 %v3764, 16
        %v4092 = vshrl.u32 %v3832, 16
        %v4093 = vpack.i.b16 %v4092, %v4091
        %v4096 = vpack.i.b16 %v3833, %v3765
        %v4097 = vshrl.u32 %v3765, 16
        %v4098 = vshrl.u32 %v3833, 16
        %v4099 = vpack.i.b16 %v4098, %v4097
        %v4102 = vpack.i.b16 %v3834, %v3766
        %v4103 = vshrl.u32 %v3766, 16
        %v4104 = vshrl.u32 %v3834, 16
        %v4105 = vpack.i.b16 %v4104, %v4103
        %v4108 = vpack.i.b16 %v3835, %v3767
        %v4109 = vshrl.u32 %v3767, 16
        %v4110 = vshrl.u32 %v3835, 16
        %v4111 = vpack.i.b16 %v4110, %v4109
        %v4114 = vpack.i.b16 %v3968, %v3900
        %v4115 = vshrl.u32 %v3900, 16
        %v4116 = vshrl.u32 %v3968, 16
        %v4117 = vpack.i.b16 %v4116, %v4115
        %v4120 = vpack.i.b16 %v3969, %v3901
        %v4121 = vshrl.u32 %v3901, 16
        %v4122 = vshrl.u32 %v3969, 16
        %v4123 = vpack.i.b16 %v4122, %v4121
        %v4126 = vpack.i.b16 %v3970, %v3902
        %v4127 = vshrl.u32 %v3902, 16
        %v4128 = vshrl.u32 %v3970, 16
        %v4129 = vpack.i.b16 %v4128, %v4127
        %v4132 = vpack.i.b16 %v3971, %v3903
        %v4133 = vshrl.u32 %v3903, 16
        %v4134 = vshrl.u32 %v3971, 16
        %v4135 = vpack.i.b16 %v4134, %v4133
        %v4138 = vpack.i.b16 %v4030, %v3996
        %v4139 = vshrl.u32 %v3996, 16
        %v4140 = vshrl.u32 %v4030, 16
        %v4141 = vpack.i.b16 %v4140, %v4139
        %v4144 = vpack.i.b16 %v4038, %v4004
        %v4145 = vshrl.u32 %v4004, 16
        %v4146 = vshrl.u32 %v4038, 16
        %v4147 = vpack.i.b16 %v4146, %v4145
        %v4150 = vpack.i.b16 %v4037, %v4003
        %v4151 = vshrl.u32 %v4003, 16
        %v4152 = vshrl.u32 %v4037, 16
        %v4153 = vpack.i.b16 %v4152, %v4151
        %v4156 = vpack.i.b16 %v4039, %v4005
        %v4157 = vshrl.u32 %v4005, 16
        %v4158 = vshrl.u32 %v4039, 16
        %v4159 = vpack.i.b16 %v4158, %v4157
        %4160 = vrot.lane.b32.xlu0 %v4045, 8
        %v4161 = vpop.permute.xlu0 %4160
        %4162 = vrot.lane.b32.xlu0 %v4069, 8
        %v4163 = vpop.permute.xlu0 %4162
        %4164 = vrot.lane.b32.xlu0 %v4093, 8
        %v4165 = vpop.permute.xlu0 %4164
        %4166 = vrot.lane.b32.xlu0 %v4117, 8
        %v4167 = vpop.permute.xlu0 %4166
        %4168 = vrot.lane.b32.xlu0 %v4141, 8
        %v4169 = vpop.permute.xlu0 %4168
        %4170 = vrot.lane.b32.xlu0 %v4048, 16
        %v4171 = vpop.permute.xlu0 %4170
        %4172 = vrot.lane.b32.xlu0 %v4072, 16
        %v4173 = vpop.permute.xlu0 %4172
        %4174 = vrot.lane.b32.xlu0 %v4096, 16
        %v4175 = vpop.permute.xlu0 %4174
        %4176 = vrot.lane.b32.xlu0 %v4120, 16
        %v4177 = vpop.permute.xlu0 %4176
        %4178 = vrot.lane.b32.xlu0 %v4144, 16
        %v4179 = vpop.permute.xlu0 %4178
        %4180 = vrot.lane.b32.xlu0 %v4051, 24
        %v4181 = vpop.permute.xlu0 %4180
        %4182 = vrot.lane.b32.xlu0 %v4075, 24
        %v4183 = vpop.permute.xlu0 %4182
        %4184 = vrot.lane.b32.xlu0 %v4099, 24
        %v4185 = vpop.permute.xlu0 %4184
        %4186 = vrot.lane.b32.xlu0 %v4123, 24
        %v4187 = vpop.permute.xlu0 %4186
        %4188 = vrot.lane.b32.xlu0 %v4147, 24
        %v4189 = vpop.permute.xlu0 %4188
        %4190 = vrot.lane.b32.xlu0 %v4054, 32
        %v4191 = vpop.permute.xlu0 %4190
        %4192 = vrot.lane.b32.xlu0 %v4078, 32
        %v4193 = vpop.permute.xlu0 %4192
        %4194 = vrot.lane.b32.xlu0 %v4102, 32
        %v4195 = vpop.permute.xlu0 %4194
        %4196 = vrot.lane.b32.xlu0 %v4126, 32
        %v4197 = vpop.permute.xlu0 %4196
        %4198 = vrot.lane.b32.xlu0 %v4150, 32
        %v4199 = vpop.permute.xlu0 %4198
        %4200 = vrot.lane.b32.xlu0 %v4057, 40
        %v4201 = vpop.permute.xlu0 %4200
        %4202 = vrot.lane.b32.xlu0 %v4081, 40
        %v4203 = vpop.permute.xlu0 %4202
        %4204 = vrot.lane.b32.xlu0 %v4105, 40
        %v4205 = vpop.permute.xlu0 %4204
        %4206 = vrot.lane.b32.xlu0 %v4129, 40
        %v4207 = vpop.permute.xlu0 %4206
        %4208 = vrot.lane.b32.xlu0 %v4153, 40
        %v4209 = vpop.permute.xlu0 %4208
        %4210 = vrot.lane.b32.xlu0 %v4060, 48
        %v4211 = vpop.permute.xlu0 %4210
        %4212 = vrot.lane.b32.xlu0 %v4084, 48
        %v4213 = vpop.permute.xlu0 %4212
        %4214 = vrot.lane.b32.xlu0 %v4108, 48
        %v4215 = vpop.permute.xlu0 %4214
        %4216 = vrot.lane.b32.xlu0 %v4132, 48
        %v4217 = vpop.permute.xlu0 %4216
        %4218 = vrot.lane.b32.xlu0 %v4156, 48
        %v4219 = vpop.permute.xlu0 %4218
        %4220 = vrot.lane.b32.xlu0 %v4063, 56
        %v4221 = vpop.permute.xlu0 %4220
        %4222 = vrot.lane.b32.xlu0 %v4087, 56
        %v4223 = vpop.permute.xlu0 %4222
        %4224 = vrot.lane.b32.xlu0 %v4111, 56
        %v4225 = vpop.permute.xlu0 %4224
        %4226 = vrot.lane.b32.xlu0 %v4135, 56
        %v4227 = vpop.permute.xlu0 %4226
        %4228 = vrot.lane.b32.xlu0 %v4159, 56
        %v4229 = vpop.permute.xlu0 %4228
        %v4232 = vsel %vm2561, %v4042, %v4161
        %v4235 = vsel %vm2561, %v4066, %v4163
        %v4238 = vsel %vm2561, %v4090, %v4165
        %v4241 = vsel %vm2561, %v4114, %v4167
        %v4244 = vsel %vm2561, %v4138, %v4169
        %v4246 = vsel %vm2571, %v4232, %v4171
        %v4248 = vsel %vm2571, %v4235, %v4173
        %v4250 = vsel %vm2571, %v4238, %v4175
        %v4252 = vsel %vm2571, %v4241, %v4177
        %v4254 = vsel %vm2571, %v4244, %v4179
        %v4256 = vsel %vm2578, %v4246, %v4181
        %v4258 = vsel %vm2578, %v4248, %v4183
        %v4260 = vsel %vm2578, %v4250, %v4185
        %v4262 = vsel %vm2578, %v4252, %v4187
        %v4264 = vsel %vm2578, %v4254, %v4189
        %v4266 = vsel %vm2585, %v4256, %v4191
        %v4268 = vsel %vm2585, %v4258, %v4193
        %v4270 = vsel %vm2585, %v4260, %v4195
        %v4272 = vsel %vm2585, %v4262, %v4197
        %v4274 = vsel %vm2585, %v4264, %v4199
        %v4276 = vsel %vm2592, %v4266, %v4201
        %v4278 = vsel %vm2592, %v4268, %v4203
        %v4280 = vsel %vm2592, %v4270, %v4205
        %v4282 = vsel %vm2592, %v4272, %v4207
        %v4284 = vsel %vm2592, %v4274, %v4209
        %v4286 = vsel %vm2599, %v4276, %v4211
        %v4288 = vsel %vm2599, %v4278, %v4213
        %v4290 = vsel %vm2599, %v4280, %v4215
        %v4292 = vsel %vm2599, %v4282, %v4217
        %v4294 = vsel %vm2599, %v4284, %v4219
        %v4296 = vsel %vm2606, %v4286, %v4221
        %v4299 = vsel %vm2606, %v4288, %v4223
        %v4302 = vsel %vm2606, %v4290, %v4225
        %v4305 = vsel %vm2606, %v4292, %v4227
        %v4308 = vsel %vm2606, %v4294, %v4229
        %vm4309 = vcmask 588800
        %v4311 = vsel %vm4309, %v232, 0
        %vm4313 = vcmask 1043456
        %v4314 = vsel %vm4313, %v4308, 0
        %4316 = vmatprep.subr.bf16.mxu0 0
        %4317 = vmatpush1.bf16.msra.mxu0 0
        %4318 = vmatprep.subr.bf16.mxu0 0
        %4319 = vmatpush1.bf16.msra.mxu0 0
        %4320 = vmatprep.subr.bf16.mxu0 0
        %4321 = vmatpush1.bf16.msra.mxu0 0
        %4322 = vmatprep.subr.bf16.mxu0 0
        %4323 = vmatpush1.bf16.msra.mxu0 %v4314
        %4324 = vmatprep.subr.bf16.mxu0 0
        %4325 = vmatpush1.bf16.msra.mxu0 %v4305
        %4326 = vmatprep.subr.bf16.mxu0 0
        %4327 = vmatpush1.bf16.msra.mxu0 %v4302
        %4328 = vmatprep.subr.bf16.mxu0 0
        %4329 = vmatpush1.bf16.msra.mxu0 %v4299
        %4330 = vmatprep.subr.bf16.mxu0 0
        %4331 = vmatpush1.bf16.msra.mxu0 %v4296
        %4332 = vmatprep.subr.bf16.mxu0 0
        %4333 = vmatpush2.bf16.msra.mxu0 0
        %4334 = vmatprep.subr.bf16.mxu0 0
        %4335 = vmatpush2.bf16.msra.mxu0 0
        %4336 = vmatprep.subr.bf16.mxu0 0
        %4337 = vmatpush2.bf16.msra.mxu0 0
        %4338 = vmatprep.subr.bf16.mxu0 0
        %4339 = vmatpush2.bf16.msra.mxu0 0
        %4340 = vmatprep.subr.bf16.mxu0 0
        %4341 = vmatpush2.bf16.msra.mxu0 0
        %4342 = vmatprep.subr.bf16.mxu0 0
        %4343 = vmatpush2.bf16.msra.mxu0 0
        %4344 = vmatprep.subr.bf16.mxu0 0
        %4345 = vmatpush2.bf16.msra.mxu0 0
        %4346 = vmatprep.subr.bf16.mxu0 0
        %4347 = vmatpush2.bf16.msra.mxu0 0
        %4348 = vmatprep.mubr.bf16.mxu0 0
        %4349 = vmatmul.mubr.bf16.gmra.mxu0 %v4311
        %v4350 = vpop.f32.mrf.mxu0
        %v4351 = vadd.f32 0.0, %v4350
        %v4352 = vpop.f32.mrf.mxu0
        %v4353 = vpop.f32.mrf.mxu0
        %v4354 = vpop.f32.mrf.mxu0
        %4355 = vdwg.mxu0
        %4357 = vrot.lane.b32.xlu0 %v4351, 120
        %v4358 = vpop.permute.xlu0 %4357
        %4360 = vrot.lane.b32.xlu0 %v4351, 112
        %v4361 = vpop.permute.xlu0 %4360
        %4363 = vrot.lane.b32.xlu0 %v4351, 104
        %v4364 = vpop.permute.xlu0 %4363
        %4366 = vrot.lane.b32.xlu0 %v4351, 96
        %v4367 = vpop.permute.xlu0 %4366
        %4369 = vrot.lane.b32.xlu0 %v4351, 88
        %v4370 = vpop.permute.xlu0 %4369
        %4372 = vrot.lane.b32.xlu0 %v4351, 80
        %v4373 = vpop.permute.xlu0 %4372
        %4375 = vrot.lane.b32.xlu0 %v4351, 72
        %v4376 = vpop.permute.xlu0 %4375
        %v4378 = vcombine.low %v4351, %v4361
        %v4379 = vcombine.high %v4351, %v4361
        %v4381 = vunpack.c.l.s4 1983009808
        %v4382 = vunpack.c.0.s8 %v4381
        %v4383 = vlaneseq
        %v4384 = vshrl.u32 %v4383, 7
        %v4385 = vsub.s32 %v4382, %v4384
        %v4386 = vrot.slane %v4378, %v4385
        %v4388 = vunpack.c.l.s4 1983009808
        %v4389 = vunpack.c.0.s8 %v4388
        %v4390 = vlaneseq
        %v4391 = vshrl.u32 %v4390, 7
        %v4392 = vsub.s32 %v4389, %v4391
        %v4393 = vrot.slane %v4379, %v4392
        %v4394 = vcombine.low %v4358, %v4364
        %v4395 = vcombine.high %v4358, %v4364
        %v4397 = vunpack.c.l.s4 1983009808
        %v4398 = vunpack.c.0.s8 %v4397
        %v4399 = vlaneseq
        %v4400 = vshrl.u32 %v4399, 7
        %v4401 = vsub.s32 %v4398, %v4400
        %v4402 = vrot.slane %v4394, %v4401
        %v4404 = vunpack.c.l.s4 1983009808
        %v4405 = vunpack.c.0.s8 %v4404
        %v4406 = vlaneseq
        %v4407 = vshrl.u32 %v4406, 7
        %v4408 = vsub.s32 %v4405, %v4407
        %v4409 = vrot.slane %v4395, %v4408
        %v4410 = vcombine.low %v4367, %v4373
        %v4411 = vcombine.high %v4367, %v4373
        %v4413 = vunpack.c.l.s4 1983009808
        %v4414 = vunpack.c.0.s8 %v4413
        %v4415 = vlaneseq
        %v4416 = vshrl.u32 %v4415, 7
        %v4417 = vsub.s32 %v4414, %v4416
        %v4418 = vrot.slane %v4410, %v4417
        %v4420 = vunpack.c.l.s4 1983009808
        %v4421 = vunpack.c.0.s8 %v4420
        %v4422 = vlaneseq
        %v4423 = vshrl.u32 %v4422, 7
        %v4424 = vsub.s32 %v4421, %v4423
        %v4425 = vrot.slane %v4411, %v4424
        %v4426 = vcombine.low %v4370, %v4376
        %v4427 = vcombine.high %v4370, %v4376
        %v4429 = vunpack.c.l.s4 1983009808
        %v4430 = vunpack.c.0.s8 %v4429
        %v4431 = vlaneseq
        %v4432 = vshrl.u32 %v4431, 7
        %v4433 = vsub.s32 %v4430, %v4432
        %v4434 = vrot.slane %v4426, %v4433
        %v4436 = vunpack.c.l.s4 1983009808
        %v4437 = vunpack.c.0.s8 %v4436
        %v4438 = vlaneseq
        %v4439 = vshrl.u32 %v4438, 7
        %v4440 = vsub.s32 %v4437, %v4439
        %v4441 = vrot.slane %v4427, %v4440
        %v4442 = vcombine.low %v4386, %v4402
        %v4443 = vcombine.high %v4386, %v4402
        %v4445 = vunpack.c.l.s4 1934713408
        %v4446 = vunpack.c.0.s8 %v4445
        %v4447 = vlaneseq
        %v4448 = vshrl.u32 %v4447, 7
        %v4449 = vsub.s32 %v4446, %v4448
        %v4450 = vrot.slane %v4442, %v4449
        %v4452 = vunpack.c.l.s4 1934713408
        %v4453 = vunpack.c.0.s8 %v4452
        %v4454 = vlaneseq
        %v4455 = vshrl.u32 %v4454, 7
        %v4456 = vsub.s32 %v4453, %v4455
        %v4457 = vrot.slane %v4443, %v4456
        %v4458 = vcombine.low %v4393, %v4409
        %v4459 = vcombine.high %v4393, %v4409
        %v4461 = vunpack.c.l.s4 1934713408
        %v4462 = vunpack.c.0.s8 %v4461
        %v4463 = vlaneseq
        %v4464 = vshrl.u32 %v4463, 7
        %v4465 = vsub.s32 %v4462, %v4464
        %v4466 = vrot.slane %v4458, %v4465
        %v4468 = vunpack.c.l.s4 1934713408
        %v4469 = vunpack.c.0.s8 %v4468
        %v4470 = vlaneseq
        %v4471 = vshrl.u32 %v4470, 7
        %v4472 = vsub.s32 %v4469, %v4471
        %v4473 = vrot.slane %v4459, %v4472
        %v4474 = vcombine.low %v4418, %v4434
        %v4475 = vcombine.high %v4418, %v4434
        %v4477 = vunpack.c.l.s4 1934713408
        %v4478 = vunpack.c.0.s8 %v4477
        %v4479 = vlaneseq
        %v4480 = vshrl.u32 %v4479, 7
        %v4481 = vsub.s32 %v4478, %v4480
        %v4482 = vrot.slane %v4474, %v4481
        %v4484 = vunpack.c.l.s4 1934713408
        %v4485 = vunpack.c.0.s8 %v4484
        %v4486 = vlaneseq
        %v4487 = vshrl.u32 %v4486, 7
        %v4488 = vsub.s32 %v4485, %v4487
        %v4489 = vrot.slane %v4475, %v4488
        %v4490 = vcombine.low %v4425, %v4441
        %v4491 = vcombine.high %v4425, %v4441
        %v4493 = vunpack.c.l.s4 1934713408
        %v4494 = vunpack.c.0.s8 %v4493
        %v4495 = vlaneseq
        %v4496 = vshrl.u32 %v4495, 7
        %v4497 = vsub.s32 %v4494, %v4496
        %v4498 = vrot.slane %v4490, %v4497
        %v4500 = vunpack.c.l.s4 1934713408
        %v4501 = vunpack.c.0.s8 %v4500
        %v4502 = vlaneseq
        %v4503 = vshrl.u32 %v4502, 7
        %v4504 = vsub.s32 %v4501, %v4503
        %v4505 = vrot.slane %v4491, %v4504
        %v4506 = vcombine.low %v4450, %v4482
        %v4507 = vcombine.high %v4450, %v4482
        %v4508 = vcombine.low %v4457, %v4489
        %v4509 = vcombine.high %v4457, %v4489
        %v4510 = vcombine.low %v4466, %v4498
        %v4511 = vcombine.high %v4466, %v4498
        %v4512 = vcombine.low %v4473, %v4505
        %v4513 = vcombine.high %v4473, %v4505
        %v4514 = vsel %vm2561, %v4506, 0.0
        %4515 = vadd.xlane.f32.xlu0 %v4514
        %v4516 = vpop.xlane.xlu0 %4515
        %v4517 = vrot.slane %v4516, 4
        %v4518 = vadd.f32 %v4516, %v4517
        %v4519 = vrot.slane %v4518, 2
        %v4520 = vadd.f32 %v4518, %v4519
        %v4521 = vrot.slane %v4520, 1
        %v4522 = vadd.f32 %v4520, %v4521
        %v4523 = vsel %vm2561, %v4507, 0.0
        %4524 = vadd.xlane.f32.xlu0 %v4523
        %v4525 = vpop.xlane.xlu0 %4524
        %v4526 = vrot.slane %v4525, 4
        %v4527 = vadd.f32 %v4525, %v4526
        %v4528 = vrot.slane %v4527, 2
        %v4529 = vadd.f32 %v4527, %v4528
        %v4530 = vrot.slane %v4529, 1
        %v4531 = vadd.f32 %v4529, %v4530
        %v4532 = vsel %vm2561, %v4508, 0.0
        %4533 = vadd.xlane.f32.xlu0 %v4532
        %v4534 = vpop.xlane.xlu0 %4533
        %v4535 = vrot.slane %v4534, 4
        %v4536 = vadd.f32 %v4534, %v4535
        %v4537 = vrot.slane %v4536, 2
        %v4538 = vadd.f32 %v4536, %v4537
        %v4539 = vrot.slane %v4538, 1
        %v4540 = vadd.f32 %v4538, %v4539
        %v4541 = vsel %vm2561, %v4509, 0.0
        %4542 = vadd.xlane.f32.xlu0 %v4541
        %v4543 = vpop.xlane.xlu0 %4542
        %v4544 = vrot.slane %v4543, 4
        %v4545 = vadd.f32 %v4543, %v4544
        %v4546 = vrot.slane %v4545, 2
        %v4547 = vadd.f32 %v4545, %v4546
        %v4548 = vrot.slane %v4547, 1
        %v4549 = vadd.f32 %v4547, %v4548
        %v4550 = vsel %vm2561, %v4510, 0.0
        %4551 = vadd.xlane.f32.xlu0 %v4550
        %v4552 = vpop.xlane.xlu0 %4551
        %v4553 = vrot.slane %v4552, 4
        %v4554 = vadd.f32 %v4552, %v4553
        %v4555 = vrot.slane %v4554, 2
        %v4556 = vadd.f32 %v4554, %v4555
        %v4557 = vrot.slane %v4556, 1
        %v4558 = vadd.f32 %v4556, %v4557
        %v4559 = vsel %vm2561, %v4511, 0.0
        %4560 = vadd.xlane.f32.xlu0 %v4559
        %v4561 = vpop.xlane.xlu0 %4560
        %v4562 = vrot.slane %v4561, 4
        %v4563 = vadd.f32 %v4561, %v4562
        %v4564 = vrot.slane %v4563, 2
        %v4565 = vadd.f32 %v4563, %v4564
        %v4566 = vrot.slane %v4565, 1
        %v4567 = vadd.f32 %v4565, %v4566
        %v4568 = vsel %vm2561, %v4512, 0.0
        %4569 = vadd.xlane.f32.xlu0 %v4568
        %v4570 = vpop.xlane.xlu0 %4569
        %v4571 = vrot.slane %v4570, 4
        %v4572 = vadd.f32 %v4570, %v4571
        %v4573 = vrot.slane %v4572, 2
        %v4574 = vadd.f32 %v4572, %v4573
        %v4575 = vrot.slane %v4574, 1
        %v4576 = vadd.f32 %v4574, %v4575
        %v4577 = vsel %vm2561, %v4513, 0.0
        %4578 = vadd.xlane.f32.xlu0 %v4577
        %v4579 = vpop.xlane.xlu0 %4578
        %v4580 = vrot.slane %v4579, 4
        %v4581 = vadd.f32 %v4579, %v4580
        %v4582 = vrot.slane %v4581, 2
        %v4583 = vadd.f32 %v4581, %v4582
        %v4584 = vrot.slane %v4583, 1
        %v4585 = vadd.f32 %v4583, %v4584
        %v4586 = vmul.f32 %v4506, %v4506
        %v4587 = vmul.f32 %v4507, %v4507
        %v4588 = vmul.f32 %v4508, %v4508
        %v4589 = vmul.f32 %v4509, %v4509
        %v4590 = vmul.f32 %v4510, %v4510
        %v4591 = vmul.f32 %v4511, %v4511
        %v4592 = vmul.f32 %v4512, %v4512
        %v4593 = vmul.f32 %v4513, %v4513
        %v4594 = vsel %vm2561, %v4586, 0.0
        %4595 = vadd.xlane.f32.xlu0 %v4594
        %v4596 = vpop.xlane.xlu0 %4595
        %v4597 = vrot.slane %v4596, 4
        %v4598 = vadd.f32 %v4596, %v4597
        %v4599 = vrot.slane %v4598, 2
        %v4600 = vadd.f32 %v4598, %v4599
        %v4601 = vrot.slane %v4600, 1
        %v4602 = vadd.f32 %v4600, %v4601
        %v4603 = vsel %vm2561, %v4587, 0.0
        %4604 = vadd.xlane.f32.xlu0 %v4603
        %v4605 = vpop.xlane.xlu0 %4604
        %v4606 = vrot.slane %v4605, 4
        %v4607 = vadd.f32 %v4605, %v4606
        %v4608 = vrot.slane %v4607, 2
        %v4609 = vadd.f32 %v4607, %v4608
        %v4610 = vrot.slane %v4609, 1
        %v4611 = vadd.f32 %v4609, %v4610
        %v4612 = vsel %vm2561, %v4588, 0.0
        %4613 = vadd.xlane.f32.xlu0 %v4612
        %v4614 = vpop.xlane.xlu0 %4613
        %v4615 = vrot.slane %v4614, 4
        %v4616 = vadd.f32 %v4614, %v4615
        %v4617 = vrot.slane %v4616, 2
        %v4618 = vadd.f32 %v4616, %v4617
        %v4619 = vrot.slane %v4618, 1
        %v4620 = vadd.f32 %v4618, %v4619
        %v4621 = vsel %vm2561, %v4589, 0.0
        %4622 = vadd.xlane.f32.xlu0 %v4621
        %v4623 = vpop.xlane.xlu0 %4622
        %v4624 = vrot.slane %v4623, 4
        %v4625 = vadd.f32 %v4623, %v4624
        %v4626 = vrot.slane %v4625, 2
        %v4627 = vadd.f32 %v4625, %v4626
        %v4628 = vrot.slane %v4627, 1
        %v4629 = vadd.f32 %v4627, %v4628
        %v4630 = vsel %vm2561, %v4590, 0.0
        %4631 = vadd.xlane.f32.xlu0 %v4630
        %v4632 = vpop.xlane.xlu0 %4631
        %v4633 = vrot.slane %v4632, 4
        %v4634 = vadd.f32 %v4632, %v4633
        %v4635 = vrot.slane %v4634, 2
        %v4636 = vadd.f32 %v4634, %v4635
        %v4637 = vrot.slane %v4636, 1
        %v4638 = vadd.f32 %v4636, %v4637
        %v4639 = vsel %vm2561, %v4591, 0.0
        %4640 = vadd.xlane.f32.xlu0 %v4639
        %v4641 = vpop.xlane.xlu0 %4640
        %v4642 = vrot.slane %v4641, 4
        %v4643 = vadd.f32 %v4641, %v4642
        %v4644 = vrot.slane %v4643, 2
        %v4645 = vadd.f32 %v4643, %v4644
        %v4646 = vrot.slane %v4645, 1
        %v4647 = vadd.f32 %v4645, %v4646
        %v4648 = vsel %vm2561, %v4592, 0.0
        %4649 = vadd.xlane.f32.xlu0 %v4648
        %v4650 = vpop.xlane.xlu0 %4649
        %v4651 = vrot.slane %v4650, 4
        %v4652 = vadd.f32 %v4650, %v4651
        %v4653 = vrot.slane %v4652, 2
        %v4654 = vadd.f32 %v4652, %v4653
        %v4655 = vrot.slane %v4654, 1
        %v4656 = vadd.f32 %v4654, %v4655
        %v4657 = vsel %vm2561, %v4593, 0.0
        %4658 = vadd.xlane.f32.xlu0 %v4657
        %v4659 = vpop.xlane.xlu0 %4658
        %v4660 = vrot.slane %v4659, 4
        %v4661 = vadd.f32 %v4659, %v4660
        %v4662 = vrot.slane %v4661, 2
        %v4663 = vadd.f32 %v4661, %v4662
        %v4664 = vrot.slane %v4663, 1
        %v4665 = vadd.f32 %v4663, %v4664
        %v4666 = vmul.f32 %v4522, 0.015625
        %v4667 = vmul.f32 %v4531, 0.015625
        %v4668 = vmul.f32 %v4540, 0.015625
        %v4669 = vmul.f32 %v4549, 0.015625
        %v4670 = vmul.f32 %v4558, 0.015625
        %v4671 = vmul.f32 %v4567, 0.015625
        %v4672 = vmul.f32 %v4576, 0.015625
        %v4673 = vmul.f32 %v4585, 0.015625
        %v4674 = vmul.f32 %v4602, 0.015625
        %v4675 = vmul.f32 %v4611, 0.015625
        %v4676 = vmul.f32 %v4620, 0.015625
        %v4677 = vmul.f32 %v4629, 0.015625
        %v4678 = vmul.f32 %v4638, 0.015625
        %v4679 = vmul.f32 %v4647, 0.015625
        %v4680 = vmul.f32 %v4656, 0.015625
        %v4681 = vmul.f32 %v4665, 0.015625
        %v4682 = vmul.f32 %v4666, %v4666
        %v4683 = vmul.f32 %v4667, %v4667
        %v4684 = vmul.f32 %v4668, %v4668
        %v4685 = vmul.f32 %v4669, %v4669
        %v4686 = vmul.f32 %v4670, %v4670
        %v4687 = vmul.f32 %v4671, %v4671
        %v4688 = vmul.f32 %v4672, %v4672
        %v4689 = vmul.f32 %v4673, %v4673
        %v4690 = vsub.f32 %v4674, %v4682
        %v4691 = vsub.f32 %v4675, %v4683
        %v4692 = vsub.f32 %v4676, %v4684
        %v4693 = vsub.f32 %v4677, %v4685
        %v4694 = vsub.f32 %v4678, %v4686
        %v4695 = vsub.f32 %v4679, %v4687
        %v4696 = vsub.f32 %v4680, %v4688
        %v4697 = vsub.f32 %v4681, %v4689
        %v4698 = vmax.f32 %v4690, 0.0
        %v4699 = vmax.f32 %v4691, 0.0
        %v4700 = vmax.f32 %v4692, 0.0
        %v4701 = vmax.f32 %v4693, 0.0
        %v4702 = vmax.f32 %v4694, 0.0
        %v4703 = vmax.f32 %v4695, 0.0
        %v4704 = vmax.f32 %v4696, 0.0
        %v4705 = vmax.f32 %v4697, 0.0
        %v4706 = vsub.f32 %v4506, %v4666
        %v4707 = vsub.f32 %v4507, %v4667
        %v4708 = vsub.f32 %v4508, %v4668
        %v4709 = vsub.f32 %v4509, %v4669
        %v4710 = vsub.f32 %v4510, %v4670
        %v4711 = vsub.f32 %v4511, %v4671
        %v4712 = vsub.f32 %v4512, %v4672
        %v4713 = vsub.f32 %v4513, %v4673
        %v4714 = vadd.f32 %v4698, 1e-05
        %v4715 = vadd.f32 %v4699, 1e-05
        %v4716 = vadd.f32 %v4700, 1e-05
        %v4717 = vadd.f32 %v4701, 1e-05
        %v4718 = vadd.f32 %v4702, 1e-05
        %v4719 = vadd.f32 %v4703, 1e-05
        %v4720 = vadd.f32 %v4704, 1e-05
        %v4721 = vadd.f32 %v4705, 1e-05
        %v4722 = vrsqrt.pop %v4714
        %v4723 = vrsqrt.pop %v4715
        %v4724 = vrsqrt.pop %v4716
        %v4725 = vrsqrt.pop %v4717
        %v4726 = vrsqrt.pop %v4718
        %v4727 = vrsqrt.pop %v4719
        %v4728 = vrsqrt.pop %v4720
        %v4729 = vrsqrt.pop %v4721
        %v4730 = vmul.f32 %v4706, %v4722
        %v4731 = vmul.f32 %v4707, %v4723
        %v4732 = vmul.f32 %v4708, %v4724
        %v4733 = vmul.f32 %v4709, %v4725
        %v4734 = vmul.f32 %v4710, %v4726
        %v4735 = vmul.f32 %v4711, %v4727
        %v4736 = vmul.f32 %v4712, %v4728
        %v4737 = vmul.f32 %v4713, %v4729
        %v4738 = vmul.f32 %v4730, 0.2
        %v4739 = vmul.f32 %v4731, 0.2
        %v4740 = vmul.f32 %v4732, 0.2
        %v4741 = vmul.f32 %v4733, 0.2
        %v4742 = vmul.f32 %v4734, 0.2
        %v4743 = vmul.f32 %v4735, 0.2
        %v4744 = vmul.f32 %v4736, 0.2
        %v4745 = vmul.f32 %v4737, 0.2
        %v4746 = vmax.f32 %v4730, %v4738
        %v4747 = vmax.f32 %v4731, %v4739
        %v4748 = vmax.f32 %v4732, %v4740
        %v4749 = vmax.f32 %v4733, %v4741
        %v4750 = vmax.f32 %v4734, %v4742
        %v4751 = vmax.f32 %v4735, %v4743
        %v4752 = vmax.f32 %v4736, %v4744
        %v4753 = vmax.f32 %v4737, %v4745
        %4754 = vst.msk [vmem:[%s213] sm:$0xff] %vm2561, %v4746
        %4755 = vst.msk [vmem:[%s213 + $0x8] sm:$0xff] %vm2561, %v4747
        %4756 = vst.msk [vmem:[%s213 + $0x10] sm:$0xff] %vm2561, %v4748
        %4757 = vst.msk [vmem:[%s213 + $0x18] sm:$0xff] %vm2561, %v4749
        %4758 = vst.msk [vmem:[%s213 + $0x20] sm:$0xff] %vm2561, %v4750
        %4759 = vst.msk [vmem:[%s213 + $0x28] sm:$0xff] %vm2561, %v4751
        %4760 = vst.msk [vmem:[%s213 + $0x30] sm:$0xff] %vm2561, %v4752
        %4761 = vst.msk [vmem:[%s213 + $0x38] sm:$0xff] %vm2561, %v4753
        %s4762 = sand.u32 %s97, 1
        %s4763 = scalar_lea.sflag [#allocation4], %s4762
        %s4764 = sand.u32 %s97, 1
        %s4765 = smul.addr %s4764, 64
        %s4766 = scalar_lea.vmem [#allocation8], %s4765
        // Predicated region
        $region45: #{tpu_custom_call.1} parent=31 // pred_check
          %p4767 = pneg %p107
        $region46: #{tpu_custom_call.1} parent=31 // pred_check_branch
          %4769 = sbr.rel (%p4767) target = $region48
        $region47: #{tpu_custom_call.1} parent=31 // pred_region
          %s4771 = ssub.s32 1024, 1024
          %4772 = vsyncadd %s4763, %s4771
          %s4773 = smul.addr %s21, 8
          %s4774 = smul.addr %s4773, 128
          %s4775 = scalar_lea.hbm %s3, %s4774
          %s4776 = sshll.u32 %s4766, 4
          %s4777 = int_to_ptr.vmem [resolvable:$true] %s4776
          %4782 = dma.vmem_to_hbm [thread:$0]  %s4777, 1024, %s4775, %s4763, 128, 128, 8
        $region48: #{tpu_custom_call.1} parent=31 // pred_fallthru
          _
      $region32: #{tpu_custom_call.1} parent=5 // pred_fallthru
        _
      %p4783 = scmp.le.s32.totalorder 2, %s16
      // Predicated region
      $region49: #{tpu_custom_call.1} parent=5 // pred_check
        %p4784 = pneg %p4783
      $region50: #{tpu_custom_call.1} parent=5 // pred_check_branch
        %4786 = sbr.rel (%p4784) target = $region52
      $region51: #{tpu_custom_call.1} parent=5 // pred_region
        %s4787 = ssub.s32 %s16, 2
        // Predicated region
        $region53: #{tpu_custom_call.1} parent=51 // pred_check
          %p4788 = pneg %p113
        $region54: #{tpu_custom_call.1} parent=51 // pred_check_branch
          %4790 = sbr.rel (%p4788) target = $region56
        $region55: #{tpu_custom_call.1} parent=51 // pred_region
          %s4791 = sand.u32 %s98, 1
          %s4792 = scalar_lea.sflag [#allocation4], %s4791
          %s4793 = sand.u32 %s98, 1
          %s4794 = smul.addr %s4793, 64
          %s4795 = scalar_lea.vmem [#allocation8], %s4794
          %4796 = dma.done %s4792, 1024
        $region56: #{tpu_custom_call.1} parent=51 // pred_fallthru
          _
      $region52: #{tpu_custom_call.1} parent=5 // pred_fallthru
        _
    $region6: #{tpu_custom_call.1} parent=1 // loop_footer
      %s20 = sadd.s32 1, %s16
    $region7: #{tpu_custom_call.1} parent=1 // loop_footer_branch
      %15 = sbr.rel target = $region3
    $region8: #{tpu_custom_call.1} parent=1 // loop_exit
      _
    %4797 = vsyncpa [#allocation3], 1
    %s4798 = scalar_lea.sflag [#allocation3], 1
    %4799 = vsyncpa %s4798, 1
    %4800 = vsyncpa [#allocation6], 1
    %4801 = vsyncpa [#allocation4], 1
    %s4802 = scalar_lea.sflag [#allocation4], 1
    %4803 = vsyncpa %s4802, 1

</llo_original>
